<compile_context>
chip_gen: v7x
topology: tpu7x:2x2x1
jax: 0.10.0
libtpu: 0.0.40
codegen_flags: <defaults>
</compile_context>

<pallas_src>
import functools

import jax
import jax.numpy as jnp
from jax import lax
from jax.experimental import pallas as pl
from jax.experimental.pallas import tpu as pltpu

_EPS = 1e-5
_LANE = 128


def _round_up(x, m):
    return (x + m - 1) // m * m


def _tile_rows(m, tile_rows, min_tile=8):
    """Row tile: multiple of 8, >= min_tile, and >= 2 grid steps when possible."""
    min_tile = _round_up(max(min_tile, 8), 8)
    t = _round_up(min(max(tile_rows, 8), max(m, 8)), 8)
    if m > 2 * min_tile:
        # keep at least two grid steps so a v7x megacore can split the row axis
        t = min(t, max(min_tile, _round_up((m + 1) // 2, 8)))
    t = max(t, min_tile)
    m_pad = _round_up(max(m, 1), t)
    return t, m_pad, m_pad // t


def _vmem_limit_bytes():
    cap = None
    try:
        cap = int(pltpu.get_tpu_info().vmem_capacity_bytes)
    except Exception:
        cap = None
    if cap is None:
        try:
            kind = jax.devices()[0].device_kind.lower()
        except Exception:
            kind = ""
        cap = 64 * 1024 * 1024 if "v7" in kind else 128 * 1024 * 1024
    # ~85% of physical per-core VMEM (leave headroom), never above 112 MiB:
    #   v5e/v6e (128 MiB) -> ~109 MiB, v7x (64 MiB) -> ~54 MiB.
    return max(32 * 1024 * 1024, min(int(cap * 0.85), 112 * 1024 * 1024))


def _cparams(vmem_limit_bytes):
    return pltpu.CompilerParams(
        dimension_semantics=("parallel",),
        vmem_limit_bytes=int(vmem_limit_bytes))


def _const_spec(shape):
    """BlockSpec for a grid-invariant operand (weights, folded BN scale/shift)."""
    return pl.BlockSpec(shape, lambda i, _n=len(shape): (0,) * _n)


# ----------------------------- in-kernel helpers ------------------------------
def _stats(st_ref, y):
    # single (2, C) store per tile: [channel sum, channel sum of squares]
    st_ref[0, :, :] = jnp.concatenate(
        [jnp.sum(y, axis=0, keepdims=True),
         jnp.sum(y * y, axis=0, keepdims=True)], axis=0)


def _fold_bn(stats, count, gamma, beta):
    # stats: (num_tiles, 2, C).  Padded rows/channels contribute exactly 0, so
    # dividing by the *valid* element count gives exact batch statistics.
    s = jnp.sum(stats[:, 0, :], axis=0)
    sq = jnp.sum(stats[:, 1, :], axis=0)
    mean = s / count
    var = jnp.maximum(sq / count - mean * mean, 0.0)
    scale = gamma * lax.rsqrt(var + _EPS)      # (1, C)
    shift = beta - mean * scale                # (1, C)
    return scale, shift


# ----------------------------- kernels ---------------------------------------
def _mm_stats_kernel(x_ref, w_ref, r_ref, st_ref):
    y = jnp.dot(x_ref[...], w_ref[...], preferred_element_type=jnp.float32)
    r_ref[...] = y.astype(r_ref.dtype)
    _stats(st_ref, y)


def _mm2_stats_kernel(x_ref, wa_ref, wb_ref, ra_ref, rb_ref, sta_ref, stb_ref):
    x = x_ref[...]
    ya = jnp.dot(x, wa_ref[...], preferred_element_type=jnp.float32)
    ra_ref[...] = ya.astype(ra_ref.dtype)
    _stats(sta_ref, ya)
    yb = jnp.dot(x, wb_ref[...], preferred_element_type=jnp.float32)
    rb_ref[...] = yb.astype(rb_ref.dtype)
    _stats(stb_ref, yb)


def _im2col_proj_kernel(p_ref, w2_ref, xs_ref, ws_ref,
                        r2_ref, rs_ref, st2_ref, sts_ref):
    y = jnp.dot(p_ref[...], w2_ref[...], preferred_element_type=jnp.float32)
    r2_ref[...] = y.astype(r2_ref.dtype)
    _stats(st2_ref, y)
    s = jnp.dot(xs_ref[...], ws_ref[...], preferred_element_type=jnp.float32)
    rs_ref[...] = s.astype(rs_ref.dtype)
    _stats(sts_ref, s)


def _make_conv3x3_kernel(tile, halo, img_w, cmid_p, mm_dtype):
    """Halo-aware 3x3 stride-1 conv on the flattened zero-padded activation.

    Rows are the flattened (n, h+2, w+2) pixel grid; the tap at spatial offset
    (dh-1, dw-1) of row p is row p + (dh-1)*(w+2) + (dw-1).  The prologue fuses
    the folded BN1 affine + ReLU + conv-padding mask.
    """
    off0 = halo - (img_w + 3)          # >= 0 because halo = round_up(w + 3, 8)

    def kernel(r1p_ref, r1m_ref, r1n_ref, mkp_ref, mkm_ref, mkn_ref,
               sc1_ref, sh1_ref, w2_ref, r2_ref, st2_ref):
        sc1 = sc1_ref[...]
        sh1 = sh1_ref[...]

        def act(r, mk):                # BN1 affine + ReLU + zero conv padding
            return jnp.maximum(r.astype(jnp.float32) * sc1 + sh1, 0.0) * mk

        src = jnp.concatenate(
            [act(r1p_ref[pl.ds(tile - halo, halo), :],
                 mkp_ref[pl.ds(tile - halo, halo), :]),
             act(r1m_ref[...], mkm_ref[...]),
             act(r1n_ref[pl.ds(0, halo), :], mkn_ref[pl.ds(0, halo), :])],
            axis=0)                                    # (tile + 2*halo, Cmid)

        acc = jnp.zeros((tile, cmid_p), jnp.float32)
        for k in range(9):
            dh, dw = divmod(k, 3)
            off = off0 + dh * (img_w + 2) + dw
            acc = acc + jnp.dot(src[off:off + tile, :].astype(mm_dtype),
                                w2_ref[k], preferred_element_type=jnp.float32)
        r2_ref[...] = acc.astype(r2_ref.dtype)
        _stats(st2_ref, acc * mkm_ref[...])            # mask non-pixel rows
    return kernel


def _bn_relu_mm_kernel(r2_ref, mk_ref, sc2_ref, sh2_ref, w3_ref, r3_ref, st3_ref):
    y2 = jnp.maximum(
        r2_ref[...].astype(jnp.float32) * sc2_ref[...] + sh2_ref[...], 0.0)
    y2 = y2 * mk_ref[...]         # zero invalid rows -> clean BN3 statistics
    y3 = jnp.dot(y2.astype(w3_ref.dtype), w3_ref[...],
                 preferred_element_type=jnp.float32)
    r3_ref[...] = y3.astype(r3_ref.dtype)
    _stats(st3_ref, y3)


def _final_id_kernel(r3_ref, sc3_ref, sh3_ref, xs_ref, o_ref):
    y3 = r3_ref[...].astype(jnp.float32) * sc3_ref[...] + sh3_ref[...]
    o_ref[...] = jnp.maximum(y3 + xs_ref[...].astype(jnp.float32), 0.0)


def _final_proj_kernel(r3_ref, sc3_ref, sh3_ref, rs_ref, scs_ref, shs_ref, o_ref):
    y3 = r3_ref[...].astype(jnp.float32) * sc3_ref[...] + sh3_ref[...]
    sc = rs_ref[...].astype(jnp.float32) * scs_ref[...] + shs_ref[...]
    o_ref[...] = jnp.maximum(y3 + sc, 0.0)


# ----------------------------- parameter packing ------------------------------
def _pad_params(params, cin_p, cmid_p, cout_p, mm_dtype):
    cin, cmid = params["w1"].shape
    cout = params["w3"].shape[1]
    w1 = jnp.pad(params["w1"], ((0, cin_p - cin), (0, cmid_p - cmid))).astype(mm_dtype)
    w2 = jnp.pad(params["w2"],
                 ((0, 0), (0, cmid_p - cmid), (0, cmid_p - cmid))).astype(mm_dtype)
    w3 = jnp.pad(params["w3"], ((0, cmid_p - cmid), (0, cout_p - cout))).astype(mm_dtype)
    ws = jnp.pad(params["ws"], ((0, cin_p - cin), (0, cout_p - cout))).astype(mm_dtype)
    pad_mid = ((0, 0), (0, cmid_p - cmid))
    pad_out = ((0, 0), (0, cout_p - cout))
    bn = dict(
        g1=jnp.pad(params["g1"], pad_mid), b1=jnp.pad(params["b1"], pad_mid),
        g2=jnp.pad(params["g2"], pad_mid), b2=jnp.pad(params["b2"], pad_mid),
        g3=jnp.pad(params["g3"], pad_out), b3=jnp.pad(params["b3"], pad_out),
        gs=jnp.pad(params["gs"], pad_out), bs=jnp.pad(params["bs"], pad_out))
    return w1, w2, w3, ws, bn


# ----------------------------- stride == 1 path --------------------------------
def _forward_stride1(x_nchw, params, *, tile_rows, mm_dtype, vmem_limit):
    n, cin, h, w = x_nchw.shape
    cmid = params["w1"].shape[1]
    cout = params["w3"].shape[1]
    has_projection = cin != cout
    cin_p, cmid_p, cout_p = (_round_up(c, _LANE) for c in (cin, cmid, cout))
    w1, w2, w3, ws, bn = _pad_params(params, cin_p, cmid_p, cout_p, mm_dtype)

    # Layout glue: NCHW -> NHWC, SAME 3x3 spatial zero-pad, lane-dense channel
    # pad, then flatten to rows.  Row p means the same pixel in every kernel.
    x = jnp.transpose(x_nchw, (0, 2, 3, 1)).astype(jnp.float32)
    x = jnp.pad(x, ((0, 0), (1, 1), (1, 1), (0, cin_p - cin)))
    mp = n * (h + 2) * (w + 2)        # flattened padded-image rows
    m_valid = float(n * h * w)        # real pixels (BN divisor)
    halo = _round_up(w + 3, 8)        # vertical halo rows per side
    t, mp_pad, grid = _tile_rows(mp, tile_rows, min_tile=halo)

    x2d = jnp.pad(x.reshape(mp, cin_p), ((0, mp_pad - mp), (0, 0))).astype(mm_dtype)
    mask = jnp.pad(
        jnp.pad(jnp.ones((n, h, w, 1), jnp.float32),
                ((0, 0), (1, 1), (1, 1), (0, 0))).reshape(mp, 1),
        ((0, mp_pad - mp), (0, 0)))

    isz = jnp.dtype(mm_dtype).itemsize
    cparams = _cparams(vmem_limit)
    row_in = pl.BlockSpec((t, cin_p), lambda i: (i, 0))
    row_mid = pl.BlockSpec((t, cmid_p), lambda i: (i, 0))
    row_out = pl.BlockSpec((t, cout_p), lambda i: (i, 0))
    st_mid = pl.BlockSpec((1, 2, cmid_p), lambda i: (i, 0, 0))
    st_out = pl.BlockSpec((1, 2, cout_p), lambda i: (i, 0, 0))
    chan_mid = _const_spec((1, cmid_p))
    chan_out = _const_spec((1, cout_p))

    # ---- kernel A: 1x1 conv (+ fused projection shortcut) + BN partial sums --
    if has_projection:
        r1, rs, st1, sts = pl.pallas_call(
            _mm2_stats_kernel,
            grid=(grid,),
            in_specs=[row_in, _const_spec((cin_p, cmid_p)),
                      _const_spec((cin_p, cout_p))],
            out_specs=[row_mid, row_out, st_mid, st_out],
            out_shape=[jax.ShapeDtypeStruct((mp_pad, cmid_p), mm_dtype),
                       jax.ShapeDtypeStruct((mp_pad, cout_p), mm_dtype),
                       jax.ShapeDtypeStruct((grid, 2, cmid_p), jnp.float32),
                       jax.ShapeDtypeStruct((grid, 2, cout_p), jnp.float32)],
            compiler_params=cparams,
            cost_estimate=pl.CostEstimate(
                flops=2 * mp_pad * cin_p * (cmid_p + cout_p), transcendentals=0,
                bytes_accessed=(x2d.size + w1.size + ws.size
                                + mp_pad * (cmid_p + cout_p)) * isz),
        )(x2d, w1, ws)
        scale_s, shift_s = _fold_bn(sts, m_valid, bn["gs"], bn["bs"])
    else:
        r1, st1 = pl.pallas_call(
            _mm_stats_kernel,
            grid=(grid,),
            in_specs=[row_in, _const_spec((cin_p, cmid_p))],
            out_specs=[row_mid, st_mid],
            out_shape=[jax.ShapeDtypeStruct((mp_pad, cmid_p), mm_dtype),
                       jax.ShapeDtypeStruct((grid, 2, cmid_p), jnp.float32)],
            compiler_params=cparams,
            cost_estimate=pl.CostEstimate(
                flops=2 * mp_pad * cin_p * cmid_p, transcendentals=0,
                bytes_accessed=(x2d.size + w1.size + mp_pad * cmid_p) * isz),
        )(x2d, w1)

    scale1, shift1 = _fold_bn(st1, m_valid, bn["g1"], bn["b1"])

    # ---- kernel B: halo-aware 3x3 conv (BN1 affine + ReLU fused in prologue) --
    prev_mid = pl.BlockSpec((t, cmid_p), lambda i: (jnp.maximum(i - 1, 0), 0))
    next_mid = pl.BlockSpec((t, cmid_p),
                            lambda i: (jnp.minimum(i + 1, grid - 1), 0))
    mk_main = pl.BlockSpec((t, 1), lambda i: (i, 0))
    mk_prev = pl.BlockSpec((t, 1), lambda i: (jnp.maximum(i - 1, 0), 0))
    mk_next = pl.BlockSpec((t, 1), lambda i: (jnp.minimum(i + 1, grid - 1), 0))

    r2, st2 = pl.pallas_call(
        _make_conv3x3_kernel(t, halo, w, cmid_p, mm_dtype),
        grid=(grid,),
        in_specs=[prev_mid, row_mid, next_mid, mk_prev, mk_main, mk_next,
                  chan_mid, chan_mid, _const_spec((9, cmid_p, cmid_p))],
        out_specs=[row_mid, st_mid],
        out_shape=[jax.ShapeDtypeStruct((mp_pad, cmid_p), mm_dtype),
                   jax.ShapeDtypeStruct((grid, 2, cmid_p), jnp.float32)],
        compiler_params=cparams,
        cost_estimate=pl.CostEstimate(
            flops=2 * mp_pad * 9 * cmid_p * cmid_p, transcendentals=0,
            bytes_accessed=(4 * mp_pad * cmid_p + 9 * cmid_p * cmid_p) * isz
            + mp_pad * 4),
    )(r1, r1, r1, mask, mask, mask, scale1, shift1, w2)

    scale2, shift2 = _fold_bn(st2, m_valid, bn["g2"], bn["b2"])

    # ---- kernel C: BN2 affine + ReLU + mask + 1x1 conv + BN3 partial sums ----
    r3, st3 = pl.pallas_call(
        _bn_relu_mm_kernel,
        grid=(grid,),
        in_specs=[row_mid, mk_main, chan_mid, chan_mid,
                  _const_spec((cmid_p, cout_p))],
        out_specs=[row_out, st_out],
        out_shape=[jax.ShapeDtypeStruct((mp_pad, cout_p), mm_dtype),
                   jax.ShapeDtypeStruct((grid, 2, cout_p), jnp.float32)],
        compiler_params=cparams,
        cost_estimate=pl.CostEstimate(
            flops=2 * mp_pad * cmid_p * cout_p, transcendentals=0,
            bytes_accessed=(mp_pad * cmid_p + cmid_p * cout_p
                            + mp_pad * cout_p) * isz + mp_pad * 4),
    )(r2, mask, scale2, shift2, w3)

    scale3, shift3 = _fold_bn(st3, m_valid, bn["g3"], bn["b3"])

    # ---- kernel D: BN3 affine + shortcut + residual add + ReLU ---------------
    if has_projection:
        out2d = pl.pallas_call(
            _final_proj_kernel,
            grid=(grid,),
            in_specs=[row_out, chan_out, chan_out, row_out, chan_out, chan_out],
            out_specs=row_out,
            out_shape=jax.ShapeDtypeStruct((mp_pad, cout_p), jnp.float32),
            compiler_params=cparams,
            cost_estimate=pl.CostEstimate(
                flops=4 * mp_pad * cout_p, transcendentals=0,
                bytes_accessed=2 * mp_pad * cout_p * isz + mp_pad * cout_p * 4),
        )(r3, scale3, shift3, rs, scale_s, shift_s)
    else:
        out2d = pl.pallas_call(
            _final_id_kernel,
            grid=(grid,),
            in_specs=[row_out, chan_out, chan_out, row_in],
            out_specs=row_out,
            out_shape=jax.ShapeDtypeStruct((mp_pad, cout_p), jnp.float32),
            compiler_params=cparams,
            cost_estimate=pl.CostEstimate(
                flops=3 * mp_pad * cout_p, transcendentals=0,
                bytes_accessed=2 * mp_pad * cout_p * isz + mp_pad * cout_p * 4),
        )(r3, scale3, shift3, x2d)

    # TODO(synk): when bottleneck blocks are chained, keep the padded-NHWC bf16
    # layout and skip the slice + NCHW transpose below.
    out = out2d[:mp].reshape(n, h + 2, w + 2, cout_p)[:, 1:h + 1, 1:w + 1, :cout]
    return jnp.transpose(out, (0, 3, 1, 2))


# ----------------------------- stride > 1 path ---------------------------------
def _forward_strided(x_nchw, params, stride, *, tile_rows, mm_dtype, vmem_limit):
    n, cin, h, w = x_nchw.shape
    cmid = params["w1"].shape[1]
    cout = params["w3"].shape[1]
    ho = (h - 1) // stride + 1
    wo = (w - 1) // stride + 1
    cin_p, cmid_p, cout_p = (_round_up(c, _LANE) for c in (cin, cmid, cout))
    w1, w2, w3, ws, bn = _pad_params(params, cin_p, cmid_p, cout_p, mm_dtype)
    w2 = w2.reshape(9 * cmid_p, cmid_p)
    isz = jnp.dtype(mm_dtype).itemsize
    cparams = _cparams(vmem_limit)

    x = jnp.transpose(x_nchw, (0, 2, 3, 1)).astype(jnp.float32)
    x = jnp.pad(x, ((0, 0), (0, 0), (0, 0), (0, cin_p - cin)))
    m1 = n * h * w
    m2 = n * ho * wo

    # ---- kernel A: 1x1 conv + BN1 partial sums -------------------------------
    t1, m1_pad, grid1 = _tile_rows(m1, tile_rows)
    x2d = jnp.pad(x.reshape(m1, cin_p), ((0, m1_pad - m1), (0, 0))).astype(mm_dtype)
    r1, st1 = pl.pallas_call(
        _mm_stats_kernel,
        grid=(grid1,),
        in_specs=[pl.BlockSpec((t1, cin_p), lambda i: (i, 0)),
                  _const_spec((cin_p, cmid_p))],
        out_specs=[pl.BlockSpec((t1, cmid_p), lambda i: (i, 0)),
                   pl.BlockSpec((1, 2, cmid_p), lambda i: (i, 0, 0))],
        out_shape=[jax.ShapeDtypeStruct((m1_pad, cmid_p), mm_dtype),
                   jax.ShapeDtypeStruct((grid1, 2, cmid_p), jnp.float32)],
        compiler_params=cparams,
        cost_estimate=pl.CostEstimate(
            flops=2 * m1_pad * cin_p * cmid_p, transcendentals=0,
            bytes_accessed=(x2d.size + w1.size + m1_pad * cmid_p) * isz),
    )(x2d, w1)
    scale1, shift1 = _fold_bn(st1, float(m1), bn["g1"], bn["b1"])

    # ---- glue: BN1 affine + ReLU fused (by XLA) into the im2col tap packing.
    # TODO(synk): a strided halo-aware kernel B (like the stride==1 path) would
    # avoid materializing this channel-packed tap operand for stride>1 too.
    y1 = jnp.maximum(r1[:m1].astype(jnp.float32) * scale1 + shift1, 0.0)
    y1p = jnp.pad(y1.reshape(n, h, w, cmid_p), ((0, 0), (1, 1), (1, 1), (0, 0)))
    taps = [y1p[:, dh:dh + stride * ho:stride, dw:dw + stride * wo:stride, :]
            .reshape(m2, cmid_p) for dh in range(3) for dw in range(3)]
    patches = jnp.concatenate(taps, axis=1).astype(mm_dtype)

    t2, m2_pad, grid2 = _tile_rows(m2, tile_rows)
    patches_p = jnp.pad(patches, ((0, m2_pad - m2), (0, 0)))
    xs2d = jnp.pad(x[:, ::stride, ::stride, :].reshape(m2, cin_p),
                   ((0, m2_pad - m2), (0, 0))).astype(mm_dtype)

    # ---- kernel B: 3x3 conv as one big-K matmul + fused projection shortcut --
    r2, rs, st2, sts = pl.pallas_call(
        _im2col_proj_kernel,
        grid=(grid2,),
        in_specs=[pl.BlockSpec((t2, 9 * cmid_p), lambda i: (i, 0)),
                  _const_spec((9 * cmid_p, cmid_p)),
                  pl.BlockSpec((t2, cin_p), lambda i: (i, 0)),
                  _const_spec((cin_p, cout_p))],
        out_specs=[pl.BlockSpec((t2, cmid_p), lambda i: (i, 0)),
                   pl.BlockSpec((t2, cout_p), lambda i: (i, 0)),
                   pl.BlockSpec((1, 2, cmid_p), lambda i: (i, 0, 0)),
                   pl.BlockSpec((1, 2, cout_p), lambda i: (i, 0, 0))],
        out_shape=[jax.ShapeDtypeStruct((m2_pad, cmid_p), mm_dtype),
                   jax.ShapeDtypeStruct((m2_pad, cout_p), mm_dtype),
                   jax.ShapeDtypeStruct((grid2, 2, cmid_p), jnp.float32),
                   jax.ShapeDtypeStruct((grid2, 2, cout_p), jnp.float32)],
        compiler_params=cparams,
        cost_estimate=pl.CostEstimate(
            flops=2 * m2_pad * (9 * cmid_p * cmid_p + cin_p * cout_p),
            transcendentals=0,
            bytes_accessed=(patches_p.size + w2.size + xs2d.size + ws.size
                            + m2_pad * (cmid_p + cout_p)) * isz),
    )(patches_p, w2, xs2d, ws)
    scale2, shift2 = _fold_bn(st2, float(m2), bn["g2"], bn["b2"])
    scale_s, shift_s = _fold_bn(sts, float(m2), bn["gs"], bn["bs"])

    # tail-row mask: alignment padding must not pollute the BN3 statistics
    mask = (jnp.arange(m2_pad, dtype=jnp.int32) < m2).astype(jnp.float32)[:, None]

    # ---- kernel C: BN2 affine + ReLU + mask + 1x1 conv + BN3 partial sums ----
    r3, st3 = pl.pallas_call(
        _bn_relu_mm_kernel,
        grid=(grid2,),
        in_specs=[pl.BlockSpec((t2, cmid_p), lambda i: (i, 0)),
                  pl.BlockSpec((t2, 1), lambda i: (i, 0)),
                  _const_spec((1, cmid_p)), _const_spec((1, cmid_p)),
                  _const_spec((cmid_p, cout_p))],
        out_specs=[pl.BlockSpec((t2, cout_p), lambda i: (i, 0)),
                   pl.BlockSpec((1, 2, cout_p), lambda i: (i, 0, 0))],
        out_shape=[jax.ShapeDtypeStruct((m2_pad, cout_p), mm_dtype),
                   jax.ShapeDtypeStruct((grid2, 2, cout_p), jnp.float32)],
        compiler_params=cparams,
        cost_estimate=pl.CostEstimate(
            flops=2 * m2_pad * cmid_p * cout_p, transcendentals=0,
            bytes_accessed=(m2_pad * cmid_p + cmid_p * cout_p
                            + m2_pad * cout_p) * isz + m2_pad * 4),
    )(r2, mask, scale2, shift2, w3)
    scale3, shift3 = _fold_bn(st3, float(m2), bn["g3"], bn["b3"])

    # ---- kernel D: BN3 affine + shortcut(BN) affine + residual add + ReLU ----
    row_out = pl.BlockSpec((t2, cout_p), lambda i: (i, 0))
    chan_out = _const_spec((1, cout_p))
    out2d = pl.pallas_call(
        _final_proj_kernel,
        grid=(grid2,),
        in_specs=[row_out, chan_out, chan_out, row_out, chan_out, chan_out],
        out_specs=row_out,
        out_shape=jax.ShapeDtypeStruct((m2_pad, cout_p), jnp.float32),
        compiler_params=cparams,
        cost_estimate=pl.CostEstimate(
            flops=4 * m2_pad * cout_p, transcendentals=0,
            bytes_accessed=2 * m2_pad * cout_p * isz + m2_pad * cout_p * 4),
    )(r3, scale3, shift3, rs, scale_s, shift_s)

    out = out2d[:m2, :cout].reshape(n, ho, wo, cout)
    return jnp.transpose(out, (0, 3, 1, 2))


# ----------------------------- public wrapper ----------------------------------
@functools.partial(jax.jit, static_argnames=("stride", "tile_rows", "matmul_dtype"))
def bottleneck_forward(x_nchw, params, stride, *,
                       tile_rows=None, matmul_dtype=jnp.bfloat16):
    vmem_limit = _vmem_limit_bytes()
    if tile_rows is None:
        # 128 MiB parts (v5e/v6e) can afford larger row tiles than v7x (64 MiB)
        tile_rows = 1024 if vmem_limit >= 80 * 1024 * 1024 else 512
    if stride == 1:
        return _forward_stride1(x_nchw, params, tile_rows=tile_rows,
                                mm_dtype=matmul_dtype, vmem_limit=vmem_limit)
    return _forward_strided(x_nchw, params, stride, tile_rows=tile_rows,
                            mm_dtype=matmul_dtype, vmem_limit=vmem_limit)


# ------------------------ params & pure-JAX reference -------------------------
def init_params(key, cin, cmid, cout):
    ks = jax.random.split(key, 12)

    def gb(kg, kb, c):
        return (1.0 + 0.1 * jax.random.normal(kg, (1, c), jnp.float32),
                0.1 * jax.random.normal(kb, (1, c), jnp.float32))

    g1, b1 = gb(ks[4], ks[5], cmid)
    g2, b2 = gb(ks[6], ks[7], cmid)
    g3, b3 = gb(ks[8], ks[9], cout)
    gs, bs = gb(ks[10], ks[11], cout)
    return {
        "w1": 0.1 * jax.random.normal(ks[0], (cin, cmid), jnp.float32),
        "w2": 0.1 * jax.random.normal(ks[1], (9, cmid, cmid), jnp.float32),
        "w3": 0.1 * jax.random.normal(ks[2], (cmid, cout), jnp.float32),
        "ws": 0.1 * jax.random.normal(ks[3], (cin, cout), jnp.float32),
        "g1": g1, "b1": b1, "g2": g2, "b2": b2,
        "g3": g3, "b3": b3, "gs": gs, "bs": bs,
    }


def _reference(x_nchw, params, stride):
    x = jnp.transpose(x_nchw, (0, 2, 3, 1)).astype(jnp.float32)
    hi = jax.lax.Precision.HIGHEST

    def conv(inp, w_hwio, s, pad):
        return jax.lax.conv_general_dilated(
            inp, w_hwio, window_strides=(s, s), padding=pad,
            dimension_numbers=("NHWC", "HWIO", "NHWC"), precision=hi)

    def bn(y, g, b):
        mean = y.mean(axis=(0, 1, 2), keepdims=True)
        var = ((y - mean) ** 2).mean(axis=(0, 1, 2), keepdims=True)
        return ((y - mean) * jax.lax.rsqrt(var + _EPS)
                * g.reshape(1, 1, 1, -1) + b.reshape(1, 1, 1, -1))

    cin = x.shape[-1]
    cmid = params["w1"].shape[1]
    cout = params["w3"].shape[1]
    w1 = params["w1"].reshape(1, 1, cin, cmid)
    w2 = params["w2"].reshape(3, 3, cmid, cmid)
    w3 = params["w3"].reshape(1, 1, cmid, cout)

    y = jnp.maximum(bn(conv(x, w1, 1, "VALID"), params["g1"], params["b1"]), 0.0)
    y = jnp.maximum(bn(conv(y, w2, stride, ((1, 1), (1, 1))),
                       params["g2"], params["b2"]), 0.0)
    y = bn(conv(y, w3, 1, "VALID"), params["g3"], params["b3"])
    if stride != 1 or cin != cout:
        ws = params["ws"].reshape(1, 1, cin, cout)
        sc = bn(conv(x, ws, stride, "VALID"), params["gs"], params["bs"])
    else:
        sc = x
    return jnp.transpose(jnp.maximum(y + sc, 0.0), (0, 3, 1, 2))


if __name__ == "__main__":
    key = jax.random.PRNGKey(0)
    kx1, kp1, kx2, kp2, kx3, kp3 = jax.random.split(key, 6)

    # Config 1: projection shortcut with downsampling (stride=2, cin != cout).
    x1 = jax.random.normal(kx1, (2, 4, 16, 16), jnp.float32)
    p1 = init_params(kp1, cin=4, cmid=8, cout=8)
    # Config 2: identity shortcut (stride=1, in_channel == out_channel).
    x2 = jax.random.normal(kx2, (2, 8, 16, 16), jnp.float32)
    p2 = init_params(kp2, cin=8, cmid=8, cout=8)
    # Config 3: projection shortcut at stride=1 (channel change only).
    x3 = jax.random.normal(kx3, (2, 4, 16, 16), jnp.float32)
    p3 = init_params(kp3, cin=4, cmid=8, cout=8)

    cases = [(x1, p1, 2, (2, 8, 8, 8)),
             (x2, p2, 1, (2, 8, 16, 16)),
             (x3, p3, 1, (2, 8, 16, 16))]

    for (x, p, s, shape) in cases:
        ref = _reference(x, p, stride=s)

        # f32 MXU operands + f32 intermediates: tight check.
        out = jax.block_until_ready(
            bottleneck_forward(x, p, stride=s, tile_rows=128,
                               matmul_dtype=jnp.float32))
        assert out.shape == shape, out.shape
        err = float(jnp.max(jnp.abs(out - ref)))
        assert jnp.allclose(out, ref, rtol=5e-3, atol=5e-3), ("f32", s, err)

        # bf16 MXU operands + bf16 inter-kernel activations (perf configuration,
        # f32 accumulation / BN / ReLU / residual): looser tolerance.
        out = jax.block_until_ready(
            bottleneck_forward(x, p, stride=s, tile_rows=128,
                               matmul_dtype=jnp.bfloat16))
        assert out.shape == shape, out.shape
        err = float(jnp.max(jnp.abs(out - ref)))
        assert jnp.allclose(out, ref, rtol=8e-2, atol=8e-2), ("bf16", s, err)

    print("KERNEL_OK")
</pallas_src>

<mosaic_0001>
module attributes {stable_mosaic.version = 11 : i64} {
  func.func @_mm_stats_kernel(%arg0: i32, %arg1: memref<128x128xf32, #tpu.memory_space<vmem>>, %arg2: memref<128x128xf32, #tpu.memory_space<vmem>>, %arg3: memref<128x128xf32, #tpu.memory_space<vmem>>, %arg4: memref<1x2x128xf32, #tpu.memory_space<vmem>>) attributes {dimension_semantics = [#tpu.dimension_semantics<parallel>], iteration_bounds = array<i64: 4>, scalar_prefetch = 0 : i64, scratch_operands = 0 : i64, tpu.core_type = #tpu.core_type<tc>, window_params = [{transform_indices = @transform_0, window_bounds = array<i64: 128, 128>}, {pipeline_mode = #tpu.pipeline_mode<synchronous>, transform_indices = @transform_1, window_bounds = array<i64: 128, 128>}, {transform_indices = @transform_2, window_bounds = array<i64: 128, 128>}, {transform_indices = @transform_3, window_bounds = array<i64: 1, 2, 128>}]} {
    %c0 = arith.constant 0 : index
    %c0_0 = arith.constant 0 : index
    %0 = vector.load %arg1[%c0, %c0_0] : memref<128x128xf32, #tpu.memory_space<vmem>>, vector<128x128xf32>
    %c0_1 = arith.constant 0 : index
    %c0_2 = arith.constant 0 : index
    %1 = vector.load %arg2[%c0_1, %c0_2] : memref<128x128xf32, #tpu.memory_space<vmem>>, vector<128x128xf32>
    %cst = arith.constant dense<0.000000e+00> : vector<128x128xf32>
    %2 = tpu.matmul %0, %1, %cst {dimension_numbers = #tpu.dot_dimension_numbers<[1], [0], [0], [1], [0, 0, 1, 1], [], []>} : vector<128x128xf32>, vector<128x128xf32>, vector<128x128xf32> -> vector<128x128xf32>
    %c0_3 = arith.constant 0 : index
    %c0_4 = arith.constant 0 : index
    %3 = vector.load %arg3[%c0_3, %c0_4] : memref<128x128xf32, #tpu.memory_space<vmem>>, vector<128x128xf32>
    tpu.vector_store %arg3[%c0_3, %c0_4], %2 {strides = array<i32>} : memref<128x128xf32, #tpu.memory_space<vmem>>, vector<128x128xf32>,
    %cst_5 = arith.constant dense<0.000000e+00> : vector<128xf32>
    %4 = vector.multi_reduction <add>, %2, %cst_5 [0] : vector<128x128xf32> to vector<128xf32>
    %5 = vector.shape_cast %4 : vector<128xf32> to vector<1x128xf32>
    %6 = arith.mulf %2, %2 : vector<128x128xf32>
    %cst_6 = arith.constant dense<0.000000e+00> : vector<128xf32>
    %7 = vector.multi_reduction <add>, %6, %cst_6 [0] : vector<128x128xf32> to vector<128xf32>
    %8 = vector.shape_cast %7 : vector<128xf32> to vector<1x128xf32>
    %9 = tpu.concatenate %5, %8 in 0 : vector<1x128xf32>, vector<1x128xf32> -> vector<2x128xf32>
    %c0_7 = arith.constant 0 : index
    %c0_8 = arith.constant 0 : index
    %c0_9 = arith.constant 0 : index
    %10 = vector.load %arg4[%c0_7, %c0_8, %c0_9] : memref<1x2x128xf32, #tpu.memory_space<vmem>>, vector<1x2x128xf32>
    %11 = vector.shape_cast %10 : vector<1x2x128xf32> to vector<2x128xf32>
    %12 = vector.shape_cast %9 : vector<2x128xf32> to vector<1x2x128xf32>
    tpu.vector_store %arg4[%c0_7, %c0_8, %c0_9], %12 {strides = array<i32>} : memref<1x2x128xf32, #tpu.memory_space<vmem>>, vector<1x2x128xf32>,
    return
  }
  func.func @transform_0(%arg0: i32) -> (i32, i32) {
    %c0_i32 = arith.constant 0 : i32
    %c0_i32_0 = arith.constant 0 : i32
    return %arg0, %c0_i32 : i32, i32
  }
  func.func @transform_1(%arg0: i32) -> (i32, i32) {
    %c0_i32 = arith.constant 0 : i32
    %c0_i32_0 = arith.constant 0 : i32
    %c0_i32_1 = arith.constant 0 : i32
    return %c0_i32, %c0_i32_0 : i32, i32
  }
  func.func @transform_2(%arg0: i32) -> (i32, i32) {
    %c0_i32 = arith.constant 0 : i32
    %c0_i32_0 = arith.constant 0 : i32
    return %arg0, %c0_i32 : i32, i32
  }
  func.func @transform_3(%arg0: i32) -> (i32, i32, i32) {
    %c0_i32 = arith.constant 0 : i32
    %c0_i32_0 = arith.constant 0 : i32
    %c0_i32_1 = arith.constant 0 : i32
    return %arg0, %c0_i32, %c0_i32_0 : i32, i32, i32
  }
}

module attributes {stable_mosaic.version = 11 : i64} {
  func.func @_im2col_proj_kernel(%arg0: i32, %arg1: memref<64x1152xf32, #tpu.memory_space<vmem>>, %arg2: memref<1152x128xf32, #tpu.memory_space<vmem>>, %arg3: memref<64x128xf32, #tpu.memory_space<vmem>>, %arg4: memref<128x128xf32, #tpu.memory_space<vmem>>, %arg5: memref<64x128xf32, #tpu.memory_space<vmem>>, %arg6: memref<64x128xf32, #tpu.memory_space<vmem>>, %arg7: memref<1x2x128xf32, #tpu.memory_space<vmem>>, %arg8: memref<1x2x128xf32, #tpu.memory_space<vmem>>) attributes {dimension_semantics = [#tpu.dimension_semantics<parallel>], iteration_bounds = array<i64: 2>, scalar_prefetch = 0 : i64, scratch_operands = 0 : i64, tpu.core_type = #tpu.core_type<tc>, window_params = [{transform_indices = @transform_0, window_bounds = array<i64: 64, 1152>}, {pipeline_mode = #tpu.pipeline_mode<synchronous>, transform_indices = @transform_1, window_bounds = array<i64: 1152, 128>}, {transform_indices = @transform_2, window_bounds = array<i64: 64, 128>}, {pipeline_mode = #tpu.pipeline_mode<synchronous>, transform_indices = @transform_3, window_bounds = array<i64: 128, 128>}, {transform_indices = @transform_4, window_bounds = array<i64: 64, 128>}, {transform_indices = @transform_5, window_bounds = array<i64: 64, 128>}, {transform_indices = @transform_6, window_bounds = array<i64: 1, 2, 128>}, {transform_indices = @transform_7, window_bounds = array<i64: 1, 2, 128>}]} {
    %c0 = arith.constant 0 : index
    %c0_0 = arith.constant 0 : index
    %0 = vector.load %arg1[%c0, %c0_0] : memref<64x1152xf32, #tpu.memory_space<vmem>>, vector<64x1152xf32>
    %c0_1 = arith.constant 0 : index
    %c0_2 = arith.constant 0 : index
    %1 = vector.load %arg2[%c0_1, %c0_2] : memref<1152x128xf32, #tpu.memory_space<vmem>>, vector<1152x128xf32>
    %cst = arith.constant dense<0.000000e+00> : vector<64x128xf32>
    %2 = tpu.matmul %0, %1, %cst {dimension_numbers = #tpu.dot_dimension_numbers<[1], [0], [0], [1], [0, 0, 1, 1], [], []>} : vector<64x1152xf32>, vector<1152x128xf32>, vector<64x128xf32> -> vector<64x128xf32>
    %c0_3 = arith.constant 0 : index
    %c0_4 = arith.constant 0 : index
    %3 = vector.load %arg5[%c0_3, %c0_4] : memref<64x128xf32, #tpu.memory_space<vmem>>, vector<64x128xf32>
    tpu.vector_store %arg5[%c0_3, %c0_4], %2 {strides = array<i32>} : memref<64x128xf32, #tpu.memory_space<vmem>>, vector<64x128xf32>,
    %cst_5 = arith.constant dense<0.000000e+00> : vector<128xf32>
    %4 = vector.multi_reduction <add>, %2, %cst_5 [0] : vector<64x128xf32> to vector<128xf32>
    %5 = vector.shape_cast %4 : vector<128xf32> to vector<1x128xf32>
    %6 = arith.mulf %2, %2 : vector<64x128xf32>
    %cst_6 = arith.constant dense<0.000000e+00> : vector<128xf32>
    %7 = vector.multi_reduction <add>, %6, %cst_6 [0] : vector<64x128xf32> to vector<128xf32>
    %8 = vector.shape_cast %7 : vector<128xf32> to vector<1x128xf32>
    %9 = tpu.concatenate %5, %8 in 0 : vector<1x128xf32>, vector<1x128xf32> -> vector<2x128xf32>
    %c0_7 = arith.constant 0 : index
    %c0_8 = arith.constant 0 : index
    %c0_9 = arith.constant 0 : index
    %10 = vector.load %arg7[%c0_7, %c0_8, %c0_9] : memref<1x2x128xf32, #tpu.memory_space<vmem>>, vector<1x2x128xf32>
    %11 = vector.shape_cast %10 : vector<1x2x128xf32> to vector<2x128xf32>
    %12 = vector.shape_cast %9 : vector<2x128xf32> to vector<1x2x128xf32>
    tpu.vector_store %arg7[%c0_7, %c0_8, %c0_9], %12 {strides = array<i32>} : memref<1x2x128xf32, #tpu.memory_space<vmem>>, vector<1x2x128xf32>,
    %c0_10 = arith.constant 0 : index
    %c0_11 = arith.constant 0 : index
    %13 = vector.load %arg3[%c0_10, %c0_11] : memref<64x128xf32, #tpu.memory_space<vmem>>, vector<64x128xf32>
    %c0_12 = arith.constant 0 : index
    %c0_13 = arith.constant 0 : index
    %14 = vector.load %arg4[%c0_12, %c0_13] : memref<128x128xf32, #tpu.memory_space<vmem>>, vector<128x128xf32>
    %cst_14 = arith.constant dense<0.000000e+00> : vector<64x128xf32>
    %15 = tpu.matmul %13, %14, %cst_14 {dimension_numbers = #tpu.dot_dimension_numbers<[1], [0], [0], [1], [0, 0, 1, 1], [], []>} : vector<64x128xf32>, vector<128x128xf32>, vector<64x128xf32> -> vector<64x128xf32>
    %c0_15 = arith.constant 0 : index
    %c0_16 = arith.constant 0 : index
    %16 = vector.load %arg6[%c0_15, %c0_16] : memref<64x128xf32, #tpu.memory_space<vmem>>, vector<64x128xf32>
    tpu.vector_store %arg6[%c0_15, %c0_16], %15 {strides = array<i32>} : memref<64x128xf32, #tpu.memory_space<vmem>>, vector<64x128xf32>,
    %cst_17 = arith.constant dense<0.000000e+00> : vector<128xf32>
    %17 = vector.multi_reduction <add>, %15, %cst_17 [0] : vector<64x128xf32> to vector<128xf32>
    %18 = vector.shape_cast %17 : vector<128xf32> to vector<1x128xf32>
    %19 = arith.mulf %15, %15 : vector<64x128xf32>
    %cst_18 = arith.constant dense<0.000000e+00> : vector<128xf32>
    %20 = vector.multi_reduction <add>, %19, %cst_18 [0] : vector<64x128xf32> to vector<128xf32>
    %21 = vector.shape_cast %20 : vector<128xf32> to vector<1x128xf32>
    %22 = tpu.concatenate %18, %21 in 0 : vector<1x128xf32>, vector<1x128xf32> -> vector<2x128xf32>
    %c0_19 = arith.constant 0 : index
    %c0_20 = arith.constant 0 : index
    %c0_21 = arith.constant 0 : index
    %23 = vector.load %arg8[%c0_19, %c0_20, %c0_21] : memref<1x2x128xf32, #tpu.memory_space<vmem>>, vector<1x2x128xf32>
    %24 = vector.shape_cast %23 : vector<1x2x128xf32> to vector<2x128xf32>
    %25 = vector.shape_cast %22 : vector<2x128xf32> to vector<1x2x128xf32>
    tpu.vector_store %arg8[%c0_19, %c0_20, %c0_21], %25 {strides = array<i32>} : memref<1x2x128xf32, #tpu.memory_space<vmem>>, vector<1x2x128xf32>,
    return
  }
  func.func @transform_0(%arg0: i32) -> (i32, i32) {
    %c0_i32 = arith.constant 0 : i32
    %c0_i32_0 = arith.constant 0 : i32
    return %arg0, %c0_i32 : i32, i32
  }
  func.func @transform_1(%arg0: i32) -> (i32, i32) {
    %c0_i32 = arith.constant 0 : i32
    %c0_i32_0 = arith.constant 0 : i32
    %c0_i32_1 = arith.constant 0 : i32
    return %c0_i32, %c0_i32_0 : i32, i32
  }
  func.func @transform_2(%arg0: i32) -> (i32, i32) {
    %c0_i32 = arith.constant 0 : i32
    %c0_i32_0 = arith.constant 0 : i32
    return %arg0, %c0_i32 : i32, i32
  }
  func.func @transform_3(%arg0: i32) -> (i32, i32) {
    %c0_i32 = arith.constant 0 : i32
    %c0_i32_0 = arith.constant 0 : i32
    %c0_i32_1 = arith.constant 0 : i32
    return %c0_i32, %c0_i32_0 : i32, i32
  }
  func.func @transform_4(%arg0: i32) -> (i32, i32) {
    %c0_i32 = arith.constant 0 : i32
    %c0_i32_0 = arith.constant 0 : i32
    return %arg0, %c0_i32 : i32, i32
  }
  func.func @transform_5(%arg0: i32) -> (i32, i32) {
    %c0_i32 = arith.constant 0 : i32
    %c0_i32_0 = arith.constant 0 : i32
    return %arg0, %c0_i32 : i32, i32
  }
  func.func @transform_6(%arg0: i32) -> (i32, i32, i32) {
    %c0_i32 = arith.constant 0 : i32
    %c0_i32_0 = arith.constant 0 : i32
    %c0_i32_1 = arith.constant 0 : i32
    return %arg0, %c0_i32, %c0_i32_0 : i32, i32, i32
  }
  func.func @transform_7(%arg0: i32) -> (i32, i32, i32) {
    %c0_i32 = arith.constant 0 : i32
    %c0_i32_0 = arith.constant 0 : i32
    %c0_i32_1 = arith.constant 0 : i32
    return %arg0, %c0_i32, %c0_i32_0 : i32, i32, i32
  }
}

module attributes {stable_mosaic.version = 11 : i64} {
  func.func @_final_proj_kernel(%arg0: i32, %arg1: memref<64x128xf32, #tpu.memory_space<vmem>>, %arg2: memref<1x128xf32, #tpu.memory_space<vmem>>, %arg3: memref<1x128xf32, #tpu.memory_space<vmem>>, %arg4: memref<64x128xf32, #tpu.memory_space<vmem>>, %arg5: memref<1x128xf32, #tpu.memory_space<vmem>>, %arg6: memref<1x128xf32, #tpu.memory_space<vmem>>, %arg7: memref<64x128xf32, #tpu.memory_space<vmem>>) attributes {dimension_semantics = [#tpu.dimension_semantics<parallel>], iteration_bounds = array<i64: 2>, scalar_prefetch = 0 : i64, scratch_operands = 0 : i64, tpu.core_type = #tpu.core_type<tc>, window_params = [{transform_indices = @transform_0, window_bounds = array<i64: 64, 128>}, {pipeline_mode = #tpu.pipeline_mode<synchronous>, transform_indices = @transform_1, window_bounds = array<i64: 1, 128>}, {pipeline_mode = #tpu.pipeline_mode<synchronous>, transform_indices = @transform_2, window_bounds = array<i64: 1, 128>}, {transform_indices = @transform_3, window_bounds = array<i64: 64, 128>}, {pipeline_mode = #tpu.pipeline_mode<synchronous>, transform_indices = @transform_4, window_bounds = array<i64: 1, 128>}, {pipeline_mode = #tpu.pipeline_mode<synchronous>, transform_indices = @transform_5, window_bounds = array<i64: 1, 128>}, {transform_indices = @transform_6, window_bounds = array<i64: 64, 128>}]} {
    %c0 = arith.constant 0 : index
    %c0_0 = arith.constant 0 : index
    %0 = vector.load %arg1[%c0, %c0_0] : memref<64x128xf32, #tpu.memory_space<vmem>>, vector<64x128xf32>
    %c0_1 = arith.constant 0 : index
    %c0_2 = arith.constant 0 : index
    %1 = vector.load %arg2[%c0_1, %c0_2] : memref<1x128xf32, #tpu.memory_space<vmem>>, vector<1x128xf32>
    %2 = vector.broadcast %1 : vector<1x128xf32> to vector<64x128xf32>
    %3 = arith.mulf %0, %2 : vector<64x128xf32>
    %c0_3 = arith.constant 0 : index
    %c0_4 = arith.constant 0 : index
    %4 = vector.load %arg3[%c0_3, %c0_4] : memref<1x128xf32, #tpu.memory_space<vmem>>, vector<1x128xf32>
    %5 = vector.broadcast %4 : vector<1x128xf32> to vector<64x128xf32>
    %6 = arith.addf %3, %5 : vector<64x128xf32>
    %c0_5 = arith.constant 0 : index
    %c0_6 = arith.constant 0 : index
    %7 = vector.load %arg4[%c0_5, %c0_6] : memref<64x128xf32, #tpu.memory_space<vmem>>, vector<64x128xf32>
    %c0_7 = arith.constant 0 : index
    %c0_8 = arith.constant 0 : index
    %8 = vector.load %arg5[%c0_7, %c0_8] : memref<1x128xf32, #tpu.memory_space<vmem>>, vector<1x128xf32>
    %9 = vector.broadcast %8 : vector<1x128xf32> to vector<64x128xf32>
    %10 = arith.mulf %7, %9 : vector<64x128xf32>
    %c0_9 = arith.constant 0 : index
    %c0_10 = arith.constant 0 : index
    %11 = vector.load %arg6[%c0_9, %c0_10] : memref<1x128xf32, #tpu.memory_space<vmem>>, vector<1x128xf32>
    %12 = vector.broadcast %11 : vector<1x128xf32> to vector<64x128xf32>
    %13 = arith.addf %10, %12 : vector<64x128xf32>
    %14 = arith.addf %6, %13 : vector<64x128xf32>
    %cst = arith.constant 0.000000e+00 : f32
    %15 = vector.broadcast %cst : f32 to vector<64x128xf32>
    %16 = arith.maximumf %14, %15 : vector<64x128xf32>
    %c0_11 = arith.constant 0 : index
    %c0_12 = arith.constant 0 : index
    %17 = vector.load %arg7[%c0_11, %c0_12] : memref<64x128xf32, #tpu.memory_space<vmem>>, vector<64x128xf32>
    tpu.vector_store %arg7[%c0_11, %c0_12], %16 {strides = array<i32>} : memref<64x128xf32, #tpu.memory_space<vmem>>, vector<64x128xf32>,
    return
  }
  func.func @transform_0(%arg0: i32) -> (i32, i32) {
    %c0_i32 = arith.constant 0 : i32
    %c0_i32_0 = arith.constant 0 : i32
    return %arg0, %c0_i32 : i32, i32
  }
  func.func @transform_1(%arg0: i32) -> (i32, i32) {
    %c0_i32 = arith.constant 0 : i32
    %c0_i32_0 = arith.constant 0 : i32
    %c0_i32_1 = arith.constant 0 : i32
    return %c0_i32, %c0_i32_0 : i32, i32
  }
  func.func @transform_2(%arg0: i32) -> (i32, i32) {
    %c0_i32 = arith.constant 0 : i32
    %c0_i32_0 = arith.constant 0 : i32
    %c0_i32_1 = arith.constant 0 : i32
    return %c0_i32, %c0_i32_0 : i32, i32
  }
  func.func @transform_3(%arg0: i32) -> (i32, i32) {
    %c0_i32 = arith.constant 0 : i32
    %c0_i32_0 = arith.constant 0 : i32
    return %arg0, %c0_i32 : i32, i32
  }
  func.func @transform_4(%arg0: i32) -> (i32, i32) {
    %c0_i32 = arith.constant 0 : i32
    %c0_i32_0 = arith.constant 0 : i32
    %c0_i32_1 = arith.constant 0 : i32
    return %c0_i32, %c0_i32_0 : i32, i32
  }
  func.func @transform_5(%arg0: i32) -> (i32, i32) {
    %c0_i32 = arith.constant 0 : i32
    %c0_i32_0 = arith.constant 0 : i32
    %c0_i32_1 = arith.constant 0 : i32
    return %c0_i32, %c0_i32_0 : i32, i32
  }
  func.func @transform_6(%arg0: i32) -> (i32, i32) {
    %c0_i32 = arith.constant 0 : i32
    %c0_i32_0 = arith.constant 0 : i32
    return %arg0, %c0_i32 : i32, i32
  }
}

module attributes {stable_mosaic.version = 11 : i64} {
  func.func @_bn_relu_mm_kernel(%arg0: i32, %arg1: memref<64x128xf32, #tpu.memory_space<vmem>>, %arg2: memref<64x1xf32, #tpu.memory_space<vmem>>, %arg3: memref<1x128xf32, #tpu.memory_space<vmem>>, %arg4: memref<1x128xf32, #tpu.memory_space<vmem>>, %arg5: memref<128x128xf32, #tpu.memory_space<vmem>>, %arg6: memref<64x128xf32, #tpu.memory_space<vmem>>, %arg7: memref<1x2x128xf32, #tpu.memory_space<vmem>>) attributes {dimension_semantics = [#tpu.dimension_semantics<parallel>], iteration_bounds = array<i64: 2>, scalar_prefetch = 0 : i64, scratch_operands = 0 : i64, tpu.core_type = #tpu.core_type<tc>, window_params = [{transform_indices = @transform_0, window_bounds = array<i64: 64, 128>}, {transform_indices = @transform_1, window_bounds = array<i64: 64, 1>}, {pipeline_mode = #tpu.pipeline_mode<synchronous>, transform_indices = @transform_2, window_bounds = array<i64: 1, 128>}, {pipeline_mode = #tpu.pipeline_mode<synchronous>, transform_indices = @transform_3, window_bounds = array<i64: 1, 128>}, {pipeline_mode = #tpu.pipeline_mode<synchronous>, transform_indices = @transform_4, window_bounds = array<i64: 128, 128>}, {transform_indices = @transform_5, window_bounds = array<i64: 64, 128>}, {transform_indices = @transform_6, window_bounds = array<i64: 1, 2, 128>}]} {
    %c0 = arith.constant 0 : index
    %c0_0 = arith.constant 0 : index
    %0 = vector.load %arg1[%c0, %c0_0] : memref<64x128xf32, #tpu.memory_space<vmem>>, vector<64x128xf32>
    %c0_1 = arith.constant 0 : index
    %c0_2 = arith.constant 0 : index
    %1 = vector.load %arg3[%c0_1, %c0_2] : memref<1x128xf32, #tpu.memory_space<vmem>>, vector<1x128xf32>
    %2 = vector.broadcast %1 : vector<1x128xf32> to vector<64x128xf32>
    %3 = arith.mulf %0, %2 : vector<64x128xf32>
    %c0_3 = arith.constant 0 : index
    %c0_4 = arith.constant 0 : index
    %4 = vector.load %arg4[%c0_3, %c0_4] : memref<1x128xf32, #tpu.memory_space<vmem>>, vector<1x128xf32>
    %5 = vector.broadcast %4 : vector<1x128xf32> to vector<64x128xf32>
    %6 = arith.addf %3, %5 : vector<64x128xf32>
    %cst = arith.constant 0.000000e+00 : f32
    %7 = vector.broadcast %cst : f32 to vector<64x128xf32>
    %8 = arith.maximumf %6, %7 : vector<64x128xf32>
    %c0_5 = arith.constant 0 : index
    %c0_6 = arith.constant 0 : index
    %9 = vector.load %arg2[%c0_5, %c0_6] : memref<64x1xf32, #tpu.memory_space<vmem>>, vector<64x1xf32>
    %10 = vector.broadcast %9 : vector<64x1xf32> to vector<64x128xf32>
    %11 = arith.mulf %8, %10 : vector<64x128xf32>
    %c0_7 = arith.constant 0 : index
    %c0_8 = arith.constant 0 : index
    %12 = vector.load %arg5[%c0_7, %c0_8] : memref<128x128xf32, #tpu.memory_space<vmem>>, vector<128x128xf32>
    %cst_9 = arith.constant dense<0.000000e+00> : vector<64x128xf32>
    %13 = tpu.matmul %11, %12, %cst_9 {dimension_numbers = #tpu.dot_dimension_numbers<[1], [0], [0], [1], [0, 0, 1, 1], [], []>} : vector<64x128xf32>, vector<128x128xf32>, vector<64x128xf32> -> vector<64x128xf32>
    %c0_10 = arith.constant 0 : index
    %c0_11 = arith.constant 0 : index
    %14 = vector.load %arg6[%c0_10, %c0_11] : memref<64x128xf32, #tpu.memory_space<vmem>>, vector<64x128xf32>
    tpu.vector_store %arg6[%c0_10, %c0_11], %13 {strides = array<i32>} : memref<64x128xf32, #tpu.memory_space<vmem>>, vector<64x128xf32>,
    %cst_12 = arith.constant dense<0.000000e+00> : vector<128xf32>
    %15 = vector.multi_reduction <add>, %13, %cst_12 [0] : vector<64x128xf32> to vector<128xf32>
    %16 = vector.shape_cast %15 : vector<128xf32> to vector<1x128xf32>
    %17 = arith.mulf %13, %13 : vector<64x128xf32>
    %cst_13 = arith.constant dense<0.000000e+00> : vector<128xf32>
    %18 = vector.multi_reduction <add>, %17, %cst_13 [0] : vector<64x128xf32> to vector<128xf32>
    %19 = vector.shape_cast %18 : vector<128xf32> to vector<1x128xf32>
    %20 = tpu.concatenate %16, %19 in 0 : vector<1x128xf32>, vector<1x128xf32> -> vector<2x128xf32>
    %c0_14 = arith.constant 0 : index
    %c0_15 = arith.constant 0 : index
    %c0_16 = arith.constant 0 : index
    %21 = vector.load %arg7[%c0_14, %c0_15, %c0_16] : memref<1x2x128xf32, #tpu.memory_space<vmem>>, vector<1x2x128xf32>
    %22 = vector.shape_cast %21 : vector<1x2x128xf32> to vector<2x128xf32>
    %23 = vector.shape_cast %20 : vector<2x128xf32> to vector<1x2x128xf32>
    tpu.vector_store %arg7[%c0_14, %c0_15, %c0_16], %23 {strides = array<i32>} : memref<1x2x128xf32, #tpu.memory_space<vmem>>, vector<1x2x128xf32>,
    return
  }
  func.func @transform_0(%arg0: i32) -> (i32, i32) {
    %c0_i32 = arith.constant 0 : i32
    %c0_i32_0 = arith.constant 0 : i32
    return %arg0, %c0_i32 : i32, i32
  }
  func.func @transform_1(%arg0: i32) -> (i32, i32) {
    %c0_i32 = arith.constant 0 : i32
    %c0_i32_0 = arith.constant 0 : i32
    return %arg0, %c0_i32 : i32, i32
  }
  func.func @transform_2(%arg0: i32) -> (i32, i32) {
    %c0_i32 = arith.constant 0 : i32
    %c0_i32_0 = arith.constant 0 : i32
    %c0_i32_1 = arith.constant 0 : i32
    return %c0_i32, %c0_i32_0 : i32, i32
  }
  func.func @transform_3(%arg0: i32) -> (i32, i32) {
    %c0_i32 = arith.constant 0 : i32
    %c0_i32_0 = arith.constant 0 : i32
    %c0_i32_1 = arith.constant 0 : i32
    return %c0_i32, %c0_i32_0 : i32, i32
  }
  func.func @transform_4(%arg0: i32) -> (i32, i32) {
    %c0_i32 = arith.constant 0 : i32
    %c0_i32_0 = arith.constant 0 : i32
    %c0_i32_1 = arith.constant 0 : i32
    return %c0_i32, %c0_i32_0 : i32, i32
  }
  func.func @transform_5(%arg0: i32) -> (i32, i32) {
    %c0_i32 = arith.constant 0 : i32
    %c0_i32_0 = arith.constant 0 : i32
    return %arg0, %c0_i32 : i32, i32
  }
  func.func @transform_6(%arg0: i32) -> (i32, i32, i32) {
    %c0_i32 = arith.constant 0 : i32
    %c0_i32_0 = arith.constant 0 : i32
    %c0_i32_1 = arith.constant 0 : i32
    return %arg0, %c0_i32, %c0_i32_0 : i32, i32, i32
  }
}

</mosaic_0001>

<llo_original>
// kernel: bottleneck_forward.4
$region0: #{bottleneck_forward.4}
  #allocation0 [shape = 'u32[]', space=smem, size = 0x4, offset = 0x4, fixed_abs, tag = 'smem constant byte address 0x4 - core index']
  #allocation1 [shape = 'u32[144,128]{1,0:T(1,128)}', space=vmem, size = 0x12000, scoped, tag = 'internal scratch']
  %s0 = inlined_call_operand.hbm [shape: f32[512,128], index: 0, kind: input, shape index: {}]
  %s1 = inlined_call_operand.hbm [shape: f32[128,128], index: 1, kind: input, shape index: {}]
  %s2 = inlined_call_operand.hbm [shape: f32[512,128], index: 2, kind: output, shape index: {0}]
  %s3 = inlined_call_operand.hbm [shape: f32[4,2,128], index: 3, kind: output, shape index: {1}]
  %4 = xla_tuple %s2, %s3
  %s5 = sld [smem:[#allocation0]]
  $region57: #{bottleneck_forward.4} parent=0
    _
  %s7 = ssub.s32 1, %s5
  %s8 = scalar_select 0, %s7, %s5
  $region1: #{bottleneck_forward.4} parent=0
    #allocation2 [shape = 'u8[131072]{0}', space=vmem, size = 0x20000, scoped, tag = 'input window, operand 0']
    #allocation3 [shape = 's32[2]{0}', space=sflag, size = 0x8, scoped, tag = 'scoped memory for bottleneck_forward.4']
    #allocation4 [shape = 's32[2]{0}', space=sflag, size = 0x8, scoped, tag = 'scoped memory for bottleneck_forward.4']
    #allocation5 [shape = 'u8[65536]{0}', space=vmem, size = 0x10000, scoped, tag = 'input window, operand 1, single buffered']
    #allocation6 [shape = 's32[1]{0}', space=sflag, size = 0x4, scoped, tag = 'scoped memory for bottleneck_forward.4']
    #allocation7 [shape = 'u8[131072]{0}', space=vmem, size = 0x20000, scoped, tag = 'output window, operand 0']
    #allocation8 [shape = 'u8[2048]{0}', space=vmem, size = 0x800, scoped, tag = 'output window, operand 1']
    #allocation9 [shape = 's32[2]{0}', space=sflag, size = 0x8, scoped, tag = 'scoped memory for bottleneck_forward.4']
    %9 = vsyncpa [#allocation3], 0
    %s10 = scalar_lea.sflag [#allocation3], 1
    %11 = vsyncpa %s10, 0
    %12 = vsyncpa [#allocation6], 0
    %13 = vsyncpa [#allocation4], 0
    %s14 = scalar_lea.sflag [#allocation4], 1
    %15 = vsyncpa %s14, 0
    %16 = vsyncpa [#allocation9], 0
    %s17 = scalar_lea.sflag [#allocation9], 1
    %18 = vsyncpa %s17, 0
    loop: start=0, step=1, limit=6
    $region2: #{bottleneck_forward.4} parent=1 // loop_pre_header
      _
    $region3: #{bottleneck_forward.4} parent=1 // loop_header
      %s20 = sphi 0, %s24
      %p21 = scmp.ge.s32.totalorder %s20, 6
      %s30 = sphi 0, %s32
      %s33 = sphi 0, %s30
      %s34 = sphi 0, %s33
      %s50 = sphi 0, %s34
      %s54 = sphi 0, %s54
      %s56 = sphi 0, %s54
      %s57 = sphi 0, %s56
      %s71 = sphi 0, %s57
      %s77 = sphi 0, %s79
      %s80 = sphi 0, %s77
      %s81 = sphi 0, %s80
      %s97 = sphi 0, %s81
      %s103 = sphi 0, %s105
      %s106 = sphi 0, %s103
      %s107 = sphi 0, %s106
      %s123 = sphi 0, %s107
    $region4: #{bottleneck_forward.4} parent=1 // loop_header_branch
      %23 = sbr.rel (%p21) target = $region8
    $region5: #{bottleneck_forward.4} parent=1 // loop_body
      %s25 = ssub.s32 %s20, 1
      %s26 = ssub.s32 %s20, 2
      %s27 = sadd.s32 %s20, 1
      %s28 = ssub.s32 %s20, %s27
      %p29 = scmp.eq.s32.totalorder %s28, 0
      %s31 = sadd.s32 %s30, 1
      %s32 = scalar_select %p29, %s30, %s31
      %p35 = pneg %p29
      %p36 = scmp.eq.s32.totalorder %s20, 3
      %p37 = por %p35, %p36
      %p38 = scmp.ne.s32.totalorder %s30, %s33
      %p39 = scmp.eq.s32.totalorder %s20, 0
      %p40 = por %p38, %p39
      %p41 = scmp.ne.s32.totalorder %s30, %s33
      %p42 = scmp.eq.s32.totalorder %s25, 3
      %p43 = por %p41, %p42
      %p44 = scmp.ne.s32.totalorder %s33, %s34
      %p45 = scmp.eq.s32.totalorder %s25, 0
      %p46 = por %p44, %p45
      %p47 = scmp.ne.s32.totalorder %s33, %s34
      %p48 = scmp.eq.s32.totalorder %s26, 3
      %p49 = por %p47, %p48
      %p51 = scmp.ne.s32.totalorder %s34, %s50
      %p52 = scmp.eq.s32.totalorder %s26, 0
      %p53 = por %p51, %p52
      %s55 = sadd.s32 %s54, 1
      %p58 = scmp.eq.s32.totalorder %s20, 3
      %p59 = scmp.ne.s32.totalorder %s54, %s56
      %p60 = scmp.eq.s32.totalorder %s20, 0
      %p61 = por %p59, %p60
      %p62 = scmp.ne.s32.totalorder %s54, %s56
      %p63 = scmp.eq.s32.totalorder %s25, 3
      %p64 = por %p62, %p63
      %p65 = scmp.ne.s32.totalorder %s56, %s57
      %p66 = scmp.eq.s32.totalorder %s25, 0
      %p67 = por %p65, %p66
      %p68 = scmp.ne.s32.totalorder %s56, %s57
      %p69 = scmp.eq.s32.totalorder %s26, 3
      %p70 = por %p68, %p69
      %p72 = scmp.ne.s32.totalorder %s57, %s71
      %p73 = scmp.eq.s32.totalorder %s26, 0
      %p74 = por %p72, %p73
      %s75 = ssub.s32 %s20, %s27
      %p76 = scmp.eq.s32.totalorder %s75, 0
      %s78 = sadd.s32 %s77, 1
      %s79 = scalar_select %p76, %s77, %s78
      %p82 = pneg %p76
      %p83 = scmp.eq.s32.totalorder %s20, 3
      %p84 = por %p82, %p83
      %p85 = scmp.ne.s32.totalorder %s77, %s80
      %p86 = scmp.eq.s32.totalorder %s20, 0
      %p87 = por %p85, %p86
      %p88 = scmp.ne.s32.totalorder %s77, %s80
      %p89 = scmp.eq.s32.totalorder %s25, 3
      %p90 = por %p88, %p89
      %p91 = scmp.ne.s32.totalorder %s80, %s81
      %p92 = scmp.eq.s32.totalorder %s25, 0
      %p93 = por %p91, %p92
      %p94 = scmp.ne.s32.totalorder %s80, %s81
      %p95 = scmp.eq.s32.totalorder %s26, 3
      %p96 = por %p94, %p95
      %p98 = scmp.ne.s32.totalorder %s81, %s97
      %p99 = scmp.eq.s32.totalorder %s26, 0
      %p100 = por %p98, %p99
      %s101 = ssub.s32 %s20, %s27
      %p102 = scmp.eq.s32.totalorder %s101, 0
      %s104 = sadd.s32 %s103, 1
      %s105 = scalar_select %p102, %s103, %s104
      %p108 = pneg %p102
      %p109 = scmp.eq.s32.totalorder %s20, 3
      %p110 = por %p108, %p109
      %p111 = scmp.ne.s32.totalorder %s103, %s106
      %p112 = scmp.eq.s32.totalorder %s20, 0
      %p113 = por %p111, %p112
      %p114 = scmp.ne.s32.totalorder %s103, %s106
      %p115 = scmp.eq.s32.totalorder %s25, 3
      %p116 = por %p114, %p115
      %p117 = scmp.ne.s32.totalorder %s106, %s107
      %p118 = scmp.eq.s32.totalorder %s25, 0
      %p119 = por %p117, %p118
      %p120 = scmp.ne.s32.totalorder %s106, %s107
      %p121 = scmp.eq.s32.totalorder %s26, 3
      %p122 = por %p120, %p121
      %p124 = scmp.ne.s32.totalorder %s107, %s123
      %p125 = scmp.eq.s32.totalorder %s26, 0
      %p126 = por %p124, %p125
      %p127 = scmp.le.s32.totalorder 1, %s20
      %p128 = scmp.lt.s32.totalorder %s20, 5
      %p129 = pnand %p127, %p128
      %p130 = pneg %p129
      // Predicated region
      $region9: #{bottleneck_forward.4} parent=5 // pred_check
        _
      $region10: #{bottleneck_forward.4} parent=5 // pred_check_branch
        %132 = sbr.rel (%p129) target = $region12
      $region11: #{bottleneck_forward.4} parent=5 // pred_region
        %s133 = ssub.s32 %s20, 1
        // Predicated region
        $region13: #{bottleneck_forward.4} parent=11 // pred_check
          %p134 = pneg %p67
        $region14: #{bottleneck_forward.4} parent=11 // pred_check_branch
          %136 = sbr.rel (%p134) target = $region16
        $region15: #{bottleneck_forward.4} parent=11 // pred_region
          %s138 = ssub.s32 2048, 2048
          %139 = vsyncadd [#allocation6], %s138
          %s140 = sshll.u32 [#allocation5], 4
          %s141 = int_to_ptr.vmem [resolvable:$true] %s140
          %146 = dma.hbm_to_vmem [thread:$0]  %s1, 2048, %s141, [#allocation6], 128, 128, 8
        $region16: #{bottleneck_forward.4} parent=11 // pred_fallthru
          _
      $region12: #{bottleneck_forward.4} parent=5 // pred_fallthru
        _
      %p147 = scmp.lt.s32.totalorder %s20, 4
      // Predicated region
      $region17: #{bottleneck_forward.4} parent=5 // pred_check
        %p148 = pneg %p147
      $region18: #{bottleneck_forward.4} parent=5 // pred_check_branch
        %150 = sbr.rel (%p148) target = $region20
      $region19: #{bottleneck_forward.4} parent=5 // pred_region
        // Predicated region
        $region21: #{bottleneck_forward.4} parent=19 // pred_check
          %p151 = pneg %p40
        $region22: #{bottleneck_forward.4} parent=19 // pred_check_branch
          %153 = sbr.rel (%p151) target = $region24
        $region23: #{bottleneck_forward.4} parent=19 // pred_region
          %s154 = sand.u32 %s30, 1
          %s155 = scalar_lea.sflag [#allocation3], %s154
          %s156 = sand.u32 %s30, 1
          %s157 = smul.addr %s156, 128
          %s158 = scalar_lea.vmem [#allocation2], %s157
          %s159 = smul.u32 16, %s20
          %s161 = ssub.s32 2048, 2048
          %162 = vsyncadd %s155, %s161
          %s163 = smul.addr %s159, 128
          %s164 = scalar_lea.hbm %s0, %s163
          %s165 = sshll.u32 %s158, 4
          %s166 = int_to_ptr.vmem [resolvable:$true] %s165
          %171 = dma.hbm_to_vmem [thread:$0]  %s164, 2048, %s166, %s155, 128, 128, 8
        $region24: #{bottleneck_forward.4} parent=19 // pred_fallthru
          _
      $region20: #{bottleneck_forward.4} parent=5 // pred_fallthru
        _
      %p172 = scmp.le.s32.totalorder 1, %s20
      %p173 = scmp.lt.s32.totalorder %s20, 5
      %p174 = pnand %p172, %p173
      %p175 = pneg %p174
      // Predicated region
      $region25: #{bottleneck_forward.4} parent=5 // pred_check
        _
      $region26: #{bottleneck_forward.4} parent=5 // pred_check_branch
        %177 = sbr.rel (%p174) target = $region28
      $region27: #{bottleneck_forward.4} parent=5 // pred_region
        %s178 = ssub.s32 %s20, 1
        %s179 = sand.u32 %s33, 1
        %s180 = scalar_lea.sflag [#allocation3], %s179
        %s181 = sand.u32 %s33, 1
        %s182 = smul.addr %s181, 128
        %s183 = scalar_lea.vmem [#allocation2], %s182
        // Predicated region
        $region29: #{bottleneck_forward.4} parent=27 // pred_check
          %p184 = pneg %p46
        $region30: #{bottleneck_forward.4} parent=27 // pred_check_branch
          %186 = sbr.rel (%p184) target = $region32
        $region31: #{bottleneck_forward.4} parent=27 // pred_region
          %187 = dma.done %s180, 2048
        $region32: #{bottleneck_forward.4} parent=27 // pred_fallthru
          _
        // Predicated region
        $region33: #{bottleneck_forward.4} parent=27 // pred_check
          %p188 = pneg %p67
        $region34: #{bottleneck_forward.4} parent=27 // pred_check_branch
          %190 = sbr.rel (%p188) target = $region36
        $region35: #{bottleneck_forward.4} parent=27 // pred_region
          %191 = dma.done [#allocation6], 2048
        $region36: #{bottleneck_forward.4} parent=27 // pred_fallthru
          _
        %s192 = sand.u32 %s33, 1
        %s193 = scalar_lea.sflag [#allocation3], %s192
        %s194 = sand.u32 %s33, 1
        %s195 = smul.addr %s194, 128
        %s196 = scalar_lea.vmem [#allocation2], %s195
        %p197 = pneg %p46
        %p198 = pneg %p43
        %p199 = pneg %p67
        %p200 = pneg %p64
        %p201 = pneg %p93
        %p202 = pneg %p90
        %s203 = sand.u32 %s80, 1
        %s204 = scalar_lea.sflag [#allocation4], %s203
        %s205 = sand.u32 %s80, 1
        %s206 = smul.addr %s205, 128
        %s207 = scalar_lea.vmem [#allocation7], %s206
        %p208 = pneg %p119
        %p209 = pneg %p116
        %s210 = sand.u32 %s106, 1
        %s211 = scalar_lea.sflag [#allocation9], %s210
        %s212 = sand.u32 %s106, 1
        %s213 = smul.addr %s212, 2
        %s214 = scalar_lea.vmem [#allocation8], %s213
        %s215 = smul.u32 16, %s25
        %s216 = smul.u32 16, %s25
        %v217 = vld [vmem:[%s183] sm:$0xff]
        %v218 = vld [vmem:[%s183 + $0x8] sm:$0xff]
        %v219 = vld [vmem:[%s183 + $0x10] sm:$0xff]
        %v220 = vld [vmem:[%s183 + $0x18] sm:$0xff]
        %v221 = vld [vmem:[%s183 + $0x20] sm:$0xff]
        %v222 = vld [vmem:[%s183 + $0x28] sm:$0xff]
        %v223 = vld [vmem:[%s183 + $0x30] sm:$0xff]
        %v224 = vld [vmem:[%s183 + $0x38] sm:$0xff]
        %v225 = vld [vmem:[%s183 + $0x40] sm:$0xff]
        %v226 = vld [vmem:[%s183 + $0x48] sm:$0xff]
        %v227 = vld [vmem:[%s183 + $0x50] sm:$0xff]
        %v228 = vld [vmem:[%s183 + $0x58] sm:$0xff]
        %v229 = vld [vmem:[%s183 + $0x60] sm:$0xff]
        %v230 = vld [vmem:[%s183 + $0x68] sm:$0xff]
        %v231 = vld [vmem:[%s183 + $0x70] sm:$0xff]
        %v232 = vld [vmem:[%s183 + $0x78] sm:$0xff]
        %v233 = vld [vmem:[#allocation5] sm:$0xff]
        %v234 = vld [vmem:[#allocation5 + $0x8] sm:$0xff]
        %v235 = vld [vmem:[#allocation5 + $0x10] sm:$0xff]
        %v236 = vld [vmem:[#allocation5 + $0x18] sm:$0xff]
        %v237 = vld [vmem:[#allocation5 + $0x20] sm:$0xff]
        %v238 = vld [vmem:[#allocation5 + $0x28] sm:$0xff]
        %v239 = vld [vmem:[#allocation5 + $0x30] sm:$0xff]
        %v240 = vld [vmem:[#allocation5 + $0x38] sm:$0xff]
        %v241 = vld [vmem:[#allocation5 + $0x40] sm:$0xff]
        %v242 = vld [vmem:[#allocation5 + $0x48] sm:$0xff]
        %v243 = vld [vmem:[#allocation5 + $0x50] sm:$0xff]
        %v244 = vld [vmem:[#allocation5 + $0x58] sm:$0xff]
        %v245 = vld [vmem:[#allocation5 + $0x60] sm:$0xff]
        %v246 = vld [vmem:[#allocation5 + $0x68] sm:$0xff]
        %v247 = vld [vmem:[#allocation5 + $0x70] sm:$0xff]
        %v248 = vld [vmem:[#allocation5 + $0x78] sm:$0xff]
        %249 = vmatprep.subr.mxu0 0.0
        %250 = vmatpush1.msra.mxu0 %v233
        %251 = vmatprep.subr.mxu0 0.0
        %252 = vmatpush1.msra.mxu0 %v234
        %253 = vmatprep.subr.mxu0 0.0
        %254 = vmatpush1.msra.mxu0 %v235
        %255 = vmatprep.subr.mxu0 0.0
        %256 = vmatpush1.msra.mxu0 %v236
        %257 = vmatprep.subr.mxu0 0.0
        %258 = vmatpush1.msra.mxu0 %v237
        %259 = vmatprep.subr.mxu0 0.0
        %260 = vmatpush1.msra.mxu0 %v238
        %261 = vmatprep.subr.mxu0 0.0
        %262 = vmatpush1.msra.mxu0 %v239
        %263 = vmatprep.subr.mxu0 0.0
        %264 = vmatpush1.msra.mxu0 %v240
        %265 = vmatprep.subr.mxu0 0.0
        %266 = vmatpush1.msra.mxu0 %v241
        %267 = vmatprep.subr.mxu0 0.0
        %268 = vmatpush1.msra.mxu0 %v242
        %269 = vmatprep.subr.mxu0 0.0
        %270 = vmatpush1.msra.mxu0 %v243
        %271 = vmatprep.subr.mxu0 0.0
        %272 = vmatpush1.msra.mxu0 %v244
        %273 = vmatprep.subr.mxu0 0.0
        %274 = vmatpush1.msra.mxu0 %v245
        %275 = vmatprep.subr.mxu0 0.0
        %276 = vmatpush1.msra.mxu0 %v246
        %277 = vmatprep.subr.mxu0 0.0
        %278 = vmatpush1.msra.mxu0 %v247
        %279 = vmatprep.subr.mxu0 0.0
        %280 = vmatpush1.msra.mxu0 %v248
        %281 = vmatprep.subr.mxu0 0.0
        %282 = vmatpush1.msra.mxu0 0.0
        %283 = vmatprep.subr.mxu0 0.0
        %284 = vmatpush1.msra.mxu0 0.0
        %285 = vmatprep.subr.mxu0 0.0
        %286 = vmatpush1.msra.mxu0 0.0
        %287 = vmatprep.subr.mxu0 0.0
        %288 = vmatpush1.msra.mxu0 0.0
        %289 = vmatprep.subr.mxu0 0.0
        %290 = vmatpush1.msra.mxu0 0.0
        %291 = vmatprep.subr.mxu0 0.0
        %292 = vmatpush1.msra.mxu0 0.0
        %293 = vmatprep.subr.mxu0 0.0
        %294 = vmatpush1.msra.mxu0 0.0
        %295 = vmatprep.subr.mxu0 0.0
        %296 = vmatpush1.msra.mxu0 0.0
        %297 = vmatprep.subr.mxu0 0.0
        %298 = vmatpush1.msra.mxu0 0.0
        %299 = vmatprep.subr.mxu0 0.0
        %300 = vmatpush1.msra.mxu0 0.0
        %301 = vmatprep.subr.mxu0 0.0
        %302 = vmatpush1.msra.mxu0 0.0
        %303 = vmatprep.subr.mxu0 0.0
        %304 = vmatpush1.msra.mxu0 0.0
        %305 = vmatprep.subr.mxu0 0.0
        %306 = vmatpush1.msra.mxu0 0.0
        %307 = vmatprep.subr.mxu0 0.0
        %308 = vmatpush1.msra.mxu0 0.0
        %309 = vmatprep.subr.mxu0 0.0
        %310 = vmatpush1.msra.mxu0 0.0
        %311 = vmatprep.subr.mxu0 0.0
        %312 = vmatpush1.msra.mxu0 0.0
        %313 = vmatprep.mubr.f32.mxu0 0.0
        %314 = vmatmul.mubr.f32.gmra.mrb[0].mxu0 %v217
        %v315 = vpop.f32.mrb[0].mxu0
        %v316 = vadd.f32 0.0, %v315
        %v317 = vpop.f32.mrb[0].mxu0
        %318 = vmatprep.mubr.f32.mxu0 0.0
        %319 = vmatmul.mubr.f32.gmra.mrb[0].mxu0 %v218
        %v320 = vpop.f32.mrb[0].mxu0
        %v321 = vadd.f32 0.0, %v320
        %v322 = vpop.f32.mrb[0].mxu0
        %323 = vmatprep.mubr.f32.mxu0 0.0
        %324 = vmatmul.mubr.f32.gmra.mrb[0].mxu0 %v219
        %v325 = vpop.f32.mrb[0].mxu0
        %v326 = vadd.f32 0.0, %v325
        %v327 = vpop.f32.mrb[0].mxu0
        %328 = vmatprep.mubr.f32.mxu0 0.0
        %329 = vmatmul.mubr.f32.gmra.mrb[0].mxu0 %v220
        %v330 = vpop.f32.mrb[0].mxu0
        %v331 = vadd.f32 0.0, %v330
        %v332 = vpop.f32.mrb[0].mxu0
        %333 = vmatprep.mubr.f32.mxu0 0.0
        %334 = vmatmul.mubr.f32.gmra.mrb[0].mxu0 %v221
        %v335 = vpop.f32.mrb[0].mxu0
        %v336 = vadd.f32 0.0, %v335
        %v337 = vpop.f32.mrb[0].mxu0
        %338 = vmatprep.mubr.f32.mxu0 0.0
        %339 = vmatmul.mubr.f32.gmra.mrb[0].mxu0 %v222
        %v340 = vpop.f32.mrb[0].mxu0
        %v341 = vadd.f32 0.0, %v340
        %v342 = vpop.f32.mrb[0].mxu0
        %343 = vmatprep.mubr.f32.mxu0 0.0
        %344 = vmatmul.mubr.f32.gmra.mrb[0].mxu0 %v223
        %v345 = vpop.f32.mrb[0].mxu0
        %v346 = vadd.f32 0.0, %v345
        %v347 = vpop.f32.mrb[0].mxu0
        %348 = vmatprep.mubr.f32.mxu0 0.0
        %349 = vmatmul.mubr.f32.gmra.mrb[0].mxu0 %v224
        %v350 = vpop.f32.mrb[0].mxu0
        %v351 = vadd.f32 0.0, %v350
        %v352 = vpop.f32.mrb[0].mxu0
        %353 = vmatprep.mubr.f32.mxu0 0.0
        %354 = vmatmul.mubr.f32.gmra.mrb[0].mxu0 %v225
        %v355 = vpop.f32.mrb[0].mxu0
        %v356 = vadd.f32 0.0, %v355
        %v357 = vpop.f32.mrb[0].mxu0
        %358 = vmatprep.mubr.f32.mxu0 0.0
        %359 = vmatmul.mubr.f32.gmra.mrb[0].mxu0 %v226
        %v360 = vpop.f32.mrb[0].mxu0
        %v361 = vadd.f32 0.0, %v360
        %v362 = vpop.f32.mrb[0].mxu0
        %363 = vmatprep.mubr.f32.mxu0 0.0
        %364 = vmatmul.mubr.f32.gmra.mrb[0].mxu0 %v227
        %v365 = vpop.f32.mrb[0].mxu0
        %v366 = vadd.f32 0.0, %v365
        %v367 = vpop.f32.mrb[0].mxu0
        %368 = vmatprep.mubr.f32.mxu0 0.0
        %369 = vmatmul.mubr.f32.gmra.mrb[0].mxu0 %v228
        %v370 = vpop.f32.mrb[0].mxu0
        %v371 = vadd.f32 0.0, %v370
        %v372 = vpop.f32.mrb[0].mxu0
        %373 = vmatprep.mubr.f32.mxu0 0.0
        %374 = vmatmul.mubr.f32.gmra.mrb[0].mxu0 %v229
        %v375 = vpop.f32.mrb[0].mxu0
        %v376 = vadd.f32 0.0, %v375
        %v377 = vpop.f32.mrb[0].mxu0
        %378 = vmatprep.mubr.f32.mxu0 0.0
        %379 = vmatmul.mubr.f32.gmra.mrb[0].mxu0 %v230
        %v380 = vpop.f32.mrb[0].mxu0
        %v381 = vadd.f32 0.0, %v380
        %v382 = vpop.f32.mrb[0].mxu0
        %383 = vmatprep.mubr.f32.mxu0 0.0
        %384 = vmatmul.mubr.f32.gmra.mrb[0].mxu0 %v231
        %v385 = vpop.f32.mrb[0].mxu0
        %v386 = vadd.f32 0.0, %v385
        %v387 = vpop.f32.mrb[0].mxu0
        %388 = vmatprep.mubr.f32.mxu0 0.0
        %389 = vmatmul.mubr.f32.gmra.mrb[0].mxu0 %v232
        %v390 = vpop.f32.mrb[0].mxu0
        %v391 = vadd.f32 0.0, %v390
        %v392 = vpop.f32.mrb[0].mxu0
        %393 = vdwg.mxu0
        %394 = vst [vmem:[%s207] sm:$0xff] %v316
        %395 = vst [vmem:[%s207 + $0x8] sm:$0xff] %v321
        %396 = vst [vmem:[%s207 + $0x10] sm:$0xff] %v326
        %397 = vst [vmem:[%s207 + $0x18] sm:$0xff] %v331
        %398 = vst [vmem:[%s207 + $0x20] sm:$0xff] %v336
        %399 = vst [vmem:[%s207 + $0x28] sm:$0xff] %v341
        %400 = vst [vmem:[%s207 + $0x30] sm:$0xff] %v346
        %401 = vst [vmem:[%s207 + $0x38] sm:$0xff] %v351
        %402 = vst [vmem:[%s207 + $0x40] sm:$0xff] %v356
        %403 = vst [vmem:[%s207 + $0x48] sm:$0xff] %v361
        %404 = vst [vmem:[%s207 + $0x50] sm:$0xff] %v366
        %405 = vst [vmem:[%s207 + $0x58] sm:$0xff] %v371
        %406 = vst [vmem:[%s207 + $0x60] sm:$0xff] %v376
        %407 = vst [vmem:[%s207 + $0x68] sm:$0xff] %v381
        %408 = vst [vmem:[%s207 + $0x70] sm:$0xff] %v386
        %409 = vst [vmem:[%s207 + $0x78] sm:$0xff] %v391
        %v410 = vadd.f32 %v316, %v321
        %v411 = vadd.f32 %v410, %v326
        %v412 = vadd.f32 %v411, %v331
        %v413 = vadd.f32 %v412, %v336
        %v414 = vadd.f32 %v413, %v341
        %v415 = vadd.f32 %v414, %v346
        %v416 = vadd.f32 %v415, %v351
        %v417 = vadd.f32 %v416, %v356
        %v418 = vadd.f32 %v417, %v361
        %v419 = vadd.f32 %v418, %v366
        %v420 = vadd.f32 %v419, %v371
        %v421 = vadd.f32 %v420, %v376
        %v422 = vadd.f32 %v421, %v381
        %v423 = vadd.f32 %v422, %v386
        %v424 = vadd.f32 %v423, %v391
        %v425 = vrot.slane %v424, 4
        %v426 = vadd.f32 %v424, %v425
        %v427 = vrot.slane %v426, 2
        %v428 = vadd.f32 %v426, %v427
        %v429 = vrot.slane %v428, 1
        %v430 = vadd.f32 %v428, %v429
        %v431 = vmul.f32 %v316, %v316
        %v432 = vmul.f32 %v321, %v321
        %v433 = vmul.f32 %v326, %v326
        %v434 = vmul.f32 %v331, %v331
        %v435 = vmul.f32 %v336, %v336
        %v436 = vmul.f32 %v341, %v341
        %v437 = vmul.f32 %v346, %v346
        %v438 = vmul.f32 %v351, %v351
        %v439 = vmul.f32 %v356, %v356
        %v440 = vmul.f32 %v361, %v361
        %v441 = vmul.f32 %v366, %v366
        %v442 = vmul.f32 %v371, %v371
        %v443 = vmul.f32 %v376, %v376
        %v444 = vmul.f32 %v381, %v381
        %v445 = vmul.f32 %v386, %v386
        %v446 = vmul.f32 %v391, %v391
        %v447 = vadd.f32 %v431, %v432
        %v448 = vadd.f32 %v447, %v433
        %v449 = vadd.f32 %v448, %v434
        %v450 = vadd.f32 %v449, %v435
        %v451 = vadd.f32 %v450, %v436
        %v452 = vadd.f32 %v451, %v437
        %v453 = vadd.f32 %v452, %v438
        %v454 = vadd.f32 %v453, %v439
        %v455 = vadd.f32 %v454, %v440
        %v456 = vadd.f32 %v455, %v441
        %v457 = vadd.f32 %v456, %v442
        %v458 = vadd.f32 %v457, %v443
        %v459 = vadd.f32 %v458, %v444
        %v460 = vadd.f32 %v459, %v445
        %v461 = vadd.f32 %v460, %v446
        %v462 = vrot.slane %v461, 4
        %v463 = vadd.f32 %v461, %v462
        %v464 = vrot.slane %v463, 2
        %v465 = vadd.f32 %v463, %v464
        %v466 = vrot.slane %v465, 1
        %v467 = vadd.f32 %v465, %v466
        %vm468 = vcmask 1040384
        %v469 = vsel %vm468, %v430, %v467
        %470 = vst [vmem:[%s214] sm:$0x3] %v469
        %s471 = sand.u32 %s80, 1
        %s472 = scalar_lea.sflag [#allocation4], %s471
        %s473 = sand.u32 %s80, 1
        %s474 = smul.addr %s473, 128
        %s475 = scalar_lea.vmem [#allocation7], %s474
        %s476 = sand.u32 %s106, 1
        %s477 = scalar_lea.sflag [#allocation9], %s476
        %s478 = sand.u32 %s106, 1
        %s479 = smul.addr %s478, 2
        %s480 = scalar_lea.vmem [#allocation8], %s479
        // Predicated region
        $region37: #{bottleneck_forward.4} parent=27 // pred_check
          %p481 = pneg %p90
        $region38: #{bottleneck_forward.4} parent=27 // pred_check_branch
          %483 = sbr.rel (%p481) target = $region40
        $region39: #{bottleneck_forward.4} parent=27 // pred_region
          %s484 = smul.u32 16, %s25
          %s486 = ssub.s32 2048, 2048
          %487 = vsyncadd %s472, %s486
          %s488 = smul.addr %s484, 128
          %s489 = scalar_lea.hbm %s2, %s488
          %s490 = sshll.u32 %s475, 4
          %s491 = int_to_ptr.vmem [resolvable:$true] %s490
          %496 = dma.vmem_to_hbm [thread:$0]  %s491, 2048, %s489, %s472, 128, 128, 8
        $region40: #{bottleneck_forward.4} parent=27 // pred_fallthru
          _
        // Predicated region
        $region41: #{bottleneck_forward.4} parent=27 // pred_check
          %p497 = pneg %p116
        $region42: #{bottleneck_forward.4} parent=27 // pred_check_branch
          %499 = sbr.rel (%p497) target = $region44
        $region43: #{bottleneck_forward.4} parent=27 // pred_region
          %s501 = ssub.s32 32, 32
          %502 = vsyncadd %s477, %s501
          %s503 = smul.addr %s25, 32
          %s504 = scalar_lea.hbm %s3, %s503
          %s506 = sshll.u32 %s480, 4
          %s507 = int_to_ptr.vmem [resolvable:$true] %s506
          %509 = dma.vmem_to_hbm [thread:$0]  %s507, 32, %s504, %s477
        $region44: #{bottleneck_forward.4} parent=27 // pred_fallthru
          _
      $region28: #{bottleneck_forward.4} parent=5 // pred_fallthru
        _
      %p510 = scmp.le.s32.totalorder 2, %s20
      // Predicated region
      $region45: #{bottleneck_forward.4} parent=5 // pred_check
        %p511 = pneg %p510
      $region46: #{bottleneck_forward.4} parent=5 // pred_check_branch
        %513 = sbr.rel (%p511) target = $region48
      $region47: #{bottleneck_forward.4} parent=5 // pred_region
        %s514 = ssub.s32 %s20, 2
        // Predicated region
        $region49: #{bottleneck_forward.4} parent=47 // pred_check
          %p515 = pneg %p96
        $region50: #{bottleneck_forward.4} parent=47 // pred_check_branch
          %517 = sbr.rel (%p515) target = $region52
        $region51: #{bottleneck_forward.4} parent=47 // pred_region
          %s518 = sand.u32 %s81, 1
          %s519 = scalar_lea.sflag [#allocation4], %s518
          %s520 = sand.u32 %s81, 1
          %s521 = smul.addr %s520, 128
          %s522 = scalar_lea.vmem [#allocation7], %s521
          %523 = dma.done %s519, 2048
        $region52: #{bottleneck_forward.4} parent=47 // pred_fallthru
          _
        // Predicated region
        $region53: #{bottleneck_forward.4} parent=47 // pred_check
          %p524 = pneg %p122
        $region54: #{bottleneck_forward.4} parent=47 // pred_check_branch
          %526 = sbr.rel (%p524) target = $region56
        $region55: #{bottleneck_forward.4} parent=47 // pred_region
          %s527 = sand.u32 %s107, 1
          %s528 = scalar_lea.sflag [#allocation9], %s527
          %s529 = sand.u32 %s107, 1
          %s530 = smul.addr %s529, 2
          %s531 = scalar_lea.vmem [#allocation8], %s530
          %532 = dma.done %s528, 32
        $region56: #{bottleneck_forward.4} parent=47 // pred_fallthru
          _
      $region48: #{bottleneck_forward.4} parent=5 // pred_fallthru
        _
    $region6: #{bottleneck_forward.4} parent=1 // loop_footer
      %s24 = sadd.s32 1, %s20
    $region7: #{bottleneck_forward.4} parent=1 // loop_footer_branch
      %19 = sbr.rel target = $region3
    $region8: #{bottleneck_forward.4} parent=1 // loop_exit
      _
    %533 = vsyncpa [#allocation3], 1
    %s534 = scalar_lea.sflag [#allocation3], 1
    %535 = vsyncpa %s534, 1
    %536 = vsyncpa [#allocation6], 1
    %537 = vsyncpa [#allocation4], 1
    %s538 = scalar_lea.sflag [#allocation4], 1
    %539 = vsyncpa %s538, 1
    %540 = vsyncpa [#allocation9], 1
    %s541 = scalar_lea.sflag [#allocation9], 1
    %542 = vsyncpa %s541, 1

// kernel: bottleneck_forward.5
$region0: #{bottleneck_forward.5}
  #allocation0 [shape = 'u32[]', space=smem, size = 0x4, offset = 0x4, fixed_abs, tag = 'smem constant byte address 0x4 - core index']
  #allocation1 [shape = 'u32[144,128]{1,0:T(1,128)}', space=vmem, size = 0x12000, scoped, tag = 'internal scratch']
  %s0 = inlined_call_operand.hbm [shape: f32[128,1152], index: 0, kind: input, shape index: {}]
  %s1 = inlined_call_operand.hbm [shape: f32[1152,128], index: 1, kind: input, shape index: {}]
  %s2 = inlined_call_operand.hbm [shape: f32[128,128], index: 2, kind: input, shape index: {}]
  %s3 = inlined_call_operand.hbm [shape: f32[128,128], index: 3, kind: input, shape index: {}]
  %s4 = inlined_call_operand.hbm [shape: f32[128,128], index: 4, kind: output, shape index: {0}]
  %s5 = inlined_call_operand.hbm [shape: f32[128,128], index: 5, kind: output, shape index: {1}]
  %s6 = inlined_call_operand.hbm [shape: f32[2,2,128], index: 6, kind: output, shape index: {2}]
  %s7 = inlined_call_operand.hbm [shape: f32[2,2,128], index: 7, kind: output, shape index: {3}]
  %8 = xla_tuple %s4, %s5, %s6, %s7
  %s9 = sld [smem:[#allocation0]]
  $region89: #{bottleneck_forward.5} parent=0
    _
  %s11 = ssub.s32 1, %s9
  %s12 = scalar_select 0, %s11, %s9
  $region1: #{bottleneck_forward.5} parent=0
    #allocation2 [shape = 'u8[589824]{0}', space=vmem, size = 0x90000, scoped, tag = 'input window, operand 0']
    #allocation3 [shape = 's32[2]{0}', space=sflag, size = 0x8, scoped, tag = 'scoped memory for bottleneck_forward.5']
    #allocation4 [shape = 's32[2]{0}', space=sflag, size = 0x8, scoped, tag = 'scoped memory for bottleneck_forward.5']
    #allocation5 [shape = 'u8[589824]{0}', space=vmem, size = 0x90000, scoped, tag = 'input window, operand 1, single buffered']
    #allocation6 [shape = 's32[1]{0}', space=sflag, size = 0x4, scoped, tag = 'scoped memory for bottleneck_forward.5']
    #allocation7 [shape = 'u8[65536]{0}', space=vmem, size = 0x10000, scoped, tag = 'input window, operand 2']
    #allocation8 [shape = 'u8[65536]{0}', space=vmem, size = 0x10000, scoped, tag = 'input window, operand 3, single buffered']
    #allocation9 [shape = 'u8[65536]{0}', space=vmem, size = 0x10000, scoped, tag = 'output window, operand 0']
    #allocation10 [shape = 'u8[65536]{0}', space=vmem, size = 0x10000, scoped, tag = 'output window, operand 1']
    #allocation11 [shape = 's32[2]{0}', space=sflag, size = 0x8, scoped, tag = 'scoped memory for bottleneck_forward.5']
    #allocation12 [shape = 'u8[2048]{0}', space=vmem, size = 0x800, scoped, tag = 'output window, operand 2']
    #allocation13 [shape = 'u8[2048]{0}', space=vmem, size = 0x800, scoped, tag = 'output window, operand 3']
    #allocation14 [shape = 's32[2]{0}', space=sflag, size = 0x8, scoped, tag = 'scoped memory for bottleneck_forward.5']
    %13 = vsyncpa [#allocation3], 0
    %s14 = scalar_lea.sflag [#allocation3], 1
    %15 = vsyncpa %s14, 0
    %16 = vsyncpa [#allocation6], 0
    %17 = vsyncpa [#allocation4], 0
    %s18 = scalar_lea.sflag [#allocation4], 1
    %19 = vsyncpa %s18, 0
    %20 = vsyncpa [#allocation11], 0
    %s21 = scalar_lea.sflag [#allocation11], 1
    %22 = vsyncpa %s21, 0
    %23 = vsyncpa [#allocation14], 0
    %s24 = scalar_lea.sflag [#allocation14], 1
    %25 = vsyncpa %s24, 0
    loop: start=0, step=1, limit=4
    $region2: #{bottleneck_forward.5} parent=1 // loop_pre_header
      _
    $region3: #{bottleneck_forward.5} parent=1 // loop_header
      %s27 = sphi 0, %s31
      %p28 = scmp.ge.s32.totalorder %s27, 4
      %s37 = sphi 0, %s39
      %s40 = sphi 0, %s37
      %s41 = sphi 0, %s40
      %s57 = sphi 0, %s41
      %s61 = sphi 0, %s61
      %s63 = sphi 0, %s61
      %s64 = sphi 0, %s63
      %s78 = sphi 0, %s64
      %s84 = sphi 0, %s86
      %s87 = sphi 0, %s84
      %s88 = sphi 0, %s87
      %s104 = sphi 0, %s88
      %s108 = sphi 0, %s108
      %s110 = sphi 0, %s108
      %s111 = sphi 0, %s110
      %s125 = sphi 0, %s111
      %s131 = sphi 0, %s133
      %s134 = sphi 0, %s131
      %s135 = sphi 0, %s134
      %s151 = sphi 0, %s135
      %s157 = sphi 0, %s159
      %s160 = sphi 0, %s157
      %s161 = sphi 0, %s160
      %s177 = sphi 0, %s161
      %s183 = sphi 0, %s185
      %s186 = sphi 0, %s183
      %s187 = sphi 0, %s186
      %s203 = sphi 0, %s187
      %s209 = sphi 0, %s211
      %s212 = sphi 0, %s209
      %s213 = sphi 0, %s212
      %s229 = sphi 0, %s213
    $region4: #{bottleneck_forward.5} parent=1 // loop_header_branch
      %30 = sbr.rel (%p28) target = $region8
    $region5: #{bottleneck_forward.5} parent=1 // loop_body
      %s32 = ssub.s32 %s27, 1
      %s33 = ssub.s32 %s27, 2
      %s34 = sadd.s32 %s27, 1
      %s35 = ssub.s32 %s27, %s34
      %p36 = scmp.eq.s32.totalorder %s35, 0
      %s38 = sadd.s32 %s37, 1
      %s39 = scalar_select %p36, %s37, %s38
      %p42 = pneg %p36
      %p43 = scmp.eq.s32.totalorder %s27, 1
      %p44 = por %p42, %p43
      %p45 = scmp.ne.s32.totalorder %s37, %s40
      %p46 = scmp.eq.s32.totalorder %s27, 0
      %p47 = por %p45, %p46
      %p48 = scmp.ne.s32.totalorder %s37, %s40
      %p49 = scmp.eq.s32.totalorder %s32, 1
      %p50 = por %p48, %p49
      %p51 = scmp.ne.s32.totalorder %s40, %s41
      %p52 = scmp.eq.s32.totalorder %s32, 0
      %p53 = por %p51, %p52
      %p54 = scmp.ne.s32.totalorder %s40, %s41
      %p55 = scmp.eq.s32.totalorder %s33, 1
      %p56 = por %p54, %p55
      %p58 = scmp.ne.s32.totalorder %s41, %s57
      %p59 = scmp.eq.s32.totalorder %s33, 0
      %p60 = por %p58, %p59
      %s62 = sadd.s32 %s61, 1
      %p65 = scmp.eq.s32.totalorder %s27, 1
      %p66 = scmp.ne.s32.totalorder %s61, %s63
      %p67 = scmp.eq.s32.totalorder %s27, 0
      %p68 = por %p66, %p67
      %p69 = scmp.ne.s32.totalorder %s61, %s63
      %p70 = scmp.eq.s32.totalorder %s32, 1
      %p71 = por %p69, %p70
      %p72 = scmp.ne.s32.totalorder %s63, %s64
      %p73 = scmp.eq.s32.totalorder %s32, 0
      %p74 = por %p72, %p73
      %p75 = scmp.ne.s32.totalorder %s63, %s64
      %p76 = scmp.eq.s32.totalorder %s33, 1
      %p77 = por %p75, %p76
      %p79 = scmp.ne.s32.totalorder %s64, %s78
      %p80 = scmp.eq.s32.totalorder %s33, 0
      %p81 = por %p79, %p80
      %s82 = ssub.s32 %s27, %s34
      %p83 = scmp.eq.s32.totalorder %s82, 0
      %s85 = sadd.s32 %s84, 1
      %s86 = scalar_select %p83, %s84, %s85
      %p89 = pneg %p83
      %p90 = scmp.eq.s32.totalorder %s27, 1
      %p91 = por %p89, %p90
      %p92 = scmp.ne.s32.totalorder %s84, %s87
      %p93 = scmp.eq.s32.totalorder %s27, 0
      %p94 = por %p92, %p93
      %p95 = scmp.ne.s32.totalorder %s84, %s87
      %p96 = scmp.eq.s32.totalorder %s32, 1
      %p97 = por %p95, %p96
      %p98 = scmp.ne.s32.totalorder %s87, %s88
      %p99 = scmp.eq.s32.totalorder %s32, 0
      %p100 = por %p98, %p99
      %p101 = scmp.ne.s32.totalorder %s87, %s88
      %p102 = scmp.eq.s32.totalorder %s33, 1
      %p103 = por %p101, %p102
      %p105 = scmp.ne.s32.totalorder %s88, %s104
      %p106 = scmp.eq.s32.totalorder %s33, 0
      %p107 = por %p105, %p106
      %s109 = sadd.s32 %s108, 1
      %p112 = scmp.eq.s32.totalorder %s27, 1
      %p113 = scmp.ne.s32.totalorder %s108, %s110
      %p114 = scmp.eq.s32.totalorder %s27, 0
      %p115 = por %p113, %p114
      %p116 = scmp.ne.s32.totalorder %s108, %s110
      %p117 = scmp.eq.s32.totalorder %s32, 1
      %p118 = por %p116, %p117
      %p119 = scmp.ne.s32.totalorder %s110, %s111
      %p120 = scmp.eq.s32.totalorder %s32, 0
      %p121 = por %p119, %p120
      %p122 = scmp.ne.s32.totalorder %s110, %s111
      %p123 = scmp.eq.s32.totalorder %s33, 1
      %p124 = por %p122, %p123
      %p126 = scmp.ne.s32.totalorder %s111, %s125
      %p127 = scmp.eq.s32.totalorder %s33, 0
      %p128 = por %p126, %p127
      %s129 = ssub.s32 %s27, %s34
      %p130 = scmp.eq.s32.totalorder %s129, 0
      %s132 = sadd.s32 %s131, 1
      %s133 = scalar_select %p130, %s131, %s132
      %p136 = pneg %p130
      %p137 = scmp.eq.s32.totalorder %s27, 1
      %p138 = por %p136, %p137
      %p139 = scmp.ne.s32.totalorder %s131, %s134
      %p140 = scmp.eq.s32.totalorder %s27, 0
      %p141 = por %p139, %p140
      %p142 = scmp.ne.s32.totalorder %s131, %s134
      %p143 = scmp.eq.s32.totalorder %s32, 1
      %p144 = por %p142, %p143
      %p145 = scmp.ne.s32.totalorder %s134, %s135
      %p146 = scmp.eq.s32.totalorder %s32, 0
      %p147 = por %p145, %p146
      %p148 = scmp.ne.s32.totalorder %s134, %s135
      %p149 = scmp.eq.s32.totalorder %s33, 1
      %p150 = por %p148, %p149
      %p152 = scmp.ne.s32.totalorder %s135, %s151
      %p153 = scmp.eq.s32.totalorder %s33, 0
      %p154 = por %p152, %p153
      %s155 = ssub.s32 %s27, %s34
      %p156 = scmp.eq.s32.totalorder %s155, 0
      %s158 = sadd.s32 %s157, 1
      %s159 = scalar_select %p156, %s157, %s158
      %p162 = pneg %p156
      %p163 = scmp.eq.s32.totalorder %s27, 1
      %p164 = por %p162, %p163
      %p165 = scmp.ne.s32.totalorder %s157, %s160
      %p166 = scmp.eq.s32.totalorder %s27, 0
      %p167 = por %p165, %p166
      %p168 = scmp.ne.s32.totalorder %s157, %s160
      %p169 = scmp.eq.s32.totalorder %s32, 1
      %p170 = por %p168, %p169
      %p171 = scmp.ne.s32.totalorder %s160, %s161
      %p172 = scmp.eq.s32.totalorder %s32, 0
      %p173 = por %p171, %p172
      %p174 = scmp.ne.s32.totalorder %s160, %s161
      %p175 = scmp.eq.s32.totalorder %s33, 1
      %p176 = por %p174, %p175
      %p178 = scmp.ne.s32.totalorder %s161, %s177
      %p179 = scmp.eq.s32.totalorder %s33, 0
      %p180 = por %p178, %p179
      %s181 = ssub.s32 %s27, %s34
      %p182 = scmp.eq.s32.totalorder %s181, 0
      %s184 = sadd.s32 %s183, 1
      %s185 = scalar_select %p182, %s183, %s184
      %p188 = pneg %p182
      %p189 = scmp.eq.s32.totalorder %s27, 1
      %p190 = por %p188, %p189
      %p191 = scmp.ne.s32.totalorder %s183, %s186
      %p192 = scmp.eq.s32.totalorder %s27, 0
      %p193 = por %p191, %p192
      %p194 = scmp.ne.s32.totalorder %s183, %s186
      %p195 = scmp.eq.s32.totalorder %s32, 1
      %p196 = por %p194, %p195
      %p197 = scmp.ne.s32.totalorder %s186, %s187
      %p198 = scmp.eq.s32.totalorder %s32, 0
      %p199 = por %p197, %p198
      %p200 = scmp.ne.s32.totalorder %s186, %s187
      %p201 = scmp.eq.s32.totalorder %s33, 1
      %p202 = por %p200, %p201
      %p204 = scmp.ne.s32.totalorder %s187, %s203
      %p205 = scmp.eq.s32.totalorder %s33, 0
      %p206 = por %p204, %p205
      %s207 = ssub.s32 %s27, %s34
      %p208 = scmp.eq.s32.totalorder %s207, 0
      %s210 = sadd.s32 %s209, 1
      %s211 = scalar_select %p208, %s209, %s210
      %p214 = pneg %p208
      %p215 = scmp.eq.s32.totalorder %s27, 1
      %p216 = por %p214, %p215
      %p217 = scmp.ne.s32.totalorder %s209, %s212
      %p218 = scmp.eq.s32.totalorder %s27, 0
      %p219 = por %p217, %p218
      %p220 = scmp.ne.s32.totalorder %s209, %s212
      %p221 = scmp.eq.s32.totalorder %s32, 1
      %p222 = por %p220, %p221
      %p223 = scmp.ne.s32.totalorder %s212, %s213
      %p224 = scmp.eq.s32.totalorder %s32, 0
      %p225 = por %p223, %p224
      %p226 = scmp.ne.s32.totalorder %s212, %s213
      %p227 = scmp.eq.s32.totalorder %s33, 1
      %p228 = por %p226, %p227
      %p230 = scmp.ne.s32.totalorder %s213, %s229
      %p231 = scmp.eq.s32.totalorder %s33, 0
      %p232 = por %p230, %p231
      %p233 = scmp.le.s32.totalorder 1, %s27
      %p234 = scmp.lt.s32.totalorder %s27, 3
      %p235 = pnand %p233, %p234
      %p236 = pneg %p235
      // Predicated region
      $region9: #{bottleneck_forward.5} parent=5 // pred_check
        _
      $region10: #{bottleneck_forward.5} parent=5 // pred_check_branch
        %238 = sbr.rel (%p235) target = $region12
      $region11: #{bottleneck_forward.5} parent=5 // pred_region
        %s239 = ssub.s32 %s27, 1
        // Predicated region
        $region13: #{bottleneck_forward.5} parent=11 // pred_check
          %p240 = pneg %p74
        $region14: #{bottleneck_forward.5} parent=11 // pred_check_branch
          %242 = sbr.rel (%p240) target = $region16
        $region15: #{bottleneck_forward.5} parent=11 // pred_region
          %s244 = ssub.s32 18432, 18432
          %245 = vsyncadd [#allocation6], %s244
          %s246 = sshll.u32 [#allocation5], 4
          %s247 = int_to_ptr.vmem [resolvable:$true] %s246
          %252 = dma.hbm_to_vmem [thread:$0]  %s1, 18432, %s247, [#allocation6], 128, 128, 8
        $region16: #{bottleneck_forward.5} parent=11 // pred_fallthru
          _
        // Predicated region
        $region17: #{bottleneck_forward.5} parent=11 // pred_check
          %p253 = pneg %p121
        $region18: #{bottleneck_forward.5} parent=11 // pred_check_branch
          %255 = sbr.rel (%p253) target = $region20
        $region19: #{bottleneck_forward.5} parent=11 // pred_region
          %s257 = ssub.s32 2048, 2048
          %258 = vsyncadd [#allocation6], %s257
          %s259 = sshll.u32 [#allocation8], 4
          %s260 = int_to_ptr.vmem [resolvable:$true] %s259
          %265 = dma.hbm_to_vmem [thread:$0]  %s3, 2048, %s260, [#allocation6], 128, 128, 8
        $region20: #{bottleneck_forward.5} parent=11 // pred_fallthru
          _
      $region12: #{bottleneck_forward.5} parent=5 // pred_fallthru
        _
      %p266 = scmp.lt.s32.totalorder %s27, 2
      // Predicated region
      $region21: #{bottleneck_forward.5} parent=5 // pred_check
        %p267 = pneg %p266
      $region22: #{bottleneck_forward.5} parent=5 // pred_check_branch
        %269 = sbr.rel (%p267) target = $region24
      $region23: #{bottleneck_forward.5} parent=5 // pred_region
        // Predicated region
        $region25: #{bottleneck_forward.5} parent=23 // pred_check
          %p270 = pneg %p47
        $region26: #{bottleneck_forward.5} parent=23 // pred_check_branch
          %272 = sbr.rel (%p270) target = $region28
        $region27: #{bottleneck_forward.5} parent=23 // pred_region
          %s273 = sand.u32 %s27, 1
          %s274 = scalar_lea.sflag [#allocation3], %s273
          %s275 = sand.u32 %s37, 1
          %s276 = smul.addr %s275, 576
          %s277 = scalar_lea.vmem [#allocation2], %s276
          %s278 = smul.u32 8, %s27
          %s280 = ssub.s32 9216, 9216
          %281 = vsyncadd %s274, %s280
          %s282 = smul.addr %s278, 9
          %s283 = smul.addr %s282, 128
          %s284 = scalar_lea.hbm %s0, %s283
          %s285 = sshll.u32 %s277, 4
          %s286 = int_to_ptr.vmem [resolvable:$true] %s285
          %291 = dma.hbm_to_vmem [thread:$0]  %s284, 9216, %s286, %s274, 1152, 1152, 72
        $region28: #{bottleneck_forward.5} parent=23 // pred_fallthru
          _
        // Predicated region
        $region29: #{bottleneck_forward.5} parent=23 // pred_check
          %p292 = pneg %p94
        $region30: #{bottleneck_forward.5} parent=23 // pred_check_branch
          %294 = sbr.rel (%p292) target = $region32
        $region31: #{bottleneck_forward.5} parent=23 // pred_region
          %s295 = sand.u32 %s27, 1
          %s296 = scalar_lea.sflag [#allocation3], %s295
          %s297 = sand.u32 %s84, 1
          %s298 = smul.addr %s297, 64
          %s299 = scalar_lea.vmem [#allocation7], %s298
          %s300 = smul.u32 8, %s27
          %s302 = ssub.s32 1024, 1024
          %303 = vsyncadd %s296, %s302
          %s304 = smul.addr %s300, 128
          %s305 = scalar_lea.hbm %s2, %s304
          %s306 = sshll.u32 %s299, 4
          %s307 = int_to_ptr.vmem [resolvable:$true] %s306
          %312 = dma.hbm_to_vmem [thread:$0]  %s305, 1024, %s307, %s296, 128, 128, 8
        $region32: #{bottleneck_forward.5} parent=23 // pred_fallthru
          _
      $region24: #{bottleneck_forward.5} parent=5 // pred_fallthru
        _
      %p313 = scmp.le.s32.totalorder 1, %s27
      %p314 = scmp.lt.s32.totalorder %s27, 3
      %p315 = pnand %p313, %p314
      %p316 = pneg %p315
      // Predicated region
      $region33: #{bottleneck_forward.5} parent=5 // pred_check
        _
      $region34: #{bottleneck_forward.5} parent=5 // pred_check_branch
        %318 = sbr.rel (%p315) target = $region36
      $region35: #{bottleneck_forward.5} parent=5 // pred_region
        %s319 = ssub.s32 %s27, 1
        %s320 = sand.u32 %s32, 1
        %s321 = scalar_lea.sflag [#allocation3], %s320
        %s322 = sand.u32 %s40, 1
        %s323 = smul.addr %s322, 576
        %s324 = scalar_lea.vmem [#allocation2], %s323
        // Predicated region
        $region37: #{bottleneck_forward.5} parent=35 // pred_check
          %p325 = pneg %p53
        $region38: #{bottleneck_forward.5} parent=35 // pred_check_branch
          %327 = sbr.rel (%p325) target = $region40
        $region39: #{bottleneck_forward.5} parent=35 // pred_region
          %328 = dma.done %s321, 9216
        $region40: #{bottleneck_forward.5} parent=35 // pred_fallthru
          _
        // Predicated region
        $region41: #{bottleneck_forward.5} parent=35 // pred_check
          %p329 = pneg %p74
        $region42: #{bottleneck_forward.5} parent=35 // pred_check_branch
          %331 = sbr.rel (%p329) target = $region44
        $region43: #{bottleneck_forward.5} parent=35 // pred_region
          %332 = dma.done [#allocation6], 18432
        $region44: #{bottleneck_forward.5} parent=35 // pred_fallthru
          _
        %s333 = sand.u32 %s32, 1
        %s334 = scalar_lea.sflag [#allocation3], %s333
        %s335 = sand.u32 %s87, 1
        %s336 = smul.addr %s335, 64
        %s337 = scalar_lea.vmem [#allocation7], %s336
        // Predicated region
        $region45: #{bottleneck_forward.5} parent=35 // pred_check
          %p338 = pneg %p100
        $region46: #{bottleneck_forward.5} parent=35 // pred_check_branch
          %340 = sbr.rel (%p338) target = $region48
        $region47: #{bottleneck_forward.5} parent=35 // pred_region
          %341 = dma.done %s334, 1024
        $region48: #{bottleneck_forward.5} parent=35 // pred_fallthru
          _
        // Predicated region
        $region49: #{bottleneck_forward.5} parent=35 // pred_check
          %p342 = pneg %p121
        $region50: #{bottleneck_forward.5} parent=35 // pred_check_branch
          %344 = sbr.rel (%p342) target = $region52
        $region51: #{bottleneck_forward.5} parent=35 // pred_region
          %345 = dma.done [#allocation6], 2048
        $region52: #{bottleneck_forward.5} parent=35 // pred_fallthru
          _
        %s346 = sand.u32 %s32, 1
        %s347 = scalar_lea.sflag [#allocation3], %s346
        %s348 = sand.u32 %s40, 1
        %s349 = smul.addr %s348, 576
        %s350 = scalar_lea.vmem [#allocation2], %s349
        %p351 = pneg %p53
        %p352 = pneg %p50
        %p353 = pneg %p74
        %p354 = pneg %p71
        %s355 = sand.u32 %s32, 1
        %s356 = scalar_lea.sflag [#allocation3], %s355
        %s357 = sand.u32 %s87, 1
        %s358 = smul.addr %s357, 64
        %s359 = scalar_lea.vmem [#allocation7], %s358
        %p360 = pneg %p100
        %p361 = pneg %p97
        %p362 = pneg %p121
        %p363 = pneg %p118
        %p364 = pneg %p147
        %p365 = pneg %p144
        %s366 = sand.u32 %s134, 1
        %s367 = scalar_lea.sflag [#allocation4], %s366
        %s368 = sand.u32 %s134, 1
        %s369 = smul.addr %s368, 64
        %s370 = scalar_lea.vmem [#allocation9], %s369
        %p371 = pneg %p173
        %p372 = pneg %p170
        %s373 = sand.u32 %s32, 1
        %s374 = scalar_lea.sflag [#allocation11], %s373
        %s375 = sand.u32 %s160, 1
        %s376 = smul.addr %s375, 64
        %s377 = scalar_lea.vmem [#allocation10], %s376
        %p378 = pneg %p199
        %p379 = pneg %p196
        %s380 = sand.u32 %s32, 1
        %s381 = scalar_lea.sflag [#allocation11], %s380
        %s382 = sand.u32 %s186, 1
        %s383 = smul.addr %s382, 2
        %s384 = scalar_lea.vmem [#allocation12], %s383
        %p385 = pneg %p225
        %p386 = pneg %p222
        %s387 = sand.u32 %s212, 1
        %s388 = scalar_lea.sflag [#allocation14], %s387
        %s389 = sand.u32 %s212, 1
        %s390 = smul.addr %s389, 2
        %s391 = scalar_lea.vmem [#allocation13], %s390
        %s392 = smul.u32 8, %s32
        %s393 = smul.u32 8, %s32
        %s394 = smul.u32 8, %s32
        %s395 = smul.u32 8, %s32
        %v396 = vld [vmem:[%s324] sm:$0xff]
        %v397 = vld [vmem:[%s324 + $0x8] sm:$0xff]
        %v398 = vld [vmem:[%s324 + $0x10] sm:$0xff]
        %v399 = vld [vmem:[%s324 + $0x18] sm:$0xff]
        %v400 = vld [vmem:[%s324 + $0x20] sm:$0xff]
        %v401 = vld [vmem:[%s324 + $0x28] sm:$0xff]
        %v402 = vld [vmem:[%s324 + $0x30] sm:$0xff]
        %v403 = vld [vmem:[%s324 + $0x38] sm:$0xff]
        %v404 = vld [vmem:[%s324 + $0x40] sm:$0xff]
        %v405 = vld [vmem:[%s324 + $0x48] sm:$0xff]
        %v406 = vld [vmem:[%s324 + $0x50] sm:$0xff]
        %v407 = vld [vmem:[%s324 + $0x58] sm:$0xff]
        %v408 = vld [vmem:[%s324 + $0x60] sm:$0xff]
        %v409 = vld [vmem:[%s324 + $0x68] sm:$0xff]
        %v410 = vld [vmem:[%s324 + $0x70] sm:$0xff]
        %v411 = vld [vmem:[%s324 + $0x78] sm:$0xff]
        %v412 = vld [vmem:[%s324 + $0x80] sm:$0xff]
        %v413 = vld [vmem:[%s324 + $0x88] sm:$0xff]
        %v414 = vld [vmem:[%s324 + $0x90] sm:$0xff]
        %v415 = vld [vmem:[%s324 + $0x98] sm:$0xff]
        %v416 = vld [vmem:[%s324 + $0xa0] sm:$0xff]
        %v417 = vld [vmem:[%s324 + $0xa8] sm:$0xff]
        %v418 = vld [vmem:[%s324 + $0xb0] sm:$0xff]
        %v419 = vld [vmem:[%s324 + $0xb8] sm:$0xff]
        %v420 = vld [vmem:[%s324 + $0xc0] sm:$0xff]
        %v421 = vld [vmem:[%s324 + $0xc8] sm:$0xff]
        %v422 = vld [vmem:[%s324 + $0xd0] sm:$0xff]
        %v423 = vld [vmem:[%s324 + $0xd8] sm:$0xff]
        %v424 = vld [vmem:[%s324 + $0xe0] sm:$0xff]
        %v425 = vld [vmem:[%s324 + $0xe8] sm:$0xff]
        %v426 = vld [vmem:[%s324 + $0xf0] sm:$0xff]
        %v427 = vld [vmem:[%s324 + $0xf8] sm:$0xff]
        %v428 = vld [vmem:[%s324 + $0x100] sm:$0xff]
        %v429 = vld [vmem:[%s324 + $0x108] sm:$0xff]
        %v430 = vld [vmem:[%s324 + $0x110] sm:$0xff]
        %v431 = vld [vmem:[%s324 + $0x118] sm:$0xff]
        %v432 = vld [vmem:[%s324 + $0x120] sm:$0xff]
        %v433 = vld [vmem:[%s324 + $0x128] sm:$0xff]
        %v434 = vld [vmem:[%s324 + $0x130] sm:$0xff]
        %v435 = vld [vmem:[%s324 + $0x138] sm:$0xff]
        %v436 = vld [vmem:[%s324 + $0x140] sm:$0xff]
        %v437 = vld [vmem:[%s324 + $0x148] sm:$0xff]
        %v438 = vld [vmem:[%s324 + $0x150] sm:$0xff]
        %v439 = vld [vmem:[%s324 + $0x158] sm:$0xff]
        %v440 = vld [vmem:[%s324 + $0x160] sm:$0xff]
        %v441 = vld [vmem:[%s324 + $0x168] sm:$0xff]
        %v442 = vld [vmem:[%s324 + $0x170] sm:$0xff]
        %v443 = vld [vmem:[%s324 + $0x178] sm:$0xff]
        %v444 = vld [vmem:[%s324 + $0x180] sm:$0xff]
        %v445 = vld [vmem:[%s324 + $0x188] sm:$0xff]
        %v446 = vld [vmem:[%s324 + $0x190] sm:$0xff]
        %v447 = vld [vmem:[%s324 + $0x198] sm:$0xff]
        %v448 = vld [vmem:[%s324 + $0x1a0] sm:$0xff]
        %v449 = vld [vmem:[%s324 + $0x1a8] sm:$0xff]
        %v450 = vld [vmem:[%s324 + $0x1b0] sm:$0xff]
        %v451 = vld [vmem:[%s324 + $0x1b8] sm:$0xff]
        %v452 = vld [vmem:[%s324 + $0x1c0] sm:$0xff]
        %v453 = vld [vmem:[%s324 + $0x1c8] sm:$0xff]
        %v454 = vld [vmem:[%s324 + $0x1d0] sm:$0xff]
        %v455 = vld [vmem:[%s324 + $0x1d8] sm:$0xff]
        %v456 = vld [vmem:[%s324 + $0x1e0] sm:$0xff]
        %v457 = vld [vmem:[%s324 + $0x1e8] sm:$0xff]
        %v458 = vld [vmem:[%s324 + $0x1f0] sm:$0xff]
        %v459 = vld [vmem:[%s324 + $0x1f8] sm:$0xff]
        %v460 = vld [vmem:[%s324 + $0x200] sm:$0xff]
        %v461 = vld [vmem:[%s324 + $0x208] sm:$0xff]
        %v462 = vld [vmem:[%s324 + $0x210] sm:$0xff]
        %v463 = vld [vmem:[%s324 + $0x218] sm:$0xff]
        %v464 = vld [vmem:[%s324 + $0x220] sm:$0xff]
        %v465 = vld [vmem:[%s324 + $0x228] sm:$0xff]
        %v466 = vld [vmem:[%s324 + $0x230] sm:$0xff]
        %v467 = vld [vmem:[%s324 + $0x238] sm:$0xff]
        %v468 = vld [vmem:[#allocation5] sm:$0xff]
        %v469 = vld [vmem:[#allocation5 + $0x8] sm:$0xff]
        %v470 = vld [vmem:[#allocation5 + $0x10] sm:$0xff]
        %v471 = vld [vmem:[#allocation5 + $0x18] sm:$0xff]
        %v472 = vld [vmem:[#allocation5 + $0x20] sm:$0xff]
        %v473 = vld [vmem:[#allocation5 + $0x28] sm:$0xff]
        %v474 = vld [vmem:[#allocation5 + $0x30] sm:$0xff]
        %v475 = vld [vmem:[#allocation5 + $0x38] sm:$0xff]
        %v476 = vld [vmem:[#allocation5 + $0x40] sm:$0xff]
        %v477 = vld [vmem:[#allocation5 + $0x48] sm:$0xff]
        %v478 = vld [vmem:[#allocation5 + $0x50] sm:$0xff]
        %v479 = vld [vmem:[#allocation5 + $0x58] sm:$0xff]
        %v480 = vld [vmem:[#allocation5 + $0x60] sm:$0xff]
        %v481 = vld [vmem:[#allocation5 + $0x68] sm:$0xff]
        %v482 = vld [vmem:[#allocation5 + $0x70] sm:$0xff]
        %v483 = vld [vmem:[#allocation5 + $0x78] sm:$0xff]
        %v484 = vld [vmem:[#allocation5 + $0x80] sm:$0xff]
        %v485 = vld [vmem:[#allocation5 + $0x88] sm:$0xff]
        %v486 = vld [vmem:[#allocation5 + $0x90] sm:$0xff]
        %v487 = vld [vmem:[#allocation5 + $0x98] sm:$0xff]
        %v488 = vld [vmem:[#allocation5 + $0xa0] sm:$0xff]
        %v489 = vld [vmem:[#allocation5 + $0xa8] sm:$0xff]
        %v490 = vld [vmem:[#allocation5 + $0xb0] sm:$0xff]
        %v491 = vld [vmem:[#allocation5 + $0xb8] sm:$0xff]
        %v492 = vld [vmem:[#allocation5 + $0xc0] sm:$0xff]
        %v493 = vld [vmem:[#allocation5 + $0xc8] sm:$0xff]
        %v494 = vld [vmem:[#allocation5 + $0xd0] sm:$0xff]
        %v495 = vld [vmem:[#allocation5 + $0xd8] sm:$0xff]
        %v496 = vld [vmem:[#allocation5 + $0xe0] sm:$0xff]
        %v497 = vld [vmem:[#allocation5 + $0xe8] sm:$0xff]
        %v498 = vld [vmem:[#allocation5 + $0xf0] sm:$0xff]
        %v499 = vld [vmem:[#allocation5 + $0xf8] sm:$0xff]
        %v500 = vld [vmem:[#allocation5 + $0x100] sm:$0xff]
        %v501 = vld [vmem:[#allocation5 + $0x108] sm:$0xff]
        %v502 = vld [vmem:[#allocation5 + $0x110] sm:$0xff]
        %v503 = vld [vmem:[#allocation5 + $0x118] sm:$0xff]
        %v504 = vld [vmem:[#allocation5 + $0x120] sm:$0xff]
        %v505 = vld [vmem:[#allocation5 + $0x128] sm:$0xff]
        %v506 = vld [vmem:[#allocation5 + $0x130] sm:$0xff]
        %v507 = vld [vmem:[#allocation5 + $0x138] sm:$0xff]
        %v508 = vld [vmem:[#allocation5 + $0x140] sm:$0xff]
        %v509 = vld [vmem:[#allocation5 + $0x148] sm:$0xff]
        %v510 = vld [vmem:[#allocation5 + $0x150] sm:$0xff]
        %v511 = vld [vmem:[#allocation5 + $0x158] sm:$0xff]
        %v512 = vld [vmem:[#allocation5 + $0x160] sm:$0xff]
        %v513 = vld [vmem:[#allocation5 + $0x168] sm:$0xff]
        %v514 = vld [vmem:[#allocation5 + $0x170] sm:$0xff]
        %v515 = vld [vmem:[#allocation5 + $0x178] sm:$0xff]
        %v516 = vld [vmem:[#allocation5 + $0x180] sm:$0xff]
        %v517 = vld [vmem:[#allocation5 + $0x188] sm:$0xff]
        %v518 = vld [vmem:[#allocation5 + $0x190] sm:$0xff]
        %v519 = vld [vmem:[#allocation5 + $0x198] sm:$0xff]
        %v520 = vld [vmem:[#allocation5 + $0x1a0] sm:$0xff]
        %v521 = vld [vmem:[#allocation5 + $0x1a8] sm:$0xff]
        %v522 = vld [vmem:[#allocation5 + $0x1b0] sm:$0xff]
        %v523 = vld [vmem:[#allocation5 + $0x1b8] sm:$0xff]
        %v524 = vld [vmem:[#allocation5 + $0x1c0] sm:$0xff]
        %v525 = vld [vmem:[#allocation5 + $0x1c8] sm:$0xff]
        %v526 = vld [vmem:[#allocation5 + $0x1d0] sm:$0xff]
        %v527 = vld [vmem:[#allocation5 + $0x1d8] sm:$0xff]
        %v528 = vld [vmem:[#allocation5 + $0x1e0] sm:$0xff]
        %v529 = vld [vmem:[#allocation5 + $0x1e8] sm:$0xff]
        %v530 = vld [vmem:[#allocation5 + $0x1f0] sm:$0xff]
        %v531 = vld [vmem:[#allocation5 + $0x1f8] sm:$0xff]
        %v532 = vld [vmem:[#allocation5 + $0x200] sm:$0xff]
        %v533 = vld [vmem:[#allocation5 + $0x208] sm:$0xff]
        %v534 = vld [vmem:[#allocation5 + $0x210] sm:$0xff]
        %v535 = vld [vmem:[#allocation5 + $0x218] sm:$0xff]
        %v536 = vld [vmem:[#allocation5 + $0x220] sm:$0xff]
        %v537 = vld [vmem:[#allocation5 + $0x228] sm:$0xff]
        %v538 = vld [vmem:[#allocation5 + $0x230] sm:$0xff]
        %v539 = vld [vmem:[#allocation5 + $0x238] sm:$0xff]
        %v540 = vld [vmem:[#allocation5 + $0x240] sm:$0xff]
        %v541 = vld [vmem:[#allocation5 + $0x248] sm:$0xff]
        %v542 = vld [vmem:[#allocation5 + $0x250] sm:$0xff]
        %v543 = vld [vmem:[#allocation5 + $0x258] sm:$0xff]
        %v544 = vld [vmem:[#allocation5 + $0x260] sm:$0xff]
        %v545 = vld [vmem:[#allocation5 + $0x268] sm:$0xff]
        %v546 = vld [vmem:[#allocation5 + $0x270] sm:$0xff]
        %v547 = vld [vmem:[#allocation5 + $0x278] sm:$0xff]
        %v548 = vld [vmem:[#allocation5 + $0x280] sm:$0xff]
        %v549 = vld [vmem:[#allocation5 + $0x288] sm:$0xff]
        %v550 = vld [vmem:[#allocation5 + $0x290] sm:$0xff]
        %v551 = vld [vmem:[#allocation5 + $0x298] sm:$0xff]
        %v552 = vld [vmem:[#allocation5 + $0x2a0] sm:$0xff]
        %v553 = vld [vmem:[#allocation5 + $0x2a8] sm:$0xff]
        %v554 = vld [vmem:[#allocation5 + $0x2b0] sm:$0xff]
        %v555 = vld [vmem:[#allocation5 + $0x2b8] sm:$0xff]
        %v556 = vld [vmem:[#allocation5 + $0x2c0] sm:$0xff]
        %v557 = vld [vmem:[#allocation5 + $0x2c8] sm:$0xff]
        %v558 = vld [vmem:[#allocation5 + $0x2d0] sm:$0xff]
        %v559 = vld [vmem:[#allocation5 + $0x2d8] sm:$0xff]
        %v560 = vld [vmem:[#allocation5 + $0x2e0] sm:$0xff]
        %v561 = vld [vmem:[#allocation5 + $0x2e8] sm:$0xff]
        %v562 = vld [vmem:[#allocation5 + $0x2f0] sm:$0xff]
        %v563 = vld [vmem:[#allocation5 + $0x2f8] sm:$0xff]
        %v564 = vld [vmem:[#allocation5 + $0x300] sm:$0xff]
        %v565 = vld [vmem:[#allocation5 + $0x308] sm:$0xff]
        %v566 = vld [vmem:[#allocation5 + $0x310] sm:$0xff]
        %v567 = vld [vmem:[#allocation5 + $0x318] sm:$0xff]
        %v568 = vld [vmem:[#allocation5 + $0x320] sm:$0xff]
        %v569 = vld [vmem:[#allocation5 + $0x328] sm:$0xff]
        %v570 = vld [vmem:[#allocation5 + $0x330] sm:$0xff]
        %v571 = vld [vmem:[#allocation5 + $0x338] sm:$0xff]
        %v572 = vld [vmem:[#allocation5 + $0x340] sm:$0xff]
        %v573 = vld [vmem:[#allocation5 + $0x348] sm:$0xff]
        %v574 = vld [vmem:[#allocation5 + $0x350] sm:$0xff]
        %v575 = vld [vmem:[#allocation5 + $0x358] sm:$0xff]
        %v576 = vld [vmem:[#allocation5 + $0x360] sm:$0xff]
        %v577 = vld [vmem:[#allocation5 + $0x368] sm:$0xff]
        %v578 = vld [vmem:[#allocation5 + $0x370] sm:$0xff]
        %v579 = vld [vmem:[#allocation5 + $0x378] sm:$0xff]
        %v580 = vld [vmem:[#allocation5 + $0x380] sm:$0xff]
        %v581 = vld [vmem:[#allocation5 + $0x388] sm:$0xff]
        %v582 = vld [vmem:[#allocation5 + $0x390] sm:$0xff]
        %v583 = vld [vmem:[#allocation5 + $0x398] sm:$0xff]
        %v584 = vld [vmem:[#allocation5 + $0x3a0] sm:$0xff]
        %v585 = vld [vmem:[#allocation5 + $0x3a8] sm:$0xff]
        %v586 = vld [vmem:[#allocation5 + $0x3b0] sm:$0xff]
        %v587 = vld [vmem:[#allocation5 + $0x3b8] sm:$0xff]
        %v588 = vld [vmem:[#allocation5 + $0x3c0] sm:$0xff]
        %v589 = vld [vmem:[#allocation5 + $0x3c8] sm:$0xff]
        %v590 = vld [vmem:[#allocation5 + $0x3d0] sm:$0xff]
        %v591 = vld [vmem:[#allocation5 + $0x3d8] sm:$0xff]
        %v592 = vld [vmem:[#allocation5 + $0x3e0] sm:$0xff]
        %v593 = vld [vmem:[#allocation5 + $0x3e8] sm:$0xff]
        %v594 = vld [vmem:[#allocation5 + $0x3f0] sm:$0xff]
        %v595 = vld [vmem:[#allocation5 + $0x3f8] sm:$0xff]
        %v596 = vld [vmem:[#allocation5 + $0x400] sm:$0xff]
        %v597 = vld [vmem:[#allocation5 + $0x408] sm:$0xff]
        %v598 = vld [vmem:[#allocation5 + $0x410] sm:$0xff]
        %v599 = vld [vmem:[#allocation5 + $0x418] sm:$0xff]
        %v600 = vld [vmem:[#allocation5 + $0x420] sm:$0xff]
        %v601 = vld [vmem:[#allocation5 + $0x428] sm:$0xff]
        %v602 = vld [vmem:[#allocation5 + $0x430] sm:$0xff]
        %v603 = vld [vmem:[#allocation5 + $0x438] sm:$0xff]
        %v604 = vld [vmem:[#allocation5 + $0x440] sm:$0xff]
        %v605 = vld [vmem:[#allocation5 + $0x448] sm:$0xff]
        %v606 = vld [vmem:[#allocation5 + $0x450] sm:$0xff]
        %v607 = vld [vmem:[#allocation5 + $0x458] sm:$0xff]
        %v608 = vld [vmem:[#allocation5 + $0x460] sm:$0xff]
        %v609 = vld [vmem:[#allocation5 + $0x468] sm:$0xff]
        %v610 = vld [vmem:[#allocation5 + $0x470] sm:$0xff]
        %v611 = vld [vmem:[#allocation5 + $0x478] sm:$0xff]
        %612 = vmatprep.subr.mxu0 0.0
        %613 = vmatpush1.msra.mxu0 %v468
        %614 = vmatprep.subr.mxu0 0.0
        %615 = vmatpush1.msra.mxu0 %v469
        %616 = vmatprep.subr.mxu0 0.0
        %617 = vmatpush1.msra.mxu0 %v470
        %618 = vmatprep.subr.mxu0 0.0
        %619 = vmatpush1.msra.mxu0 %v471
        %620 = vmatprep.subr.mxu0 0.0
        %621 = vmatpush1.msra.mxu0 %v472
        %622 = vmatprep.subr.mxu0 0.0
        %623 = vmatpush1.msra.mxu0 %v473
        %624 = vmatprep.subr.mxu0 0.0
        %625 = vmatpush1.msra.mxu0 %v474
        %626 = vmatprep.subr.mxu0 0.0
        %627 = vmatpush1.msra.mxu0 %v475
        %628 = vmatprep.subr.mxu0 0.0
        %629 = vmatpush1.msra.mxu0 %v476
        %630 = vmatprep.subr.mxu0 0.0
        %631 = vmatpush1.msra.mxu0 %v477
        %632 = vmatprep.subr.mxu0 0.0
        %633 = vmatpush1.msra.mxu0 %v478
        %634 = vmatprep.subr.mxu0 0.0
        %635 = vmatpush1.msra.mxu0 %v479
        %636 = vmatprep.subr.mxu0 0.0
        %637 = vmatpush1.msra.mxu0 %v480
        %638 = vmatprep.subr.mxu0 0.0
        %639 = vmatpush1.msra.mxu0 %v481
        %640 = vmatprep.subr.mxu0 0.0
        %641 = vmatpush1.msra.mxu0 %v482
        %642 = vmatprep.subr.mxu0 0.0
        %643 = vmatpush1.msra.mxu0 %v483
        %644 = vmatprep.subr.mxu0 0.0
        %645 = vmatpush1.msra.mxu0 %v484
        %646 = vmatprep.subr.mxu0 0.0
        %647 = vmatpush1.msra.mxu0 %v485
        %648 = vmatprep.subr.mxu0 0.0
        %649 = vmatpush1.msra.mxu0 %v486
        %650 = vmatprep.subr.mxu0 0.0
        %651 = vmatpush1.msra.mxu0 %v487
        %652 = vmatprep.subr.mxu0 0.0
        %653 = vmatpush1.msra.mxu0 %v488
        %654 = vmatprep.subr.mxu0 0.0
        %655 = vmatpush1.msra.mxu0 %v489
        %656 = vmatprep.subr.mxu0 0.0
        %657 = vmatpush1.msra.mxu0 %v490
        %658 = vmatprep.subr.mxu0 0.0
        %659 = vmatpush1.msra.mxu0 %v491
        %660 = vmatprep.subr.mxu0 0.0
        %661 = vmatpush1.msra.mxu0 %v492
        %662 = vmatprep.subr.mxu0 0.0
        %663 = vmatpush1.msra.mxu0 %v493
        %664 = vmatprep.subr.mxu0 0.0
        %665 = vmatpush1.msra.mxu0 %v494
        %666 = vmatprep.subr.mxu0 0.0
        %667 = vmatpush1.msra.mxu0 %v495
        %668 = vmatprep.subr.mxu0 0.0
        %669 = vmatpush1.msra.mxu0 %v496
        %670 = vmatprep.subr.mxu0 0.0
        %671 = vmatpush1.msra.mxu0 %v497
        %672 = vmatprep.subr.mxu0 0.0
        %673 = vmatpush1.msra.mxu0 %v498
        %674 = vmatprep.subr.mxu0 0.0
        %675 = vmatpush1.msra.mxu0 %v499
        %676 = vmatprep.mubr.f32.mxu0 %v397
        %677 = vmatmul.mubr.f32.gmra.mrb[0].mxu0 %v396
        %v678 = vpop.f32.mrb[0].mxu0
        %v679 = vadd.f32 0.0, %v678
        %v680 = vpop.f32.mrb[0].mxu0
        %681 = vmatprep.mubr.f32.mxu0 %v406
        %682 = vmatmul.mubr.f32.gmra.mrb[0].mxu0 %v405
        %v683 = vpop.f32.mrb[0].mxu0
        %v684 = vadd.f32 0.0, %v683
        %v685 = vpop.f32.mrb[0].mxu0
        %686 = vmatprep.mubr.f32.mxu0 %v415
        %687 = vmatmul.mubr.f32.gmra.mrb[0].mxu0 %v414
        %v688 = vpop.f32.mrb[0].mxu0
        %v689 = vadd.f32 0.0, %v688
        %v690 = vpop.f32.mrb[0].mxu0
        %691 = vmatprep.mubr.f32.mxu0 %v424
        %692 = vmatmul.mubr.f32.gmra.mrb[0].mxu0 %v423
        %v693 = vpop.f32.mrb[0].mxu0
        %v694 = vadd.f32 0.0, %v693
        %v695 = vpop.f32.mrb[0].mxu0
        %696 = vmatprep.mubr.f32.mxu0 %v433
        %697 = vmatmul.mubr.f32.gmra.mrb[0].mxu0 %v432
        %v698 = vpop.f32.mrb[0].mxu0
        %v699 = vadd.f32 0.0, %v698
        %v700 = vpop.f32.mrb[0].mxu0
        %701 = vmatprep.mubr.f32.mxu0 %v442
        %702 = vmatmul.mubr.f32.gmra.mrb[0].mxu0 %v441
        %v703 = vpop.f32.mrb[0].mxu0
        %v704 = vadd.f32 0.0, %v703
        %v705 = vpop.f32.mrb[0].mxu0
        %706 = vmatprep.mubr.f32.mxu0 %v451
        %707 = vmatmul.mubr.f32.gmra.mrb[0].mxu0 %v450
        %v708 = vpop.f32.mrb[0].mxu0
        %v709 = vadd.f32 0.0, %v708
        %v710 = vpop.f32.mrb[0].mxu0
        %711 = vmatprep.mubr.f32.mxu0 %v460
        %712 = vmatmul.mubr.f32.gmra.mrb[0].mxu0 %v459
        %v713 = vpop.f32.mrb[0].mxu0
        %v714 = vadd.f32 0.0, %v713
        %v715 = vpop.f32.mrb[0].mxu0
        %716 = vdwg.mxu0
        %717 = vmatprep.subr.mxu0 0.0
        %718 = vmatpush1.msra.mxu0 %v500
        %719 = vmatprep.subr.mxu0 0.0
        %720 = vmatpush1.msra.mxu0 %v501
        %721 = vmatprep.subr.mxu0 0.0
        %722 = vmatpush1.msra.mxu0 %v502
        %723 = vmatprep.subr.mxu0 0.0
        %724 = vmatpush1.msra.mxu0 %v503
        %725 = vmatprep.subr.mxu0 0.0
        %726 = vmatpush1.msra.mxu0 %v504
        %727 = vmatprep.subr.mxu0 0.0
        %728 = vmatpush1.msra.mxu0 %v505
        %729 = vmatprep.subr.mxu0 0.0
        %730 = vmatpush1.msra.mxu0 %v506
        %731 = vmatprep.subr.mxu0 0.0
        %732 = vmatpush1.msra.mxu0 %v507
        %733 = vmatprep.subr.mxu0 0.0
        %734 = vmatpush1.msra.mxu0 %v508
        %735 = vmatprep.subr.mxu0 0.0
        %736 = vmatpush1.msra.mxu0 %v509
        %737 = vmatprep.subr.mxu0 0.0
        %738 = vmatpush1.msra.mxu0 %v510
        %739 = vmatprep.subr.mxu0 0.0
        %740 = vmatpush1.msra.mxu0 %v511
        %741 = vmatprep.subr.mxu0 0.0
        %742 = vmatpush1.msra.mxu0 %v512
        %743 = vmatprep.subr.mxu0 0.0
        %744 = vmatpush1.msra.mxu0 %v513
        %745 = vmatprep.subr.mxu0 0.0
        %746 = vmatpush1.msra.mxu0 %v514
        %747 = vmatprep.subr.mxu0 0.0
        %748 = vmatpush1.msra.mxu0 %v515
        %749 = vmatprep.subr.mxu0 0.0
        %750 = vmatpush1.msra.mxu0 %v516
        %751 = vmatprep.subr.mxu0 0.0
        %752 = vmatpush1.msra.mxu0 %v517
        %753 = vmatprep.subr.mxu0 0.0
        %754 = vmatpush1.msra.mxu0 %v518
        %755 = vmatprep.subr.mxu0 0.0
        %756 = vmatpush1.msra.mxu0 %v519
        %757 = vmatprep.subr.mxu0 0.0
        %758 = vmatpush1.msra.mxu0 %v520
        %759 = vmatprep.subr.mxu0 0.0
        %760 = vmatpush1.msra.mxu0 %v521
        %761 = vmatprep.subr.mxu0 0.0
        %762 = vmatpush1.msra.mxu0 %v522
        %763 = vmatprep.subr.mxu0 0.0
        %764 = vmatpush1.msra.mxu0 %v523
        %765 = vmatprep.subr.mxu0 0.0
        %766 = vmatpush1.msra.mxu0 %v524
        %767 = vmatprep.subr.mxu0 0.0
        %768 = vmatpush1.msra.mxu0 %v525
        %769 = vmatprep.subr.mxu0 0.0
        %770 = vmatpush1.msra.mxu0 %v526
        %771 = vmatprep.subr.mxu0 0.0
        %772 = vmatpush1.msra.mxu0 %v527
        %773 = vmatprep.subr.mxu0 0.0
        %774 = vmatpush1.msra.mxu0 %v528
        %775 = vmatprep.subr.mxu0 0.0
        %776 = vmatpush1.msra.mxu0 %v529
        %777 = vmatprep.subr.mxu0 0.0
        %778 = vmatpush1.msra.mxu0 %v530
        %779 = vmatprep.subr.mxu0 0.0
        %780 = vmatpush1.msra.mxu0 %v531
        %781 = vmatprep.mubr.f32.mxu0 %v399
        %782 = vmatmul.mubr.f32.gmra.mrb[0].mxu0 %v398
        %v783 = vpop.f32.mrb[0].mxu0
        %v784 = vadd.f32 %v679, %v783
        %v785 = vpop.f32.mrb[0].mxu0
        %786 = vmatprep.mubr.f32.mxu0 %v408
        %787 = vmatmul.mubr.f32.gmra.mrb[0].mxu0 %v407
        %v788 = vpop.f32.mrb[0].mxu0
        %v789 = vadd.f32 %v684, %v788
        %v790 = vpop.f32.mrb[0].mxu0
        %791 = vmatprep.mubr.f32.mxu0 %v417
        %792 = vmatmul.mubr.f32.gmra.mrb[0].mxu0 %v416
        %v793 = vpop.f32.mrb[0].mxu0
        %v794 = vadd.f32 %v689, %v793
        %v795 = vpop.f32.mrb[0].mxu0
        %796 = vmatprep.mubr.f32.mxu0 %v426
        %797 = vmatmul.mubr.f32.gmra.mrb[0].mxu0 %v425
        %v798 = vpop.f32.mrb[0].mxu0
        %v799 = vadd.f32 %v694, %v798
        %v800 = vpop.f32.mrb[0].mxu0
        %801 = vmatprep.mubr.f32.mxu0 %v435
        %802 = vmatmul.mubr.f32.gmra.mrb[0].mxu0 %v434
        %v803 = vpop.f32.mrb[0].mxu0
        %v804 = vadd.f32 %v699, %v803
        %v805 = vpop.f32.mrb[0].mxu0
        %806 = vmatprep.mubr.f32.mxu0 %v444
        %807 = vmatmul.mubr.f32.gmra.mrb[0].mxu0 %v443
        %v808 = vpop.f32.mrb[0].mxu0
        %v809 = vadd.f32 %v704, %v808
        %v810 = vpop.f32.mrb[0].mxu0
        %811 = vmatprep.mubr.f32.mxu0 %v453
        %812 = vmatmul.mubr.f32.gmra.mrb[0].mxu0 %v452
        %v813 = vpop.f32.mrb[0].mxu0
        %v814 = vadd.f32 %v709, %v813
        %v815 = vpop.f32.mrb[0].mxu0
        %816 = vmatprep.mubr.f32.mxu0 %v462
        %817 = vmatmul.mubr.f32.gmra.mrb[0].mxu0 %v461
        %v818 = vpop.f32.mrb[0].mxu0
        %v819 = vadd.f32 %v714, %v818
        %v820 = vpop.f32.mrb[0].mxu0
        %821 = vdwg.mxu0
        %822 = vmatprep.subr.mxu0 0.0
        %823 = vmatpush1.msra.mxu0 %v532
        %824 = vmatprep.subr.mxu0 0.0
        %825 = vmatpush1.msra.mxu0 %v533
        %826 = vmatprep.subr.mxu0 0.0
        %827 = vmatpush1.msra.mxu0 %v534
        %828 = vmatprep.subr.mxu0 0.0
        %829 = vmatpush1.msra.mxu0 %v535
        %830 = vmatprep.subr.mxu0 0.0
        %831 = vmatpush1.msra.mxu0 %v536
        %832 = vmatprep.subr.mxu0 0.0
        %833 = vmatpush1.msra.mxu0 %v537
        %834 = vmatprep.subr.mxu0 0.0
        %835 = vmatpush1.msra.mxu0 %v538
        %836 = vmatprep.subr.mxu0 0.0
        %837 = vmatpush1.msra.mxu0 %v539
        %838 = vmatprep.subr.mxu0 0.0
        %839 = vmatpush1.msra.mxu0 %v540
        %840 = vmatprep.subr.mxu0 0.0
        %841 = vmatpush1.msra.mxu0 %v541
        %842 = vmatprep.subr.mxu0 0.0
        %843 = vmatpush1.msra.mxu0 %v542
        %844 = vmatprep.subr.mxu0 0.0
        %845 = vmatpush1.msra.mxu0 %v543
        %846 = vmatprep.subr.mxu0 0.0
        %847 = vmatpush1.msra.mxu0 %v544
        %848 = vmatprep.subr.mxu0 0.0
        %849 = vmatpush1.msra.mxu0 %v545
        %850 = vmatprep.subr.mxu0 0.0
        %851 = vmatpush1.msra.mxu0 %v546
        %852 = vmatprep.subr.mxu0 0.0
        %853 = vmatpush1.msra.mxu0 %v547
        %854 = vmatprep.subr.mxu0 0.0
        %855 = vmatpush1.msra.mxu0 %v548
        %856 = vmatprep.subr.mxu0 0.0
        %857 = vmatpush1.msra.mxu0 %v549
        %858 = vmatprep.subr.mxu0 0.0
        %859 = vmatpush1.msra.mxu0 %v550
        %860 = vmatprep.subr.mxu0 0.0
        %861 = vmatpush1.msra.mxu0 %v551
        %862 = vmatprep.subr.mxu0 0.0
        %863 = vmatpush1.msra.mxu0 %v552
        %864 = vmatprep.subr.mxu0 0.0
        %865 = vmatpush1.msra.mxu0 %v553
        %866 = vmatprep.subr.mxu0 0.0
        %867 = vmatpush1.msra.mxu0 %v554
        %868 = vmatprep.subr.mxu0 0.0
        %869 = vmatpush1.msra.mxu0 %v555
        %870 = vmatprep.subr.mxu0 0.0
        %871 = vmatpush1.msra.mxu0 %v556
        %872 = vmatprep.subr.mxu0 0.0
        %873 = vmatpush1.msra.mxu0 %v557
        %874 = vmatprep.subr.mxu0 0.0
        %875 = vmatpush1.msra.mxu0 %v558
        %876 = vmatprep.subr.mxu0 0.0
        %877 = vmatpush1.msra.mxu0 %v559
        %878 = vmatprep.subr.mxu0 0.0
        %879 = vmatpush1.msra.mxu0 %v560
        %880 = vmatprep.subr.mxu0 0.0
        %881 = vmatpush1.msra.mxu0 %v561
        %882 = vmatprep.subr.mxu0 0.0
        %883 = vmatpush1.msra.mxu0 %v562
        %884 = vmatprep.subr.mxu0 0.0
        %885 = vmatpush1.msra.mxu0 %v563
        %886 = vmatprep.mubr.f32.mxu0 %v401
        %887 = vmatmul.mubr.f32.gmra.mrb[0].mxu0 %v400
        %v888 = vpop.f32.mrb[0].mxu0
        %v889 = vadd.f32 %v784, %v888
        %v890 = vpop.f32.mrb[0].mxu0
        %891 = vmatprep.mubr.f32.mxu0 %v410
        %892 = vmatmul.mubr.f32.gmra.mrb[0].mxu0 %v409
        %v893 = vpop.f32.mrb[0].mxu0
        %v894 = vadd.f32 %v789, %v893
        %v895 = vpop.f32.mrb[0].mxu0
        %896 = vmatprep.mubr.f32.mxu0 %v419
        %897 = vmatmul.mubr.f32.gmra.mrb[0].mxu0 %v418
        %v898 = vpop.f32.mrb[0].mxu0
        %v899 = vadd.f32 %v794, %v898
        %v900 = vpop.f32.mrb[0].mxu0
        %901 = vmatprep.mubr.f32.mxu0 %v428
        %902 = vmatmul.mubr.f32.gmra.mrb[0].mxu0 %v427
        %v903 = vpop.f32.mrb[0].mxu0
        %v904 = vadd.f32 %v799, %v903
        %v905 = vpop.f32.mrb[0].mxu0
        %906 = vmatprep.mubr.f32.mxu0 %v437
        %907 = vmatmul.mubr.f32.gmra.mrb[0].mxu0 %v436
        %v908 = vpop.f32.mrb[0].mxu0
        %v909 = vadd.f32 %v804, %v908
        %v910 = vpop.f32.mrb[0].mxu0
        %911 = vmatprep.mubr.f32.mxu0 %v446
        %912 = vmatmul.mubr.f32.gmra.mrb[0].mxu0 %v445
        %v913 = vpop.f32.mrb[0].mxu0
        %v914 = vadd.f32 %v809, %v913
        %v915 = vpop.f32.mrb[0].mxu0
        %916 = vmatprep.mubr.f32.mxu0 %v455
        %917 = vmatmul.mubr.f32.gmra.mrb[0].mxu0 %v454
        %v918 = vpop.f32.mrb[0].mxu0
        %v919 = vadd.f32 %v814, %v918
        %v920 = vpop.f32.mrb[0].mxu0
        %921 = vmatprep.mubr.f32.mxu0 %v464
        %922 = vmatmul.mubr.f32.gmra.mrb[0].mxu0 %v463
        %v923 = vpop.f32.mrb[0].mxu0
        %v924 = vadd.f32 %v819, %v923
        %v925 = vpop.f32.mrb[0].mxu0
        %926 = vdwg.mxu0
        %927 = vmatprep.subr.mxu0 0.0
        %928 = vmatpush1.msra.mxu0 %v564
        %929 = vmatprep.subr.mxu0 0.0
        %930 = vmatpush1.msra.mxu0 %v565
        %931 = vmatprep.subr.mxu0 0.0
        %932 = vmatpush1.msra.mxu0 %v566
        %933 = vmatprep.subr.mxu0 0.0
        %934 = vmatpush1.msra.mxu0 %v567
        %935 = vmatprep.subr.mxu0 0.0
        %936 = vmatpush1.msra.mxu0 %v568
        %937 = vmatprep.subr.mxu0 0.0
        %938 = vmatpush1.msra.mxu0 %v569
        %939 = vmatprep.subr.mxu0 0.0
        %940 = vmatpush1.msra.mxu0 %v570
        %941 = vmatprep.subr.mxu0 0.0
        %942 = vmatpush1.msra.mxu0 %v571
        %943 = vmatprep.subr.mxu0 0.0
        %944 = vmatpush1.msra.mxu0 %v572
        %945 = vmatprep.subr.mxu0 0.0
        %946 = vmatpush1.msra.mxu0 %v573
        %947 = vmatprep.subr.mxu0 0.0
        %948 = vmatpush1.msra.mxu0 %v574
        %949 = vmatprep.subr.mxu0 0.0
        %950 = vmatpush1.msra.mxu0 %v575
        %951 = vmatprep.subr.mxu0 0.0
        %952 = vmatpush1.msra.mxu0 %v576
        %953 = vmatprep.subr.mxu0 0.0
        %954 = vmatpush1.msra.mxu0 %v577
        %955 = vmatprep.subr.mxu0 0.0
        %956 = vmatpush1.msra.mxu0 %v578
        %957 = vmatprep.subr.mxu0 0.0
        %958 = vmatpush1.msra.mxu0 %v579
        %959 = vmatprep.subr.mxu0 0.0
        %960 = vmatpush1.msra.mxu0 %v580
        %961 = vmatprep.subr.mxu0 0.0
        %962 = vmatpush1.msra.mxu0 %v581
        %963 = vmatprep.subr.mxu0 0.0
        %964 = vmatpush1.msra.mxu0 %v582
        %965 = vmatprep.subr.mxu0 0.0
        %966 = vmatpush1.msra.mxu0 %v583
        %967 = vmatprep.subr.mxu0 0.0
        %968 = vmatpush1.msra.mxu0 %v584
        %969 = vmatprep.subr.mxu0 0.0
        %970 = vmatpush1.msra.mxu0 %v585
        %971 = vmatprep.subr.mxu0 0.0
        %972 = vmatpush1.msra.mxu0 %v586
        %973 = vmatprep.subr.mxu0 0.0
        %974 = vmatpush1.msra.mxu0 %v587
        %975 = vmatprep.subr.mxu0 0.0
        %976 = vmatpush1.msra.mxu0 %v588
        %977 = vmatprep.subr.mxu0 0.0
        %978 = vmatpush1.msra.mxu0 %v589
        %979 = vmatprep.subr.mxu0 0.0
        %980 = vmatpush1.msra.mxu0 %v590
        %981 = vmatprep.subr.mxu0 0.0
        %982 = vmatpush1.msra.mxu0 %v591
        %983 = vmatprep.subr.mxu0 0.0
        %984 = vmatpush1.msra.mxu0 %v592
        %985 = vmatprep.subr.mxu0 0.0
        %986 = vmatpush1.msra.mxu0 %v593
        %987 = vmatprep.subr.mxu0 0.0
        %988 = vmatpush1.msra.mxu0 %v594
        %989 = vmatprep.subr.mxu0 0.0
        %990 = vmatpush1.msra.mxu0 %v595
        %991 = vmatprep.mubr.f32.mxu0 %v403
        %992 = vmatmul.mubr.f32.gmra.mrb[0].mxu0 %v402
        %v993 = vpop.f32.mrb[0].mxu0
        %v994 = vadd.f32 %v889, %v993
        %v995 = vpop.f32.mrb[0].mxu0
        %996 = vmatprep.mubr.f32.mxu0 %v412
        %997 = vmatmul.mubr.f32.gmra.mrb[0].mxu0 %v411
        %v998 = vpop.f32.mrb[0].mxu0
        %v999 = vadd.f32 %v894, %v998
        %v1000 = vpop.f32.mrb[0].mxu0
        %1001 = vmatprep.mubr.f32.mxu0 %v421
        %1002 = vmatmul.mubr.f32.gmra.mrb[0].mxu0 %v420
        %v1003 = vpop.f32.mrb[0].mxu0
        %v1004 = vadd.f32 %v899, %v1003
        %v1005 = vpop.f32.mrb[0].mxu0
        %1006 = vmatprep.mubr.f32.mxu0 %v430
        %1007 = vmatmul.mubr.f32.gmra.mrb[0].mxu0 %v429
        %v1008 = vpop.f32.mrb[0].mxu0
        %v1009 = vadd.f32 %v904, %v1008
        %v1010 = vpop.f32.mrb[0].mxu0
        %1011 = vmatprep.mubr.f32.mxu0 %v439
        %1012 = vmatmul.mubr.f32.gmra.mrb[0].mxu0 %v438
        %v1013 = vpop.f32.mrb[0].mxu0
        %v1014 = vadd.f32 %v909, %v1013
        %v1015 = vpop.f32.mrb[0].mxu0
        %1016 = vmatprep.mubr.f32.mxu0 %v448
        %1017 = vmatmul.mubr.f32.gmra.mrb[0].mxu0 %v447
        %v1018 = vpop.f32.mrb[0].mxu0
        %v1019 = vadd.f32 %v914, %v1018
        %v1020 = vpop.f32.mrb[0].mxu0
        %1021 = vmatprep.mubr.f32.mxu0 %v457
        %1022 = vmatmul.mubr.f32.gmra.mrb[0].mxu0 %v456
        %v1023 = vpop.f32.mrb[0].mxu0
        %v1024 = vadd.f32 %v919, %v1023
        %v1025 = vpop.f32.mrb[0].mxu0
        %1026 = vmatprep.mubr.f32.mxu0 %v466
        %1027 = vmatmul.mubr.f32.gmra.mrb[0].mxu0 %v465
        %v1028 = vpop.f32.mrb[0].mxu0
        %v1029 = vadd.f32 %v924, %v1028
        %v1030 = vpop.f32.mrb[0].mxu0
        %1031 = vdwg.mxu0
        %1032 = vmatprep.subr.mxu0 0.0
        %1033 = vmatpush1.msra.mxu0 %v596
        %1034 = vmatprep.subr.mxu0 0.0
        %1035 = vmatpush1.msra.mxu0 %v597
        %1036 = vmatprep.subr.mxu0 0.0
        %1037 = vmatpush1.msra.mxu0 %v598
        %1038 = vmatprep.subr.mxu0 0.0
        %1039 = vmatpush1.msra.mxu0 %v599
        %1040 = vmatprep.subr.mxu0 0.0
        %1041 = vmatpush1.msra.mxu0 %v600
        %1042 = vmatprep.subr.mxu0 0.0
        %1043 = vmatpush1.msra.mxu0 %v601
        %1044 = vmatprep.subr.mxu0 0.0
        %1045 = vmatpush1.msra.mxu0 %v602
        %1046 = vmatprep.subr.mxu0 0.0
        %1047 = vmatpush1.msra.mxu0 %v603
        %1048 = vmatprep.subr.mxu0 0.0
        %1049 = vmatpush1.msra.mxu0 %v604
        %1050 = vmatprep.subr.mxu0 0.0
        %1051 = vmatpush1.msra.mxu0 %v605
        %1052 = vmatprep.subr.mxu0 0.0
        %1053 = vmatpush1.msra.mxu0 %v606
        %1054 = vmatprep.subr.mxu0 0.0
        %1055 = vmatpush1.msra.mxu0 %v607
        %1056 = vmatprep.subr.mxu0 0.0
        %1057 = vmatpush1.msra.mxu0 %v608
        %1058 = vmatprep.subr.mxu0 0.0
        %1059 = vmatpush1.msra.mxu0 %v609
        %1060 = vmatprep.subr.mxu0 0.0
        %1061 = vmatpush1.msra.mxu0 %v610
        %1062 = vmatprep.subr.mxu0 0.0
        %1063 = vmatpush1.msra.mxu0 %v611
        %1064 = vmatprep.subr.mxu0 0.0
        %1065 = vmatpush1.msra.mxu0 0.0
        %1066 = vmatprep.subr.mxu0 0.0
        %1067 = vmatpush1.msra.mxu0 0.0
        %1068 = vmatprep.subr.mxu0 0.0
        %1069 = vmatpush1.msra.mxu0 0.0
        %1070 = vmatprep.subr.mxu0 0.0
        %1071 = vmatpush1.msra.mxu0 0.0
        %1072 = vmatprep.subr.mxu0 0.0
        %1073 = vmatpush1.msra.mxu0 0.0
        %1074 = vmatprep.subr.mxu0 0.0
        %1075 = vmatpush1.msra.mxu0 0.0
        %1076 = vmatprep.subr.mxu0 0.0
        %1077 = vmatpush1.msra.mxu0 0.0
        %1078 = vmatprep.subr.mxu0 0.0
        %1079 = vmatpush1.msra.mxu0 0.0
        %1080 = vmatprep.subr.mxu0 0.0
        %1081 = vmatpush1.msra.mxu0 0.0
        %1082 = vmatprep.subr.mxu0 0.0
        %1083 = vmatpush1.msra.mxu0 0.0
        %1084 = vmatprep.subr.mxu0 0.0
        %1085 = vmatpush1.msra.mxu0 0.0
        %1086 = vmatprep.subr.mxu0 0.0
        %1087 = vmatpush1.msra.mxu0 0.0
        %1088 = vmatprep.subr.mxu0 0.0
        %1089 = vmatpush1.msra.mxu0 0.0
        %1090 = vmatprep.subr.mxu0 0.0
        %1091 = vmatpush1.msra.mxu0 0.0
        %1092 = vmatprep.subr.mxu0 0.0
        %1093 = vmatpush1.msra.mxu0 0.0
        %1094 = vmatprep.subr.mxu0 0.0
        %1095 = vmatpush1.msra.mxu0 0.0
        %1096 = vmatprep.mubr.f32.mxu0 0.0
        %1097 = vmatmul.mubr.f32.gmra.mrb[0].mxu0 %v404
        %v1098 = vpop.f32.mrb[0].mxu0
        %v1099 = vadd.f32 %v994, %v1098
        %v1100 = vpop.f32.mrb[0].mxu0
        %1101 = vmatprep.mubr.f32.mxu0 0.0
        %1102 = vmatmul.mubr.f32.gmra.mrb[0].mxu0 %v413
        %v1103 = vpop.f32.mrb[0].mxu0
        %v1104 = vadd.f32 %v999, %v1103
        %v1105 = vpop.f32.mrb[0].mxu0
        %1106 = vmatprep.mubr.f32.mxu0 0.0
        %1107 = vmatmul.mubr.f32.gmra.mrb[0].mxu0 %v422
        %v1108 = vpop.f32.mrb[0].mxu0
        %v1109 = vadd.f32 %v1004, %v1108
        %v1110 = vpop.f32.mrb[0].mxu0
        %1111 = vmatprep.mubr.f32.mxu0 0.0
        %1112 = vmatmul.mubr.f32.gmra.mrb[0].mxu0 %v431
        %v1113 = vpop.f32.mrb[0].mxu0
        %v1114 = vadd.f32 %v1009, %v1113
        %v1115 = vpop.f32.mrb[0].mxu0
        %1116 = vmatprep.mubr.f32.mxu0 0.0
        %1117 = vmatmul.mubr.f32.gmra.mrb[0].mxu0 %v440
        %v1118 = vpop.f32.mrb[0].mxu0
        %v1119 = vadd.f32 %v1014, %v1118
        %v1120 = vpop.f32.mrb[0].mxu0
        %1121 = vmatprep.mubr.f32.mxu0 0.0
        %1122 = vmatmul.mubr.f32.gmra.mrb[0].mxu0 %v449
        %v1123 = vpop.f32.mrb[0].mxu0
        %v1124 = vadd.f32 %v1019, %v1123
        %v1125 = vpop.f32.mrb[0].mxu0
        %1126 = vmatprep.mubr.f32.mxu0 0.0
        %1127 = vmatmul.mubr.f32.gmra.mrb[0].mxu0 %v458
        %v1128 = vpop.f32.mrb[0].mxu0
        %v1129 = vadd.f32 %v1024, %v1128
        %v1130 = vpop.f32.mrb[0].mxu0
        %1131 = vmatprep.mubr.f32.mxu0 0.0
        %1132 = vmatmul.mubr.f32.gmra.mrb[0].mxu0 %v467
        %v1133 = vpop.f32.mrb[0].mxu0
        %v1134 = vadd.f32 %v1029, %v1133
        %v1135 = vpop.f32.mrb[0].mxu0
        %1136 = vdwg.mxu0
        %1137 = vst [vmem:[%s370] sm:$0xff] %v1099
        %1138 = vst [vmem:[%s370 + $0x8] sm:$0xff] %v1104
        %1139 = vst [vmem:[%s370 + $0x10] sm:$0xff] %v1109
        %1140 = vst [vmem:[%s370 + $0x18] sm:$0xff] %v1114
        %1141 = vst [vmem:[%s370 + $0x20] sm:$0xff] %v1119
        %1142 = vst [vmem:[%s370 + $0x28] sm:$0xff] %v1124
        %1143 = vst [vmem:[%s370 + $0x30] sm:$0xff] %v1129
        %1144 = vst [vmem:[%s370 + $0x38] sm:$0xff] %v1134
        %v1145 = vadd.f32 %v1099, %v1104
        %v1146 = vadd.f32 %v1145, %v1109
        %v1147 = vadd.f32 %v1146, %v1114
        %v1148 = vadd.f32 %v1147, %v1119
        %v1149 = vadd.f32 %v1148, %v1124
        %v1150 = vadd.f32 %v1149, %v1129
        %v1151 = vadd.f32 %v1150, %v1134
        %v1152 = vrot.slane %v1151, 4
        %v1153 = vadd.f32 %v1151, %v1152
        %v1154 = vrot.slane %v1153, 2
        %v1155 = vadd.f32 %v1153, %v1154
        %v1156 = vrot.slane %v1155, 1
        %v1157 = vadd.f32 %v1155, %v1156
        %v1158 = vmul.f32 %v1099, %v1099
        %v1159 = vmul.f32 %v1104, %v1104
        %v1160 = vmul.f32 %v1109, %v1109
        %v1161 = vmul.f32 %v1114, %v1114
        %v1162 = vmul.f32 %v1119, %v1119
        %v1163 = vmul.f32 %v1124, %v1124
        %v1164 = vmul.f32 %v1129, %v1129
        %v1165 = vmul.f32 %v1134, %v1134
        %v1166 = vadd.f32 %v1158, %v1159
        %v1167 = vadd.f32 %v1166, %v1160
        %v1168 = vadd.f32 %v1167, %v1161
        %v1169 = vadd.f32 %v1168, %v1162
        %v1170 = vadd.f32 %v1169, %v1163
        %v1171 = vadd.f32 %v1170, %v1164
        %v1172 = vadd.f32 %v1171, %v1165
        %v1173 = vrot.slane %v1172, 4
        %v1174 = vadd.f32 %v1172, %v1173
        %v1175 = vrot.slane %v1174, 2
        %v1176 = vadd.f32 %v1174, %v1175
        %v1177 = vrot.slane %v1176, 1
        %v1178 = vadd.f32 %v1176, %v1177
        %vm1179 = vcmask 1040384
        %v1180 = vsel %vm1179, %v1157, %v1178
        %1181 = vst [vmem:[%s384] sm:$0x3] %v1180
        %v1182 = vld [vmem:[%s337] sm:$0xff]
        %v1183 = vld [vmem:[%s337 + $0x8] sm:$0xff]
        %v1184 = vld [vmem:[%s337 + $0x10] sm:$0xff]
        %v1185 = vld [vmem:[%s337 + $0x18] sm:$0xff]
        %v1186 = vld [vmem:[%s337 + $0x20] sm:$0xff]
        %v1187 = vld [vmem:[%s337 + $0x28] sm:$0xff]
        %v1188 = vld [vmem:[%s337 + $0x30] sm:$0xff]
        %v1189 = vld [vmem:[%s337 + $0x38] sm:$0xff]
        %v1190 = vld [vmem:[#allocation8] sm:$0xff]
        %v1191 = vld [vmem:[#allocation8 + $0x8] sm:$0xff]
        %v1192 = vld [vmem:[#allocation8 + $0x10] sm:$0xff]
        %v1193 = vld [vmem:[#allocation8 + $0x18] sm:$0xff]
        %v1194 = vld [vmem:[#allocation8 + $0x20] sm:$0xff]
        %v1195 = vld [vmem:[#allocation8 + $0x28] sm:$0xff]
        %v1196 = vld [vmem:[#allocation8 + $0x30] sm:$0xff]
        %v1197 = vld [vmem:[#allocation8 + $0x38] sm:$0xff]
        %v1198 = vld [vmem:[#allocation8 + $0x40] sm:$0xff]
        %v1199 = vld [vmem:[#allocation8 + $0x48] sm:$0xff]
        %v1200 = vld [vmem:[#allocation8 + $0x50] sm:$0xff]
        %v1201 = vld [vmem:[#allocation8 + $0x58] sm:$0xff]
        %v1202 = vld [vmem:[#allocation8 + $0x60] sm:$0xff]
        %v1203 = vld [vmem:[#allocation8 + $0x68] sm:$0xff]
        %v1204 = vld [vmem:[#allocation8 + $0x70] sm:$0xff]
        %v1205 = vld [vmem:[#allocation8 + $0x78] sm:$0xff]
        %1206 = vmatprep.subr.mxu0 0.0
        %1207 = vmatpush1.msra.mxu0 %v1190
        %1208 = vmatprep.subr.mxu0 0.0
        %1209 = vmatpush1.msra.mxu0 %v1191
        %1210 = vmatprep.subr.mxu0 0.0
        %1211 = vmatpush1.msra.mxu0 %v1192
        %1212 = vmatprep.subr.mxu0 0.0
        %1213 = vmatpush1.msra.mxu0 %v1193
        %1214 = vmatprep.subr.mxu0 0.0
        %1215 = vmatpush1.msra.mxu0 %v1194
        %1216 = vmatprep.subr.mxu0 0.0
        %1217 = vmatpush1.msra.mxu0 %v1195
        %1218 = vmatprep.subr.mxu0 0.0
        %1219 = vmatpush1.msra.mxu0 %v1196
        %1220 = vmatprep.subr.mxu0 0.0
        %1221 = vmatpush1.msra.mxu0 %v1197
        %1222 = vmatprep.subr.mxu0 0.0
        %1223 = vmatpush1.msra.mxu0 %v1198
        %1224 = vmatprep.subr.mxu0 0.0
        %1225 = vmatpush1.msra.mxu0 %v1199
        %1226 = vmatprep.subr.mxu0 0.0
        %1227 = vmatpush1.msra.mxu0 %v1200
        %1228 = vmatprep.subr.mxu0 0.0
        %1229 = vmatpush1.msra.mxu0 %v1201
        %1230 = vmatprep.subr.mxu0 0.0
        %1231 = vmatpush1.msra.mxu0 %v1202
        %1232 = vmatprep.subr.mxu0 0.0
        %1233 = vmatpush1.msra.mxu0 %v1203
        %1234 = vmatprep.subr.mxu0 0.0
        %1235 = vmatpush1.msra.mxu0 %v1204
        %1236 = vmatprep.subr.mxu0 0.0
        %1237 = vmatpush1.msra.mxu0 %v1205
        %1238 = vmatprep.subr.mxu0 0.0
        %1239 = vmatpush1.msra.mxu0 0.0
        %1240 = vmatprep.subr.mxu0 0.0
        %1241 = vmatpush1.msra.mxu0 0.0
        %1242 = vmatprep.subr.mxu0 0.0
        %1243 = vmatpush1.msra.mxu0 0.0
        %1244 = vmatprep.subr.mxu0 0.0
        %1245 = vmatpush1.msra.mxu0 0.0
        %1246 = vmatprep.subr.mxu0 0.0
        %1247 = vmatpush1.msra.mxu0 0.0
        %1248 = vmatprep.subr.mxu0 0.0
        %1249 = vmatpush1.msra.mxu0 0.0
        %1250 = vmatprep.subr.mxu0 0.0
        %1251 = vmatpush1.msra.mxu0 0.0
        %1252 = vmatprep.subr.mxu0 0.0
        %1253 = vmatpush1.msra.mxu0 0.0
        %1254 = vmatprep.subr.mxu0 0.0
        %1255 = vmatpush1.msra.mxu0 0.0
        %1256 = vmatprep.subr.mxu0 0.0
        %1257 = vmatpush1.msra.mxu0 0.0
        %1258 = vmatprep.subr.mxu0 0.0
        %1259 = vmatpush1.msra.mxu0 0.0
        %1260 = vmatprep.subr.mxu0 0.0
        %1261 = vmatpush1.msra.mxu0 0.0
        %1262 = vmatprep.subr.mxu0 0.0
        %1263 = vmatpush1.msra.mxu0 0.0
        %1264 = vmatprep.subr.mxu0 0.0
        %1265 = vmatpush1.msra.mxu0 0.0
        %1266 = vmatprep.subr.mxu0 0.0
        %1267 = vmatpush1.msra.mxu0 0.0
        %1268 = vmatprep.subr.mxu0 0.0
        %1269 = vmatpush1.msra.mxu0 0.0
        %1270 = vmatprep.mubr.f32.mxu0 0.0
        %1271 = vmatmul.mubr.f32.gmra.mrb[0].mxu0 %v1182
        %v1272 = vpop.f32.mrb[0].mxu0
        %v1273 = vadd.f32 0.0, %v1272
        %v1274 = vpop.f32.mrb[0].mxu0
        %1275 = vmatprep.mubr.f32.mxu0 0.0
        %1276 = vmatmul.mubr.f32.gmra.mrb[0].mxu0 %v1183
        %v1277 = vpop.f32.mrb[0].mxu0
        %v1278 = vadd.f32 0.0, %v1277
        %v1279 = vpop.f32.mrb[0].mxu0
        %1280 = vmatprep.mubr.f32.mxu0 0.0
        %1281 = vmatmul.mubr.f32.gmra.mrb[0].mxu0 %v1184
        %v1282 = vpop.f32.mrb[0].mxu0
        %v1283 = vadd.f32 0.0, %v1282
        %v1284 = vpop.f32.mrb[0].mxu0
        %1285 = vmatprep.mubr.f32.mxu0 0.0
        %1286 = vmatmul.mubr.f32.gmra.mrb[0].mxu0 %v1185
        %v1287 = vpop.f32.mrb[0].mxu0
        %v1288 = vadd.f32 0.0, %v1287
        %v1289 = vpop.f32.mrb[0].mxu0
        %1290 = vmatprep.mubr.f32.mxu0 0.0
        %1291 = vmatmul.mubr.f32.gmra.mrb[0].mxu0 %v1186
        %v1292 = vpop.f32.mrb[0].mxu0
        %v1293 = vadd.f32 0.0, %v1292
        %v1294 = vpop.f32.mrb[0].mxu0
        %1295 = vmatprep.mubr.f32.mxu0 0.0
        %1296 = vmatmul.mubr.f32.gmra.mrb[0].mxu0 %v1187
        %v1297 = vpop.f32.mrb[0].mxu0
        %v1298 = vadd.f32 0.0, %v1297
        %v1299 = vpop.f32.mrb[0].mxu0
        %1300 = vmatprep.mubr.f32.mxu0 0.0
        %1301 = vmatmul.mubr.f32.gmra.mrb[0].mxu0 %v1188
        %v1302 = vpop.f32.mrb[0].mxu0
        %v1303 = vadd.f32 0.0, %v1302
        %v1304 = vpop.f32.mrb[0].mxu0
        %1305 = vmatprep.mubr.f32.mxu0 0.0
        %1306 = vmatmul.mubr.f32.gmra.mrb[0].mxu0 %v1189
        %v1307 = vpop.f32.mrb[0].mxu0
        %v1308 = vadd.f32 0.0, %v1307
        %v1309 = vpop.f32.mrb[0].mxu0
        %1310 = vdwg.mxu0
        %1311 = vst [vmem:[%s377] sm:$0xff] %v1273
        %1312 = vst [vmem:[%s377 + $0x8] sm:$0xff] %v1278
        %1313 = vst [vmem:[%s377 + $0x10] sm:$0xff] %v1283
        %1314 = vst [vmem:[%s377 + $0x18] sm:$0xff] %v1288
        %1315 = vst [vmem:[%s377 + $0x20] sm:$0xff] %v1293
        %1316 = vst [vmem:[%s377 + $0x28] sm:$0xff] %v1298
        %1317 = vst [vmem:[%s377 + $0x30] sm:$0xff] %v1303
        %1318 = vst [vmem:[%s377 + $0x38] sm:$0xff] %v1308
        %v1319 = vadd.f32 %v1273, %v1278
        %v1320 = vadd.f32 %v1319, %v1283
        %v1321 = vadd.f32 %v1320, %v1288
        %v1322 = vadd.f32 %v1321, %v1293
        %v1323 = vadd.f32 %v1322, %v1298
        %v1324 = vadd.f32 %v1323, %v1303
        %v1325 = vadd.f32 %v1324, %v1308
        %v1326 = vrot.slane %v1325, 4
        %v1327 = vadd.f32 %v1325, %v1326
        %v1328 = vrot.slane %v1327, 2
        %v1329 = vadd.f32 %v1327, %v1328
        %v1330 = vrot.slane %v1329, 1
        %v1331 = vadd.f32 %v1329, %v1330
        %v1332 = vmul.f32 %v1273, %v1273
        %v1333 = vmul.f32 %v1278, %v1278
        %v1334 = vmul.f32 %v1283, %v1283
        %v1335 = vmul.f32 %v1288, %v1288
        %v1336 = vmul.f32 %v1293, %v1293
        %v1337 = vmul.f32 %v1298, %v1298
        %v1338 = vmul.f32 %v1303, %v1303
        %v1339 = vmul.f32 %v1308, %v1308
        %v1340 = vadd.f32 %v1332, %v1333
        %v1341 = vadd.f32 %v1340, %v1334
        %v1342 = vadd.f32 %v1341, %v1335
        %v1343 = vadd.f32 %v1342, %v1336
        %v1344 = vadd.f32 %v1343, %v1337
        %v1345 = vadd.f32 %v1344, %v1338
        %v1346 = vadd.f32 %v1345, %v1339
        %v1347 = vrot.slane %v1346, 4
        %v1348 = vadd.f32 %v1346, %v1347
        %v1349 = vrot.slane %v1348, 2
        %v1350 = vadd.f32 %v1348, %v1349
        %v1351 = vrot.slane %v1350, 1
        %v1352 = vadd.f32 %v1350, %v1351
        %v1353 = vsel %vm1179, %v1331, %v1352
        %1354 = vst [vmem:[%s391] sm:$0x3] %v1353
        %s1355 = sand.u32 %s134, 1
        %s1356 = scalar_lea.sflag [#allocation4], %s1355
        %s1357 = sand.u32 %s134, 1
        %s1358 = smul.addr %s1357, 64
        %s1359 = scalar_lea.vmem [#allocation9], %s1358
        %s1360 = sand.u32 %s32, 1
        %s1361 = scalar_lea.sflag [#allocation11], %s1360
        %s1362 = sand.u32 %s160, 1
        %s1363 = smul.addr %s1362, 64
        %s1364 = scalar_lea.vmem [#allocation10], %s1363
        %s1365 = sand.u32 %s32, 1
        %s1366 = scalar_lea.sflag [#allocation11], %s1365
        %s1367 = sand.u32 %s186, 1
        %s1368 = smul.addr %s1367, 2
        %s1369 = scalar_lea.vmem [#allocation12], %s1368
        %s1370 = sand.u32 %s212, 1
        %s1371 = scalar_lea.sflag [#allocation14], %s1370
        %s1372 = sand.u32 %s212, 1
        %s1373 = smul.addr %s1372, 2
        %s1374 = scalar_lea.vmem [#allocation13], %s1373
        // Predicated region
        $region53: #{bottleneck_forward.5} parent=35 // pred_check
          %p1375 = pneg %p144
        $region54: #{bottleneck_forward.5} parent=35 // pred_check_branch
          %1377 = sbr.rel (%p1375) target = $region56
        $region55: #{bottleneck_forward.5} parent=35 // pred_region
          %s1378 = smul.u32 8, %s32
          %s1380 = ssub.s32 1024, 1024
          %1381 = vsyncadd %s1356, %s1380
          %s1382 = smul.addr %s1378, 128
          %s1383 = scalar_lea.hbm %s4, %s1382
          %s1384 = sshll.u32 %s1359, 4
          %s1385 = int_to_ptr.vmem [resolvable:$true] %s1384
          %1390 = dma.vmem_to_hbm [thread:$0]  %s1385, 1024, %s1383, %s1356, 128, 128, 8
        $region56: #{bottleneck_forward.5} parent=35 // pred_fallthru
          _
        // Predicated region
        $region57: #{bottleneck_forward.5} parent=35 // pred_check
          %p1391 = pneg %p170
        $region58: #{bottleneck_forward.5} parent=35 // pred_check_branch
          %1393 = sbr.rel (%p1391) target = $region60
        $region59: #{bottleneck_forward.5} parent=35 // pred_region
          %s1394 = smul.u32 8, %s32
          %s1396 = ssub.s32 1024, 1024
          %1397 = vsyncadd %s1361, %s1396
          %s1398 = smul.addr %s1394, 128
          %s1399 = scalar_lea.hbm %s5, %s1398
          %s1400 = sshll.u32 %s1364, 4
          %s1401 = int_to_ptr.vmem [resolvable:$true] %s1400
          %1406 = dma.vmem_to_hbm [thread:$0]  %s1401, 1024, %s1399, %s1361, 128, 128, 8
        $region60: #{bottleneck_forward.5} parent=35 // pred_fallthru
          _
        // Predicated region
        $region61: #{bottleneck_forward.5} parent=35 // pred_check
          %p1407 = pneg %p196
        $region62: #{bottleneck_forward.5} parent=35 // pred_check_branch
          %1409 = sbr.rel (%p1407) target = $region64
        $region63: #{bottleneck_forward.5} parent=35 // pred_region
          %s1411 = ssub.s32 32, 32
          %1412 = vsyncadd %s1366, %s1411
          %s1413 = smul.addr %s32, 32
          %s1414 = scalar_lea.hbm %s6, %s1413
          %s1416 = sshll.u32 %s1369, 4
          %s1417 = int_to_ptr.vmem [resolvable:$true] %s1416
          %1419 = dma.vmem_to_hbm [thread:$0]  %s1417, 32, %s1414, %s1366
        $region64: #{bottleneck_forward.5} parent=35 // pred_fallthru
          _
        // Predicated region
        $region65: #{bottleneck_forward.5} parent=35 // pred_check
          %p1420 = pneg %p222
        $region66: #{bottleneck_forward.5} parent=35 // pred_check_branch
          %1422 = sbr.rel (%p1420) target = $region68
        $region67: #{bottleneck_forward.5} parent=35 // pred_region
          %s1424 = ssub.s32 32, 32
          %1425 = vsyncadd %s1371, %s1424
          %s1426 = smul.addr %s32, 32
          %s1427 = scalar_lea.hbm %s7, %s1426
          %s1429 = sshll.u32 %s1374, 4
          %s1430 = int_to_ptr.vmem [resolvable:$true] %s1429
          %1432 = dma.vmem_to_hbm [thread:$0]  %s1430, 32, %s1427, %s1371
        $region68: #{bottleneck_forward.5} parent=35 // pred_fallthru
          _
      $region36: #{bottleneck_forward.5} parent=5 // pred_fallthru
        _
      %p1433 = scmp.le.s32.totalorder 2, %s27
      // Predicated region
      $region69: #{bottleneck_forward.5} parent=5 // pred_check
        %p1434 = pneg %p1433
      $region70: #{bottleneck_forward.5} parent=5 // pred_check_branch
        %1436 = sbr.rel (%p1434) target = $region72
      $region71: #{bottleneck_forward.5} parent=5 // pred_region
        %s1437 = ssub.s32 %s27, 2
        // Predicated region
        $region73: #{bottleneck_forward.5} parent=71 // pred_check
          %p1438 = pneg %p150
        $region74: #{bottleneck_forward.5} parent=71 // pred_check_branch
          %1440 = sbr.rel (%p1438) target = $region76
        $region75: #{bottleneck_forward.5} parent=71 // pred_region
          %s1441 = sand.u32 %s135, 1
          %s1442 = scalar_lea.sflag [#allocation4], %s1441
          %s1443 = sand.u32 %s135, 1
          %s1444 = smul.addr %s1443, 64
          %s1445 = scalar_lea.vmem [#allocation9], %s1444
          %1446 = dma.done %s1442, 1024
        $region76: #{bottleneck_forward.5} parent=71 // pred_fallthru
          _
        // Predicated region
        $region77: #{bottleneck_forward.5} parent=71 // pred_check
          %p1447 = pneg %p176
        $region78: #{bottleneck_forward.5} parent=71 // pred_check_branch
          %1449 = sbr.rel (%p1447) target = $region80
        $region79: #{bottleneck_forward.5} parent=71 // pred_region
          %s1450 = sand.u32 %s33, 1
          %s1451 = scalar_lea.sflag [#allocation11], %s1450
          %s1452 = sand.u32 %s161, 1
          %s1453 = smul.addr %s1452, 64
          %s1454 = scalar_lea.vmem [#allocation10], %s1453
          %1455 = dma.done %s1451, 1024
        $region80: #{bottleneck_forward.5} parent=71 // pred_fallthru
          _
        // Predicated region
        $region81: #{bottleneck_forward.5} parent=71 // pred_check
          %p1456 = pneg %p202
        $region82: #{bottleneck_forward.5} parent=71 // pred_check_branch
          %1458 = sbr.rel (%p1456) target = $region84
        $region83: #{bottleneck_forward.5} parent=71 // pred_region
          %s1459 = sand.u32 %s33, 1
          %s1460 = scalar_lea.sflag [#allocation11], %s1459
          %s1461 = sand.u32 %s187, 1
          %s1462 = smul.addr %s1461, 2
          %s1463 = scalar_lea.vmem [#allocation12], %s1462
          %1464 = dma.done %s1460, 32
        $region84: #{bottleneck_forward.5} parent=71 // pred_fallthru
          _
        // Predicated region
        $region85: #{bottleneck_forward.5} parent=71 // pred_check
          %p1465 = pneg %p228
        $region86: #{bottleneck_forward.5} parent=71 // pred_check_branch
          %1467 = sbr.rel (%p1465) target = $region88
        $region87: #{bottleneck_forward.5} parent=71 // pred_region
          %s1468 = sand.u32 %s213, 1
          %s1469 = scalar_lea.sflag [#allocation14], %s1468
          %s1470 = sand.u32 %s213, 1
          %s1471 = smul.addr %s1470, 2
          %s1472 = scalar_lea.vmem [#allocation13], %s1471
          %1473 = dma.done %s1469, 32
        $region88: #{bottleneck_forward.5} parent=71 // pred_fallthru
          _
      $region72: #{bottleneck_forward.5} parent=5 // pred_fallthru
        _
    $region6: #{bottleneck_forward.5} parent=1 // loop_footer
      %s31 = sadd.s32 1, %s27
    $region7: #{bottleneck_forward.5} parent=1 // loop_footer_branch
      %26 = sbr.rel target = $region3
    $region8: #{bottleneck_forward.5} parent=1 // loop_exit
      _
    %1474 = vsyncpa [#allocation3], 1
    %s1475 = scalar_lea.sflag [#allocation3], 1
    %1476 = vsyncpa %s1475, 1
    %1477 = vsyncpa [#allocation6], 1
    %1478 = vsyncpa [#allocation4], 1
    %s1479 = scalar_lea.sflag [#allocation4], 1
    %1480 = vsyncpa %s1479, 1
    %1481 = vsyncpa [#allocation11], 1
    %s1482 = scalar_lea.sflag [#allocation11], 1
    %1483 = vsyncpa %s1482, 1
    %1484 = vsyncpa [#allocation14], 1
    %s1485 = scalar_lea.sflag [#allocation14], 1
    %1486 = vsyncpa %s1485, 1

// kernel: bottleneck_forward.7
$region0: #{bottleneck_forward.7}
  #allocation0 [shape = 'u32[]', space=smem, size = 0x4, offset = 0x4, fixed_abs, tag = 'smem constant byte address 0x4 - core index']
  #allocation1 [shape = 'u32[144,128]{1,0:T(1,128)}', space=vmem, size = 0x12000, scoped, tag = 'internal scratch']
  %s0 = inlined_call_operand.hbm [shape: f32[128,128], index: 0, kind: input, shape index: {}]
  %s1 = inlined_call_operand.hbm [shape: f32[1,128], index: 1, kind: input, shape index: {}]
  %s2 = inlined_call_operand.hbm [shape: f32[1,128], index: 2, kind: input, shape index: {}]
  %s3 = inlined_call_operand.hbm [shape: f32[128,128], index: 3, kind: input, shape index: {}]
  %s4 = inlined_call_operand.hbm [shape: f32[1,128], index: 4, kind: input, shape index: {}]
  %s5 = inlined_call_operand.hbm [shape: f32[1,128], index: 5, kind: input, shape index: {}]
  %s6 = inlined_call_operand.hbm [shape: f32[128,128], index: 6, kind: output, shape index: {}]
  %s7 = sld [smem:[#allocation0]]
  $region81: #{bottleneck_forward.7} parent=0
    _
  %s9 = ssub.s32 1, %s7
  %s10 = scalar_select 0, %s9, %s7
  $region1: #{bottleneck_forward.7} parent=0
    #allocation2 [shape = 'u8[65536]{0}', space=vmem, size = 0x10000, scoped, tag = 'input window, operand 0']
    #allocation3 [shape = 's32[2]{0}', space=sflag, size = 0x8, scoped, tag = 'scoped memory for bottleneck_forward.7']
    #allocation4 [shape = 's32[2]{0}', space=sflag, size = 0x8, scoped, tag = 'scoped memory for bottleneck_forward.7']
    #allocation5 [shape = 'u8[512]{0}', space=vmem, size = 0x400, scoped, tag = 'input window, operand 1, single buffered']
    #allocation6 [shape = 's32[1]{0}', space=sflag, size = 0x4, scoped, tag = 'scoped memory for bottleneck_forward.7']
    #allocation7 [shape = 'u8[512]{0}', space=vmem, size = 0x400, scoped, tag = 'input window, operand 2, single buffered']
    #allocation8 [shape = 'u8[65536]{0}', space=vmem, size = 0x10000, scoped, tag = 'input window, operand 3']
    #allocation9 [shape = 's32[2]{0}', space=sflag, size = 0x8, scoped, tag = 'scoped memory for bottleneck_forward.7']
    #allocation10 [shape = 'u8[512]{0}', space=vmem, size = 0x400, scoped, tag = 'input window, operand 4, single buffered']
    #allocation11 [shape = 'u8[512]{0}', space=vmem, size = 0x400, scoped, tag = 'input window, operand 5, single buffered']
    #allocation12 [shape = 's32[1]{0}', space=sflag, size = 0x4, scoped, tag = 'scoped memory for bottleneck_forward.7']
    #allocation13 [shape = 'u8[65536]{0}', space=vmem, size = 0x10000, scoped, tag = 'output window, operand 0']
    %11 = vsyncpa [#allocation3], 0
    %s12 = scalar_lea.sflag [#allocation3], 1
    %13 = vsyncpa %s12, 0
    %14 = vsyncpa [#allocation6], 0
    %15 = vsyncpa [#allocation9], 0
    %s16 = scalar_lea.sflag [#allocation9], 1
    %17 = vsyncpa %s16, 0
    %18 = vsyncpa [#allocation12], 0
    %19 = vsyncpa [#allocation4], 0
    %s20 = scalar_lea.sflag [#allocation4], 1
    %21 = vsyncpa %s20, 0
    loop: start=0, step=1, limit=4
    $region2: #{bottleneck_forward.7} parent=1 // loop_pre_header
      _
    $region3: #{bottleneck_forward.7} parent=1 // loop_header
      %s23 = sphi 0, %s27
      %p24 = scmp.ge.s32.totalorder %s23, 4
      %s33 = sphi 0, %s35
      %s36 = sphi 0, %s33
      %s37 = sphi 0, %s36
      %s53 = sphi 0, %s37
      %s57 = sphi 0, %s57
      %s59 = sphi 0, %s57
      %s60 = sphi 0, %s59
      %s74 = sphi 0, %s60
      %s78 = sphi 0, %s78
      %s80 = sphi 0, %s78
      %s81 = sphi 0, %s80
      %s95 = sphi 0, %s81
      %s101 = sphi 0, %s103
      %s104 = sphi 0, %s101
      %s105 = sphi 0, %s104
      %s121 = sphi 0, %s105
      %s125 = sphi 0, %s125
      %s127 = sphi 0, %s125
      %s128 = sphi 0, %s127
      %s142 = sphi 0, %s128
      %s146 = sphi 0, %s146
      %s148 = sphi 0, %s146
      %s149 = sphi 0, %s148
      %s163 = sphi 0, %s149
      %s169 = sphi 0, %s171
      %s172 = sphi 0, %s169
      %s173 = sphi 0, %s172
      %s189 = sphi 0, %s173
    $region4: #{bottleneck_forward.7} parent=1 // loop_header_branch
      %26 = sbr.rel (%p24) target = $region8
    $region5: #{bottleneck_forward.7} parent=1 // loop_body
      %s28 = ssub.s32 %s23, 1
      %s29 = ssub.s32 %s23, 2
      %s30 = sadd.s32 %s23, 1
      %s31 = ssub.s32 %s23, %s30
      %p32 = scmp.eq.s32.totalorder %s31, 0
      %s34 = sadd.s32 %s33, 1
      %s35 = scalar_select %p32, %s33, %s34
      %p38 = pneg %p32
      %p39 = scmp.eq.s32.totalorder %s23, 1
      %p40 = por %p38, %p39
      %p41 = scmp.ne.s32.totalorder %s33, %s36
      %p42 = scmp.eq.s32.totalorder %s23, 0
      %p43 = por %p41, %p42
      %p44 = scmp.ne.s32.totalorder %s33, %s36
      %p45 = scmp.eq.s32.totalorder %s28, 1
      %p46 = por %p44, %p45
      %p47 = scmp.ne.s32.totalorder %s36, %s37
      %p48 = scmp.eq.s32.totalorder %s28, 0
      %p49 = por %p47, %p48
      %p50 = scmp.ne.s32.totalorder %s36, %s37
      %p51 = scmp.eq.s32.totalorder %s29, 1
      %p52 = por %p50, %p51
      %p54 = scmp.ne.s32.totalorder %s37, %s53
      %p55 = scmp.eq.s32.totalorder %s29, 0
      %p56 = por %p54, %p55
      %s58 = sadd.s32 %s57, 1
      %p61 = scmp.eq.s32.totalorder %s23, 1
      %p62 = scmp.ne.s32.totalorder %s57, %s59
      %p63 = scmp.eq.s32.totalorder %s23, 0
      %p64 = por %p62, %p63
      %p65 = scmp.ne.s32.totalorder %s57, %s59
      %p66 = scmp.eq.s32.totalorder %s28, 1
      %p67 = por %p65, %p66
      %p68 = scmp.ne.s32.totalorder %s59, %s60
      %p69 = scmp.eq.s32.totalorder %s28, 0
      %p70 = por %p68, %p69
      %p71 = scmp.ne.s32.totalorder %s59, %s60
      %p72 = scmp.eq.s32.totalorder %s29, 1
      %p73 = por %p71, %p72
      %p75 = scmp.ne.s32.totalorder %s60, %s74
      %p76 = scmp.eq.s32.totalorder %s29, 0
      %p77 = por %p75, %p76
      %s79 = sadd.s32 %s78, 1
      %p82 = scmp.eq.s32.totalorder %s23, 1
      %p83 = scmp.ne.s32.totalorder %s78, %s80
      %p84 = scmp.eq.s32.totalorder %s23, 0
      %p85 = por %p83, %p84
      %p86 = scmp.ne.s32.totalorder %s78, %s80
      %p87 = scmp.eq.s32.totalorder %s28, 1
      %p88 = por %p86, %p87
      %p89 = scmp.ne.s32.totalorder %s80, %s81
      %p90 = scmp.eq.s32.totalorder %s28, 0
      %p91 = por %p89, %p90
      %p92 = scmp.ne.s32.totalorder %s80, %s81
      %p93 = scmp.eq.s32.totalorder %s29, 1
      %p94 = por %p92, %p93
      %p96 = scmp.ne.s32.totalorder %s81, %s95
      %p97 = scmp.eq.s32.totalorder %s29, 0
      %p98 = por %p96, %p97
      %s99 = ssub.s32 %s23, %s30
      %p100 = scmp.eq.s32.totalorder %s99, 0
      %s102 = sadd.s32 %s101, 1
      %s103 = scalar_select %p100, %s101, %s102
      %p106 = pneg %p100
      %p107 = scmp.eq.s32.totalorder %s23, 1
      %p108 = por %p106, %p107
      %p109 = scmp.ne.s32.totalorder %s101, %s104
      %p110 = scmp.eq.s32.totalorder %s23, 0
      %p111 = por %p109, %p110
      %p112 = scmp.ne.s32.totalorder %s101, %s104
      %p113 = scmp.eq.s32.totalorder %s28, 1
      %p114 = por %p112, %p113
      %p115 = scmp.ne.s32.totalorder %s104, %s105
      %p116 = scmp.eq.s32.totalorder %s28, 0
      %p117 = por %p115, %p116
      %p118 = scmp.ne.s32.totalorder %s104, %s105
      %p119 = scmp.eq.s32.totalorder %s29, 1
      %p120 = por %p118, %p119
      %p122 = scmp.ne.s32.totalorder %s105, %s121
      %p123 = scmp.eq.s32.totalorder %s29, 0
      %p124 = por %p122, %p123
      %s126 = sadd.s32 %s125, 1
      %p129 = scmp.eq.s32.totalorder %s23, 1
      %p130 = scmp.ne.s32.totalorder %s125, %s127
      %p131 = scmp.eq.s32.totalorder %s23, 0
      %p132 = por %p130, %p131
      %p133 = scmp.ne.s32.totalorder %s125, %s127
      %p134 = scmp.eq.s32.totalorder %s28, 1
      %p135 = por %p133, %p134
      %p136 = scmp.ne.s32.totalorder %s127, %s128
      %p137 = scmp.eq.s32.totalorder %s28, 0
      %p138 = por %p136, %p137
      %p139 = scmp.ne.s32.totalorder %s127, %s128
      %p140 = scmp.eq.s32.totalorder %s29, 1
      %p141 = por %p139, %p140
      %p143 = scmp.ne.s32.totalorder %s128, %s142
      %p144 = scmp.eq.s32.totalorder %s29, 0
      %p145 = por %p143, %p144
      %s147 = sadd.s32 %s146, 1
      %p150 = scmp.eq.s32.totalorder %s23, 1
      %p151 = scmp.ne.s32.totalorder %s146, %s148
      %p152 = scmp.eq.s32.totalorder %s23, 0
      %p153 = por %p151, %p152
      %p154 = scmp.ne.s32.totalorder %s146, %s148
      %p155 = scmp.eq.s32.totalorder %s28, 1
      %p156 = por %p154, %p155
      %p157 = scmp.ne.s32.totalorder %s148, %s149
      %p158 = scmp.eq.s32.totalorder %s28, 0
      %p159 = por %p157, %p158
      %p160 = scmp.ne.s32.totalorder %s148, %s149
      %p161 = scmp.eq.s32.totalorder %s29, 1
      %p162 = por %p160, %p161
      %p164 = scmp.ne.s32.totalorder %s149, %s163
      %p165 = scmp.eq.s32.totalorder %s29, 0
      %p166 = por %p164, %p165
      %s167 = ssub.s32 %s23, %s30
      %p168 = scmp.eq.s32.totalorder %s167, 0
      %s170 = sadd.s32 %s169, 1
      %s171 = scalar_select %p168, %s169, %s170
      %p174 = pneg %p168
      %p175 = scmp.eq.s32.totalorder %s23, 1
      %p176 = por %p174, %p175
      %p177 = scmp.ne.s32.totalorder %s169, %s172
      %p178 = scmp.eq.s32.totalorder %s23, 0
      %p179 = por %p177, %p178
      %p180 = scmp.ne.s32.totalorder %s169, %s172
      %p181 = scmp.eq.s32.totalorder %s28, 1
      %p182 = por %p180, %p181
      %p183 = scmp.ne.s32.totalorder %s172, %s173
      %p184 = scmp.eq.s32.totalorder %s28, 0
      %p185 = por %p183, %p184
      %p186 = scmp.ne.s32.totalorder %s172, %s173
      %p187 = scmp.eq.s32.totalorder %s29, 1
      %p188 = por %p186, %p187
      %p190 = scmp.ne.s32.totalorder %s173, %s189
      %p191 = scmp.eq.s32.totalorder %s29, 0
      %p192 = por %p190, %p191
      %p193 = scmp.le.s32.totalorder 1, %s23
      %p194 = scmp.lt.s32.totalorder %s23, 3
      %p195 = pnand %p193, %p194
      %p196 = pneg %p195
      // Predicated region
      $region9: #{bottleneck_forward.7} parent=5 // pred_check
        _
      $region10: #{bottleneck_forward.7} parent=5 // pred_check_branch
        %198 = sbr.rel (%p195) target = $region12
      $region11: #{bottleneck_forward.7} parent=5 // pred_region
        %s199 = ssub.s32 %s23, 1
        // Predicated region
        $region13: #{bottleneck_forward.7} parent=11 // pred_check
          %p200 = pneg %p70
        $region14: #{bottleneck_forward.7} parent=11 // pred_check_branch
          %202 = sbr.rel (%p200) target = $region16
        $region15: #{bottleneck_forward.7} parent=11 // pred_region
          %s204 = ssub.s32 16, 16
          %205 = vsyncadd [#allocation6], %s204
          %s207 = sshll.u32 [#allocation5], 4
          %s208 = int_to_ptr.vmem [resolvable:$true] %s207
          %210 = dma.hbm_to_vmem [thread:$0]  %s1, 16, %s208, [#allocation6]
        $region16: #{bottleneck_forward.7} parent=11 // pred_fallthru
          _
        // Predicated region
        $region17: #{bottleneck_forward.7} parent=11 // pred_check
          %p211 = pneg %p91
        $region18: #{bottleneck_forward.7} parent=11 // pred_check_branch
          %213 = sbr.rel (%p211) target = $region20
        $region19: #{bottleneck_forward.7} parent=11 // pred_region
          %s215 = ssub.s32 16, 16
          %216 = vsyncadd [#allocation6], %s215
          %s218 = sshll.u32 [#allocation7], 4
          %s219 = int_to_ptr.vmem [resolvable:$true] %s218
          %221 = dma.hbm_to_vmem [thread:$0]  %s2, 16, %s219, [#allocation6]
        $region20: #{bottleneck_forward.7} parent=11 // pred_fallthru
          _
        // Predicated region
        $region21: #{bottleneck_forward.7} parent=11 // pred_check
          %p222 = pneg %p138
        $region22: #{bottleneck_forward.7} parent=11 // pred_check_branch
          %224 = sbr.rel (%p222) target = $region24
        $region23: #{bottleneck_forward.7} parent=11 // pred_region
          %s226 = ssub.s32 16, 16
          %227 = vsyncadd [#allocation9], %s226
          %s229 = sshll.u32 [#allocation10], 4
          %s230 = int_to_ptr.vmem [resolvable:$true] %s229
          %232 = dma.hbm_to_vmem [thread:$0]  %s4, 16, %s230, [#allocation9]
        $region24: #{bottleneck_forward.7} parent=11 // pred_fallthru
          _
        // Predicated region
        $region25: #{bottleneck_forward.7} parent=11 // pred_check
          %p233 = pneg %p159
        $region26: #{bottleneck_forward.7} parent=11 // pred_check_branch
          %235 = sbr.rel (%p233) target = $region28
        $region27: #{bottleneck_forward.7} parent=11 // pred_region
          %s237 = ssub.s32 16, 16
          %238 = vsyncadd [#allocation12], %s237
          %s240 = sshll.u32 [#allocation11], 4
          %s241 = int_to_ptr.vmem [resolvable:$true] %s240
          %243 = dma.hbm_to_vmem [thread:$0]  %s5, 16, %s241, [#allocation12]
        $region28: #{bottleneck_forward.7} parent=11 // pred_fallthru
          _
      $region12: #{bottleneck_forward.7} parent=5 // pred_fallthru
        _
      %p244 = scmp.lt.s32.totalorder %s23, 2
      // Predicated region
      $region29: #{bottleneck_forward.7} parent=5 // pred_check
        %p245 = pneg %p244
      $region30: #{bottleneck_forward.7} parent=5 // pred_check_branch
        %247 = sbr.rel (%p245) target = $region32
      $region31: #{bottleneck_forward.7} parent=5 // pred_region
        // Predicated region
        $region33: #{bottleneck_forward.7} parent=31 // pred_check
          %p248 = pneg %p43
        $region34: #{bottleneck_forward.7} parent=31 // pred_check_branch
          %250 = sbr.rel (%p248) target = $region36
        $region35: #{bottleneck_forward.7} parent=31 // pred_region
          %s251 = sand.u32 %s33, 1
          %s252 = scalar_lea.sflag [#allocation3], %s251
          %s253 = sand.u32 %s33, 1
          %s254 = smul.addr %s253, 64
          %s255 = scalar_lea.vmem [#allocation2], %s254
          %s256 = smul.u32 8, %s23
          %s258 = ssub.s32 1024, 1024
          %259 = vsyncadd %s252, %s258
          %s260 = smul.addr %s256, 128
          %s261 = scalar_lea.hbm %s0, %s260
          %s262 = sshll.u32 %s255, 4
          %s263 = int_to_ptr.vmem [resolvable:$true] %s262
          %268 = dma.hbm_to_vmem [thread:$0]  %s261, 1024, %s263, %s252, 128, 128, 8
        $region36: #{bottleneck_forward.7} parent=31 // pred_fallthru
          _
        // Predicated region
        $region37: #{bottleneck_forward.7} parent=31 // pred_check
          %p269 = pneg %p111
        $region38: #{bottleneck_forward.7} parent=31 // pred_check_branch
          %271 = sbr.rel (%p269) target = $region40
        $region39: #{bottleneck_forward.7} parent=31 // pred_region
          %s272 = sand.u32 %s23, 1
          %s273 = scalar_lea.sflag [#allocation9], %s272
          %s274 = sand.u32 %s101, 1
          %s275 = smul.addr %s274, 64
          %s276 = scalar_lea.vmem [#allocation8], %s275
          %s277 = smul.u32 8, %s23
          %s279 = ssub.s32 1024, 1024
          %280 = vsyncadd %s273, %s279
          %s281 = smul.addr %s277, 128
          %s282 = scalar_lea.hbm %s3, %s281
          %s283 = sshll.u32 %s276, 4
          %s284 = int_to_ptr.vmem [resolvable:$true] %s283
          %289 = dma.hbm_to_vmem [thread:$0]  %s282, 1024, %s284, %s273, 128, 128, 8
        $region40: #{bottleneck_forward.7} parent=31 // pred_fallthru
          _
      $region32: #{bottleneck_forward.7} parent=5 // pred_fallthru
        _
      %p290 = scmp.le.s32.totalorder 1, %s23
      %p291 = scmp.lt.s32.totalorder %s23, 3
      %p292 = pnand %p290, %p291
      %p293 = pneg %p292
      // Predicated region
      $region41: #{bottleneck_forward.7} parent=5 // pred_check
        _
      $region42: #{bottleneck_forward.7} parent=5 // pred_check_branch
        %295 = sbr.rel (%p292) target = $region44
      $region43: #{bottleneck_forward.7} parent=5 // pred_region
        %s296 = ssub.s32 %s23, 1
        %s297 = sand.u32 %s36, 1
        %s298 = scalar_lea.sflag [#allocation3], %s297
        %s299 = sand.u32 %s36, 1
        %s300 = smul.addr %s299, 64
        %s301 = scalar_lea.vmem [#allocation2], %s300
        // Predicated region
        $region45: #{bottleneck_forward.7} parent=43 // pred_check
          %p302 = pneg %p49
        $region46: #{bottleneck_forward.7} parent=43 // pred_check_branch
          %304 = sbr.rel (%p302) target = $region48
        $region47: #{bottleneck_forward.7} parent=43 // pred_region
          %305 = dma.done %s298, 1024
        $region48: #{bottleneck_forward.7} parent=43 // pred_fallthru
          _
        // Predicated region
        $region49: #{bottleneck_forward.7} parent=43 // pred_check
          %p306 = pneg %p70
        $region50: #{bottleneck_forward.7} parent=43 // pred_check_branch
          %308 = sbr.rel (%p306) target = $region52
        $region51: #{bottleneck_forward.7} parent=43 // pred_region
          %309 = dma.done [#allocation6], 16
        $region52: #{bottleneck_forward.7} parent=43 // pred_fallthru
          _
        // Predicated region
        $region53: #{bottleneck_forward.7} parent=43 // pred_check
          %p310 = pneg %p91
        $region54: #{bottleneck_forward.7} parent=43 // pred_check_branch
          %312 = sbr.rel (%p310) target = $region56
        $region55: #{bottleneck_forward.7} parent=43 // pred_region
          %313 = dma.done [#allocation6], 16
        $region56: #{bottleneck_forward.7} parent=43 // pred_fallthru
          _
        %s314 = sand.u32 %s28, 1
        %s315 = scalar_lea.sflag [#allocation9], %s314
        %s316 = sand.u32 %s104, 1
        %s317 = smul.addr %s316, 64
        %s318 = scalar_lea.vmem [#allocation8], %s317
        // Predicated region
        $region57: #{bottleneck_forward.7} parent=43 // pred_check
          %p319 = pneg %p117
        $region58: #{bottleneck_forward.7} parent=43 // pred_check_branch
          %321 = sbr.rel (%p319) target = $region60
        $region59: #{bottleneck_forward.7} parent=43 // pred_region
          %322 = dma.done %s315, 1024
        $region60: #{bottleneck_forward.7} parent=43 // pred_fallthru
          _
        // Predicated region
        $region61: #{bottleneck_forward.7} parent=43 // pred_check
          %p323 = pneg %p138
        $region62: #{bottleneck_forward.7} parent=43 // pred_check_branch
          %325 = sbr.rel (%p323) target = $region64
        $region63: #{bottleneck_forward.7} parent=43 // pred_region
          %326 = dma.done [#allocation9], 16
        $region64: #{bottleneck_forward.7} parent=43 // pred_fallthru
          _
        // Predicated region
        $region65: #{bottleneck_forward.7} parent=43 // pred_check
          %p327 = pneg %p159
        $region66: #{bottleneck_forward.7} parent=43 // pred_check_branch
          %329 = sbr.rel (%p327) target = $region68
        $region67: #{bottleneck_forward.7} parent=43 // pred_region
          %330 = dma.done [#allocation12], 16
        $region68: #{bottleneck_forward.7} parent=43 // pred_fallthru
          _
        %s331 = sand.u32 %s36, 1
        %s332 = scalar_lea.sflag [#allocation3], %s331
        %s333 = sand.u32 %s36, 1
        %s334 = smul.addr %s333, 64
        %s335 = scalar_lea.vmem [#allocation2], %s334
        %p336 = pneg %p49
        %p337 = pneg %p46
        %p338 = pneg %p70
        %p339 = pneg %p67
        %p340 = pneg %p91
        %p341 = pneg %p88
        %s342 = sand.u32 %s28, 1
        %s343 = scalar_lea.sflag [#allocation9], %s342
        %s344 = sand.u32 %s104, 1
        %s345 = smul.addr %s344, 64
        %s346 = scalar_lea.vmem [#allocation8], %s345
        %p347 = pneg %p117
        %p348 = pneg %p114
        %p349 = pneg %p138
        %p350 = pneg %p135
        %p351 = pneg %p159
        %p352 = pneg %p156
        %p353 = pneg %p185
        %p354 = pneg %p182
        %s355 = sand.u32 %s172, 1
        %s356 = scalar_lea.sflag [#allocation4], %s355
        %s357 = sand.u32 %s172, 1
        %s358 = smul.addr %s357, 64
        %s359 = scalar_lea.vmem [#allocation13], %s358
        %s360 = smul.u32 8, %s28
        %s361 = smul.u32 8, %s28
        %s362 = smul.u32 8, %s28
        %v363 = vld [vmem:[%s301] sm:$0xff]
        %v364 = vld [vmem:[%s301 + $0x8] sm:$0xff]
        %v365 = vld [vmem:[%s301 + $0x10] sm:$0xff]
        %v366 = vld [vmem:[%s301 + $0x18] sm:$0xff]
        %v367 = vld [vmem:[%s301 + $0x20] sm:$0xff]
        %v368 = vld [vmem:[%s301 + $0x28] sm:$0xff]
        %v369 = vld [vmem:[%s301 + $0x30] sm:$0xff]
        %v370 = vld [vmem:[%s301 + $0x38] sm:$0xff]
        %v371 = vld [vmem:[#allocation5] sm:$0x1]
        %v373 = vlaneseq
        %v374 = vshrl.u32 %v373, 7
        %v375 = vsub.s32 0, %v374
        %v376 = vrot.slane %v371, %v375
        %v378 = vmul.f32 %v363, %v376
        %v379 = vmul.f32 %v364, %v376
        %v380 = vmul.f32 %v365, %v376
        %v381 = vmul.f32 %v366, %v376
        %v382 = vmul.f32 %v367, %v376
        %v383 = vmul.f32 %v368, %v376
        %v384 = vmul.f32 %v369, %v376
        %v385 = vmul.f32 %v370, %v376
        %v386 = vld [vmem:[#allocation7] sm:$0x1]
        %v388 = vlaneseq
        %v389 = vshrl.u32 %v388, 7
        %v390 = vsub.s32 0, %v389
        %v391 = vrot.slane %v386, %v390
        %v393 = vadd.f32 %v378, %v391
        %v394 = vadd.f32 %v379, %v391
        %v395 = vadd.f32 %v380, %v391
        %v396 = vadd.f32 %v381, %v391
        %v397 = vadd.f32 %v382, %v391
        %v398 = vadd.f32 %v383, %v391
        %v399 = vadd.f32 %v384, %v391
        %v400 = vadd.f32 %v385, %v391
        %v401 = vld [vmem:[%s318] sm:$0xff]
        %v402 = vld [vmem:[%s318 + $0x8] sm:$0xff]
        %v403 = vld [vmem:[%s318 + $0x10] sm:$0xff]
        %v404 = vld [vmem:[%s318 + $0x18] sm:$0xff]
        %v405 = vld [vmem:[%s318 + $0x20] sm:$0xff]
        %v406 = vld [vmem:[%s318 + $0x28] sm:$0xff]
        %v407 = vld [vmem:[%s318 + $0x30] sm:$0xff]
        %v408 = vld [vmem:[%s318 + $0x38] sm:$0xff]
        %v409 = vld [vmem:[#allocation10] sm:$0x1]
        %v411 = vlaneseq
        %v412 = vshrl.u32 %v411, 7
        %v413 = vsub.s32 0, %v412
        %v414 = vrot.slane %v409, %v413
        %v416 = vmul.f32 %v401, %v414
        %v417 = vmul.f32 %v402, %v414
        %v418 = vmul.f32 %v403, %v414
        %v419 = vmul.f32 %v404, %v414
        %v420 = vmul.f32 %v405, %v414
        %v421 = vmul.f32 %v406, %v414
        %v422 = vmul.f32 %v407, %v414
        %v423 = vmul.f32 %v408, %v414
        %v424 = vld [vmem:[#allocation11] sm:$0x1]
        %v426 = vlaneseq
        %v427 = vshrl.u32 %v426, 7
        %v428 = vsub.s32 0, %v427
        %v429 = vrot.slane %v424, %v428
        %v431 = vadd.f32 %v416, %v429
        %v432 = vadd.f32 %v417, %v429
        %v433 = vadd.f32 %v418, %v429
        %v434 = vadd.f32 %v419, %v429
        %v435 = vadd.f32 %v420, %v429
        %v436 = vadd.f32 %v421, %v429
        %v437 = vadd.f32 %v422, %v429
        %v438 = vadd.f32 %v423, %v429
        %v439 = vadd.f32 %v393, %v431
        %v440 = vadd.f32 %v394, %v432
        %v441 = vadd.f32 %v395, %v433
        %v442 = vadd.f32 %v396, %v434
        %v443 = vadd.f32 %v397, %v435
        %v444 = vadd.f32 %v398, %v436
        %v445 = vadd.f32 %v399, %v437
        %v446 = vadd.f32 %v400, %v438
        %v447 = vmax.f32 %v439, 0.0
        %v448 = vmax.f32 %v440, 0.0
        %v449 = vmax.f32 %v441, 0.0
        %v450 = vmax.f32 %v442, 0.0
        %v451 = vmax.f32 %v443, 0.0
        %v452 = vmax.f32 %v444, 0.0
        %v453 = vmax.f32 %v445, 0.0
        %v454 = vmax.f32 %v446, 0.0
        %455 = vst [vmem:[%s359] sm:$0xff] %v447
        %456 = vst [vmem:[%s359 + $0x8] sm:$0xff] %v448
        %457 = vst [vmem:[%s359 + $0x10] sm:$0xff] %v449
        %458 = vst [vmem:[%s359 + $0x18] sm:$0xff] %v450
        %459 = vst [vmem:[%s359 + $0x20] sm:$0xff] %v451
        %460 = vst [vmem:[%s359 + $0x28] sm:$0xff] %v452
        %461 = vst [vmem:[%s359 + $0x30] sm:$0xff] %v453
        %462 = vst [vmem:[%s359 + $0x38] sm:$0xff] %v454
        %s463 = sand.u32 %s172, 1
        %s464 = scalar_lea.sflag [#allocation4], %s463
        %s465 = sand.u32 %s172, 1
        %s466 = smul.addr %s465, 64
        %s467 = scalar_lea.vmem [#allocation13], %s466
        // Predicated region
        $region69: #{bottleneck_forward.7} parent=43 // pred_check
          %p468 = pneg %p182
        $region70: #{bottleneck_forward.7} parent=43 // pred_check_branch
          %470 = sbr.rel (%p468) target = $region72
        $region71: #{bottleneck_forward.7} parent=43 // pred_region
          %s471 = smul.u32 8, %s28
          %s473 = ssub.s32 1024, 1024
          %474 = vsyncadd %s464, %s473
          %s475 = smul.addr %s471, 128
          %s476 = scalar_lea.hbm %s6, %s475
          %s477 = sshll.u32 %s467, 4
          %s478 = int_to_ptr.vmem [resolvable:$true] %s477
          %483 = dma.vmem_to_hbm [thread:$0]  %s478, 1024, %s476, %s464, 128, 128, 8
        $region72: #{bottleneck_forward.7} parent=43 // pred_fallthru
          _
      $region44: #{bottleneck_forward.7} parent=5 // pred_fallthru
        _
      %p484 = scmp.le.s32.totalorder 2, %s23
      // Predicated region
      $region73: #{bottleneck_forward.7} parent=5 // pred_check
        %p485 = pneg %p484
      $region74: #{bottleneck_forward.7} parent=5 // pred_check_branch
        %487 = sbr.rel (%p485) target = $region76
      $region75: #{bottleneck_forward.7} parent=5 // pred_region
        %s488 = ssub.s32 %s23, 2
        // Predicated region
        $region77: #{bottleneck_forward.7} parent=75 // pred_check
          %p489 = pneg %p188
        $region78: #{bottleneck_forward.7} parent=75 // pred_check_branch
          %491 = sbr.rel (%p489) target = $region80
        $region79: #{bottleneck_forward.7} parent=75 // pred_region
          %s492 = sand.u32 %s173, 1
          %s493 = scalar_lea.sflag [#allocation4], %s492
          %s494 = sand.u32 %s173, 1
          %s495 = smul.addr %s494, 64
          %s496 = scalar_lea.vmem [#allocation13], %s495
          %497 = dma.done %s493, 1024
        $region80: #{bottleneck_forward.7} parent=75 // pred_fallthru
          _
      $region76: #{bottleneck_forward.7} parent=5 // pred_fallthru
        _
    $region6: #{bottleneck_forward.7} parent=1 // loop_footer
      %s27 = sadd.s32 1, %s23
    $region7: #{bottleneck_forward.7} parent=1 // loop_footer_branch
      %22 = sbr.rel target = $region3
    $region8: #{bottleneck_forward.7} parent=1 // loop_exit
      _
    %498 = vsyncpa [#allocation3], 1
    %s499 = scalar_lea.sflag [#allocation3], 1
    %500 = vsyncpa %s499, 1
    %501 = vsyncpa [#allocation6], 1
    %502 = vsyncpa [#allocation9], 1
    %s503 = scalar_lea.sflag [#allocation9], 1
    %504 = vsyncpa %s503, 1
    %505 = vsyncpa [#allocation12], 1
    %506 = vsyncpa [#allocation4], 1
    %s507 = scalar_lea.sflag [#allocation4], 1
    %508 = vsyncpa %s507, 1

// kernel: bottleneck_forward.6
$region0: #{bottleneck_forward.6}
  #allocation0 [shape = 'u32[]', space=smem, size = 0x4, offset = 0x4, fixed_abs, tag = 'smem constant byte address 0x4 - core index']
  #allocation1 [shape = 'u32[144,128]{1,0:T(1,128)}', space=vmem, size = 0x12000, scoped, tag = 'internal scratch']
  %s0 = inlined_call_operand.hbm [shape: f32[128,128], index: 0, kind: input, shape index: {}]
  %s1 = inlined_call_operand.hbm [shape: f32[128,1], index: 1, kind: input, shape index: {}]
  %s2 = inlined_call_operand.hbm [shape: f32[1,128], index: 2, kind: input, shape index: {}]
  %s3 = inlined_call_operand.hbm [shape: f32[1,128], index: 3, kind: input, shape index: {}]
  %s4 = inlined_call_operand.hbm [shape: f32[128,128], index: 4, kind: input, shape index: {}]
  %s5 = inlined_call_operand.hbm [shape: f32[128,128], index: 5, kind: output, shape index: {0}]
  %s6 = inlined_call_operand.hbm [shape: f32[2,2,128], index: 6, kind: output, shape index: {1}]
  %7 = xla_tuple %s5, %s6
  %s8 = sld [smem:[#allocation0]]
  $region81: #{bottleneck_forward.6} parent=0
    _
  %s10 = ssub.s32 1, %s8
  %s11 = scalar_select 0, %s10, %s8
  $region1: #{bottleneck_forward.6} parent=0
    #allocation2 [shape = 'u8[65536]{0}', space=vmem, size = 0x10000, scoped, tag = 'input window, operand 0']
    #allocation3 [shape = 's32[2]{0}', space=sflag, size = 0x8, scoped, tag = 'scoped memory for bottleneck_forward.6']
    #allocation4 [shape = 's32[2]{0}', space=sflag, size = 0x8, scoped, tag = 'scoped memory for bottleneck_forward.6']
    #allocation5 [shape = 'u8[65536]{0}', space=vmem, size = 0x10000, scoped, tag = 'input window, operand 1']
    #allocation6 [shape = 's32[2]{0}', space=sflag, size = 0x8, scoped, tag = 'scoped memory for bottleneck_forward.6']
    #allocation7 [shape = 'u8[512]{0}', space=vmem, size = 0x400, scoped, tag = 'input window, operand 2, single buffered']
    #allocation8 [shape = 'u8[512]{0}', space=vmem, size = 0x400, scoped, tag = 'input window, operand 3, single buffered']
    #allocation9 [shape = 's32[1]{0}', space=sflag, size = 0x4, scoped, tag = 'scoped memory for bottleneck_forward.6']
    #allocation10 [shape = 'u8[65536]{0}', space=vmem, size = 0x10000, scoped, tag = 'input window, operand 4, single buffered']
    #allocation11 [shape = 'u8[65536]{0}', space=vmem, size = 0x10000, scoped, tag = 'output window, operand 0']
    #allocation12 [shape = 'u8[2048]{0}', space=vmem, size = 0x800, scoped, tag = 'output window, operand 1']
    #allocation13 [shape = 's32[2]{0}', space=sflag, size = 0x8, scoped, tag = 'scoped memory for bottleneck_forward.6']
    %12 = vsyncpa [#allocation3], 0
    %s13 = scalar_lea.sflag [#allocation3], 1
    %14 = vsyncpa %s13, 0
    %15 = vsyncpa [#allocation6], 0
    %s16 = scalar_lea.sflag [#allocation6], 1
    %17 = vsyncpa %s16, 0
    %18 = vsyncpa [#allocation9], 0
    %19 = vsyncpa [#allocation4], 0
    %s20 = scalar_lea.sflag [#allocation4], 1
    %21 = vsyncpa %s20, 0
    %22 = vsyncpa [#allocation13], 0
    %s23 = scalar_lea.sflag [#allocation13], 1
    %24 = vsyncpa %s23, 0
    loop: start=0, step=1, limit=4
    $region2: #{bottleneck_forward.6} parent=1 // loop_pre_header
      _
    $region3: #{bottleneck_forward.6} parent=1 // loop_header
      %s26 = sphi 0, %s30
      %p27 = scmp.ge.s32.totalorder %s26, 4
      %s36 = sphi 0, %s38
      %s39 = sphi 0, %s36
      %s40 = sphi 0, %s39
      %s56 = sphi 0, %s40
      %s62 = sphi 0, %s64
      %s65 = sphi 0, %s62
      %s66 = sphi 0, %s65
      %s82 = sphi 0, %s66
      %s86 = sphi 0, %s86
      %s88 = sphi 0, %s86
      %s89 = sphi 0, %s88
      %s103 = sphi 0, %s89
      %s107 = sphi 0, %s107
      %s109 = sphi 0, %s107
      %s110 = sphi 0, %s109
      %s124 = sphi 0, %s110
      %s128 = sphi 0, %s128
      %s130 = sphi 0, %s128
      %s131 = sphi 0, %s130
      %s145 = sphi 0, %s131
      %s151 = sphi 0, %s153
      %s154 = sphi 0, %s151
      %s155 = sphi 0, %s154
      %s171 = sphi 0, %s155
      %s177 = sphi 0, %s179
      %s180 = sphi 0, %s177
      %s181 = sphi 0, %s180
      %s197 = sphi 0, %s181
    $region4: #{bottleneck_forward.6} parent=1 // loop_header_branch
      %29 = sbr.rel (%p27) target = $region8
    $region5: #{bottleneck_forward.6} parent=1 // loop_body
      %s31 = ssub.s32 %s26, 1
      %s32 = ssub.s32 %s26, 2
      %s33 = sadd.s32 %s26, 1
      %s34 = ssub.s32 %s26, %s33
      %p35 = scmp.eq.s32.totalorder %s34, 0
      %s37 = sadd.s32 %s36, 1
      %s38 = scalar_select %p35, %s36, %s37
      %p41 = pneg %p35
      %p42 = scmp.eq.s32.totalorder %s26, 1
      %p43 = por %p41, %p42
      %p44 = scmp.ne.s32.totalorder %s36, %s39
      %p45 = scmp.eq.s32.totalorder %s26, 0
      %p46 = por %p44, %p45
      %p47 = scmp.ne.s32.totalorder %s36, %s39
      %p48 = scmp.eq.s32.totalorder %s31, 1
      %p49 = por %p47, %p48
      %p50 = scmp.ne.s32.totalorder %s39, %s40
      %p51 = scmp.eq.s32.totalorder %s31, 0
      %p52 = por %p50, %p51
      %p53 = scmp.ne.s32.totalorder %s39, %s40
      %p54 = scmp.eq.s32.totalorder %s32, 1
      %p55 = por %p53, %p54
      %p57 = scmp.ne.s32.totalorder %s40, %s56
      %p58 = scmp.eq.s32.totalorder %s32, 0
      %p59 = por %p57, %p58
      %s60 = ssub.s32 %s26, %s33
      %p61 = scmp.eq.s32.totalorder %s60, 0
      %s63 = sadd.s32 %s62, 1
      %s64 = scalar_select %p61, %s62, %s63
      %p67 = pneg %p61
      %p68 = scmp.eq.s32.totalorder %s26, 1
      %p69 = por %p67, %p68
      %p70 = scmp.ne.s32.totalorder %s62, %s65
      %p71 = scmp.eq.s32.totalorder %s26, 0
      %p72 = por %p70, %p71
      %p73 = scmp.ne.s32.totalorder %s62, %s65
      %p74 = scmp.eq.s32.totalorder %s31, 1
      %p75 = por %p73, %p74
      %p76 = scmp.ne.s32.totalorder %s65, %s66
      %p77 = scmp.eq.s32.totalorder %s31, 0
      %p78 = por %p76, %p77
      %p79 = scmp.ne.s32.totalorder %s65, %s66
      %p80 = scmp.eq.s32.totalorder %s32, 1
      %p81 = por %p79, %p80
      %p83 = scmp.ne.s32.totalorder %s66, %s82
      %p84 = scmp.eq.s32.totalorder %s32, 0
      %p85 = por %p83, %p84
      %s87 = sadd.s32 %s86, 1
      %p90 = scmp.eq.s32.totalorder %s26, 1
      %p91 = scmp.ne.s32.totalorder %s86, %s88
      %p92 = scmp.eq.s32.totalorder %s26, 0
      %p93 = por %p91, %p92
      %p94 = scmp.ne.s32.totalorder %s86, %s88
      %p95 = scmp.eq.s32.totalorder %s31, 1
      %p96 = por %p94, %p95
      %p97 = scmp.ne.s32.totalorder %s88, %s89
      %p98 = scmp.eq.s32.totalorder %s31, 0
      %p99 = por %p97, %p98
      %p100 = scmp.ne.s32.totalorder %s88, %s89
      %p101 = scmp.eq.s32.totalorder %s32, 1
      %p102 = por %p100, %p101
      %p104 = scmp.ne.s32.totalorder %s89, %s103
      %p105 = scmp.eq.s32.totalorder %s32, 0
      %p106 = por %p104, %p105
      %s108 = sadd.s32 %s107, 1
      %p111 = scmp.eq.s32.totalorder %s26, 1
      %p112 = scmp.ne.s32.totalorder %s107, %s109
      %p113 = scmp.eq.s32.totalorder %s26, 0
      %p114 = por %p112, %p113
      %p115 = scmp.ne.s32.totalorder %s107, %s109
      %p116 = scmp.eq.s32.totalorder %s31, 1
      %p117 = por %p115, %p116
      %p118 = scmp.ne.s32.totalorder %s109, %s110
      %p119 = scmp.eq.s32.totalorder %s31, 0
      %p120 = por %p118, %p119
      %p121 = scmp.ne.s32.totalorder %s109, %s110
      %p122 = scmp.eq.s32.totalorder %s32, 1
      %p123 = por %p121, %p122
      %p125 = scmp.ne.s32.totalorder %s110, %s124
      %p126 = scmp.eq.s32.totalorder %s32, 0
      %p127 = por %p125, %p126
      %s129 = sadd.s32 %s128, 1
      %p132 = scmp.eq.s32.totalorder %s26, 1
      %p133 = scmp.ne.s32.totalorder %s128, %s130
      %p134 = scmp.eq.s32.totalorder %s26, 0
      %p135 = por %p133, %p134
      %p136 = scmp.ne.s32.totalorder %s128, %s130
      %p137 = scmp.eq.s32.totalorder %s31, 1
      %p138 = por %p136, %p137
      %p139 = scmp.ne.s32.totalorder %s130, %s131
      %p140 = scmp.eq.s32.totalorder %s31, 0
      %p141 = por %p139, %p140
      %p142 = scmp.ne.s32.totalorder %s130, %s131
      %p143 = scmp.eq.s32.totalorder %s32, 1
      %p144 = por %p142, %p143
      %p146 = scmp.ne.s32.totalorder %s131, %s145
      %p147 = scmp.eq.s32.totalorder %s32, 0
      %p148 = por %p146, %p147
      %s149 = ssub.s32 %s26, %s33
      %p150 = scmp.eq.s32.totalorder %s149, 0
      %s152 = sadd.s32 %s151, 1
      %s153 = scalar_select %p150, %s151, %s152
      %p156 = pneg %p150
      %p157 = scmp.eq.s32.totalorder %s26, 1
      %p158 = por %p156, %p157
      %p159 = scmp.ne.s32.totalorder %s151, %s154
      %p160 = scmp.eq.s32.totalorder %s26, 0
      %p161 = por %p159, %p160
      %p162 = scmp.ne.s32.totalorder %s151, %s154
      %p163 = scmp.eq.s32.totalorder %s31, 1
      %p164 = por %p162, %p163
      %p165 = scmp.ne.s32.totalorder %s154, %s155
      %p166 = scmp.eq.s32.totalorder %s31, 0
      %p167 = por %p165, %p166
      %p168 = scmp.ne.s32.totalorder %s154, %s155
      %p169 = scmp.eq.s32.totalorder %s32, 1
      %p170 = por %p168, %p169
      %p172 = scmp.ne.s32.totalorder %s155, %s171
      %p173 = scmp.eq.s32.totalorder %s32, 0
      %p174 = por %p172, %p173
      %s175 = ssub.s32 %s26, %s33
      %p176 = scmp.eq.s32.totalorder %s175, 0
      %s178 = sadd.s32 %s177, 1
      %s179 = scalar_select %p176, %s177, %s178
      %p182 = pneg %p176
      %p183 = scmp.eq.s32.totalorder %s26, 1
      %p184 = por %p182, %p183
      %p185 = scmp.ne.s32.totalorder %s177, %s180
      %p186 = scmp.eq.s32.totalorder %s26, 0
      %p187 = por %p185, %p186
      %p188 = scmp.ne.s32.totalorder %s177, %s180
      %p189 = scmp.eq.s32.totalorder %s31, 1
      %p190 = por %p188, %p189
      %p191 = scmp.ne.s32.totalorder %s180, %s181
      %p192 = scmp.eq.s32.totalorder %s31, 0
      %p193 = por %p191, %p192
      %p194 = scmp.ne.s32.totalorder %s180, %s181
      %p195 = scmp.eq.s32.totalorder %s32, 1
      %p196 = por %p194, %p195
      %p198 = scmp.ne.s32.totalorder %s181, %s197
      %p199 = scmp.eq.s32.totalorder %s32, 0
      %p200 = por %p198, %p199
      %p201 = scmp.le.s32.totalorder 1, %s26
      %p202 = scmp.lt.s32.totalorder %s26, 3
      %p203 = pnand %p201, %p202
      %p204 = pneg %p203
      // Predicated region
      $region9: #{bottleneck_forward.6} parent=5 // pred_check
        _
      $region10: #{bottleneck_forward.6} parent=5 // pred_check_branch
        %206 = sbr.rel (%p203) target = $region12
      $region11: #{bottleneck_forward.6} parent=5 // pred_region
        %s207 = ssub.s32 %s26, 1
        // Predicated region
        $region13: #{bottleneck_forward.6} parent=11 // pred_check
          %p208 = pneg %p99
        $region14: #{bottleneck_forward.6} parent=11 // pred_check_branch
          %210 = sbr.rel (%p208) target = $region16
        $region15: #{bottleneck_forward.6} parent=11 // pred_region
          %s212 = ssub.s32 16, 16
          %213 = vsyncadd [#allocation6], %s212
          %s215 = sshll.u32 [#allocation7], 4
          %s216 = int_to_ptr.vmem [resolvable:$true] %s215
          %218 = dma.hbm_to_vmem [thread:$0]  %s2, 16, %s216, [#allocation6]
        $region16: #{bottleneck_forward.6} parent=11 // pred_fallthru
          _
        // Predicated region
        $region17: #{bottleneck_forward.6} parent=11 // pred_check
          %p219 = pneg %p120
        $region18: #{bottleneck_forward.6} parent=11 // pred_check_branch
          %221 = sbr.rel (%p219) target = $region20
        $region19: #{bottleneck_forward.6} parent=11 // pred_region
          %s223 = ssub.s32 16, 16
          %224 = vsyncadd [#allocation9], %s223
          %s226 = sshll.u32 [#allocation8], 4
          %s227 = int_to_ptr.vmem [resolvable:$true] %s226
          %229 = dma.hbm_to_vmem [thread:$0]  %s3, 16, %s227, [#allocation9]
        $region20: #{bottleneck_forward.6} parent=11 // pred_fallthru
          _
        // Predicated region
        $region21: #{bottleneck_forward.6} parent=11 // pred_check
          %p230 = pneg %p141
        $region22: #{bottleneck_forward.6} parent=11 // pred_check_branch
          %232 = sbr.rel (%p230) target = $region24
        $region23: #{bottleneck_forward.6} parent=11 // pred_region
          %s234 = ssub.s32 2048, 2048
          %235 = vsyncadd [#allocation9], %s234
          %s236 = sshll.u32 [#allocation10], 4
          %s237 = int_to_ptr.vmem [resolvable:$true] %s236
          %242 = dma.hbm_to_vmem [thread:$0]  %s4, 2048, %s237, [#allocation9], 128, 128, 8
        $region24: #{bottleneck_forward.6} parent=11 // pred_fallthru
          _
      $region12: #{bottleneck_forward.6} parent=5 // pred_fallthru
        _
      %p243 = scmp.lt.s32.totalorder %s26, 2
      // Predicated region
      $region25: #{bottleneck_forward.6} parent=5 // pred_check
        %p244 = pneg %p243
      $region26: #{bottleneck_forward.6} parent=5 // pred_check_branch
        %246 = sbr.rel (%p244) target = $region28
      $region27: #{bottleneck_forward.6} parent=5 // pred_region
        // Predicated region
        $region29: #{bottleneck_forward.6} parent=27 // pred_check
          %p247 = pneg %p46
        $region30: #{bottleneck_forward.6} parent=27 // pred_check_branch
          %249 = sbr.rel (%p247) target = $region32
        $region31: #{bottleneck_forward.6} parent=27 // pred_region
          %s250 = sand.u32 %s36, 1
          %s251 = scalar_lea.sflag [#allocation3], %s250
          %s252 = sand.u32 %s36, 1
          %s253 = smul.addr %s252, 64
          %s254 = scalar_lea.vmem [#allocation2], %s253
          %s255 = smul.u32 8, %s26
          %s257 = ssub.s32 1024, 1024
          %258 = vsyncadd %s251, %s257
          %s259 = smul.addr %s255, 128
          %s260 = scalar_lea.hbm %s0, %s259
          %s261 = sshll.u32 %s254, 4
          %s262 = int_to_ptr.vmem [resolvable:$true] %s261
          %267 = dma.hbm_to_vmem [thread:$0]  %s260, 1024, %s262, %s251, 128, 128, 8
        $region32: #{bottleneck_forward.6} parent=27 // pred_fallthru
          _
        // Predicated region
        $region33: #{bottleneck_forward.6} parent=27 // pred_check
          %p268 = pneg %p72
        $region34: #{bottleneck_forward.6} parent=27 // pred_check_branch
          %270 = sbr.rel (%p268) target = $region36
        $region35: #{bottleneck_forward.6} parent=27 // pred_region
          %s271 = sand.u32 %s26, 1
          %s272 = scalar_lea.sflag [#allocation6], %s271
          %s273 = sand.u32 %s62, 1
          %s274 = smul.addr %s273, 64
          %s275 = scalar_lea.vmem [#allocation5], %s274
          %s276 = smul.u32 8, %s26
          %s278 = ssub.s32 1024, 1024
          %279 = vsyncadd %s272, %s278
          %s280 = smul.addr %s276, 128
          %s281 = scalar_lea.hbm %s1, %s280
          %s282 = sshll.u32 %s275, 4
          %s283 = int_to_ptr.vmem [resolvable:$true] %s282
          %288 = dma.hbm_to_vmem [thread:$0]  %s281, 1024, %s283, %s272, 128, 128, 8
        $region36: #{bottleneck_forward.6} parent=27 // pred_fallthru
          _
      $region28: #{bottleneck_forward.6} parent=5 // pred_fallthru
        _
      %p289 = scmp.le.s32.totalorder 1, %s26
      %p290 = scmp.lt.s32.totalorder %s26, 3
      %p291 = pnand %p289, %p290
      %p292 = pneg %p291
      // Predicated region
      $region37: #{bottleneck_forward.6} parent=5 // pred_check
        _
      $region38: #{bottleneck_forward.6} parent=5 // pred_check_branch
        %294 = sbr.rel (%p291) target = $region40
      $region39: #{bottleneck_forward.6} parent=5 // pred_region
        %s295 = ssub.s32 %s26, 1
        %s296 = sand.u32 %s39, 1
        %s297 = scalar_lea.sflag [#allocation3], %s296
        %s298 = sand.u32 %s39, 1
        %s299 = smul.addr %s298, 64
        %s300 = scalar_lea.vmem [#allocation2], %s299
        // Predicated region
        $region41: #{bottleneck_forward.6} parent=39 // pred_check
          %p301 = pneg %p52
        $region42: #{bottleneck_forward.6} parent=39 // pred_check_branch
          %303 = sbr.rel (%p301) target = $region44
        $region43: #{bottleneck_forward.6} parent=39 // pred_region
          %304 = dma.done %s297, 1024
        $region44: #{bottleneck_forward.6} parent=39 // pred_fallthru
          _
        %s305 = sand.u32 %s31, 1
        %s306 = scalar_lea.sflag [#allocation6], %s305
        %s307 = sand.u32 %s65, 1
        %s308 = smul.addr %s307, 64
        %s309 = scalar_lea.vmem [#allocation5], %s308
        // Predicated region
        $region45: #{bottleneck_forward.6} parent=39 // pred_check
          %p310 = pneg %p78
        $region46: #{bottleneck_forward.6} parent=39 // pred_check_branch
          %312 = sbr.rel (%p310) target = $region48
        $region47: #{bottleneck_forward.6} parent=39 // pred_region
          %313 = dma.done %s306, 1024
        $region48: #{bottleneck_forward.6} parent=39 // pred_fallthru
          _
        // Predicated region
        $region49: #{bottleneck_forward.6} parent=39 // pred_check
          %p314 = pneg %p99
        $region50: #{bottleneck_forward.6} parent=39 // pred_check_branch
          %316 = sbr.rel (%p314) target = $region52
        $region51: #{bottleneck_forward.6} parent=39 // pred_region
          %317 = dma.done [#allocation6], 16
        $region52: #{bottleneck_forward.6} parent=39 // pred_fallthru
          _
        // Predicated region
        $region53: #{bottleneck_forward.6} parent=39 // pred_check
          %p318 = pneg %p120
        $region54: #{bottleneck_forward.6} parent=39 // pred_check_branch
          %320 = sbr.rel (%p318) target = $region56
        $region55: #{bottleneck_forward.6} parent=39 // pred_region
          %321 = dma.done [#allocation9], 16
        $region56: #{bottleneck_forward.6} parent=39 // pred_fallthru
          _
        // Predicated region
        $region57: #{bottleneck_forward.6} parent=39 // pred_check
          %p322 = pneg %p141
        $region58: #{bottleneck_forward.6} parent=39 // pred_check_branch
          %324 = sbr.rel (%p322) target = $region60
        $region59: #{bottleneck_forward.6} parent=39 // pred_region
          %325 = dma.done [#allocation9], 2048
        $region60: #{bottleneck_forward.6} parent=39 // pred_fallthru
          _
        %s326 = sand.u32 %s39, 1
        %s327 = scalar_lea.sflag [#allocation3], %s326
        %s328 = sand.u32 %s39, 1
        %s329 = smul.addr %s328, 64
        %s330 = scalar_lea.vmem [#allocation2], %s329
        %p331 = pneg %p52
        %p332 = pneg %p49
        %s333 = sand.u32 %s31, 1
        %s334 = scalar_lea.sflag [#allocation6], %s333
        %s335 = sand.u32 %s65, 1
        %s336 = smul.addr %s335, 64
        %s337 = scalar_lea.vmem [#allocation5], %s336
        %p338 = pneg %p78
        %p339 = pneg %p75
        %p340 = pneg %p99
        %p341 = pneg %p96
        %p342 = pneg %p120
        %p343 = pneg %p117
        %p344 = pneg %p141
        %p345 = pneg %p138
        %p346 = pneg %p167
        %p347 = pneg %p164
        %s348 = sand.u32 %s154, 1
        %s349 = scalar_lea.sflag [#allocation4], %s348
        %s350 = sand.u32 %s154, 1
        %s351 = smul.addr %s350, 64
        %s352 = scalar_lea.vmem [#allocation11], %s351
        %p353 = pneg %p193
        %p354 = pneg %p190
        %s355 = sand.u32 %s180, 1
        %s356 = scalar_lea.sflag [#allocation13], %s355
        %s357 = sand.u32 %s180, 1
        %s358 = smul.addr %s357, 2
        %s359 = scalar_lea.vmem [#allocation12], %s358
        %s360 = smul.u32 8, %s31
        %s361 = smul.u32 8, %s31
        %s362 = smul.u32 8, %s31
        %v363 = vld [vmem:[%s300] sm:$0xff]
        %v364 = vld [vmem:[%s300 + $0x8] sm:$0xff]
        %v365 = vld [vmem:[%s300 + $0x10] sm:$0xff]
        %v366 = vld [vmem:[%s300 + $0x18] sm:$0xff]
        %v367 = vld [vmem:[%s300 + $0x20] sm:$0xff]
        %v368 = vld [vmem:[%s300 + $0x28] sm:$0xff]
        %v369 = vld [vmem:[%s300 + $0x30] sm:$0xff]
        %v370 = vld [vmem:[%s300 + $0x38] sm:$0xff]
        %v371 = vld [vmem:[#allocation7] sm:$0x1]
        %v373 = vlaneseq
        %v374 = vshrl.u32 %v373, 7
        %v375 = vsub.s32 0, %v374
        %v376 = vrot.slane %v371, %v375
        %v378 = vmul.f32 %v363, %v376
        %v379 = vmul.f32 %v364, %v376
        %v380 = vmul.f32 %v365, %v376
        %v381 = vmul.f32 %v366, %v376
        %v382 = vmul.f32 %v367, %v376
        %v383 = vmul.f32 %v368, %v376
        %v384 = vmul.f32 %v369, %v376
        %v385 = vmul.f32 %v370, %v376
        %v386 = vld [vmem:[#allocation8] sm:$0x1]
        %v388 = vlaneseq
        %v389 = vshrl.u32 %v388, 7
        %v390 = vsub.s32 0, %v389
        %v391 = vrot.slane %v386, %v390
        %v393 = vadd.f32 %v378, %v391
        %v394 = vadd.f32 %v379, %v391
        %v395 = vadd.f32 %v380, %v391
        %v396 = vadd.f32 %v381, %v391
        %v397 = vadd.f32 %v382, %v391
        %v398 = vadd.f32 %v383, %v391
        %v399 = vadd.f32 %v384, %v391
        %v400 = vadd.f32 %v385, %v391
        %v401 = vmax.f32 %v393, 0.0
        %v402 = vmax.f32 %v394, 0.0
        %v403 = vmax.f32 %v395, 0.0
        %v404 = vmax.f32 %v396, 0.0
        %v405 = vmax.f32 %v397, 0.0
        %v406 = vmax.f32 %v398, 0.0
        %v407 = vmax.f32 %v399, 0.0
        %v408 = vmax.f32 %v400, 0.0
        %v409 = vld [vmem:[%s309] sm:$0xff]
        %v410 = vld [vmem:[%s309 + $0x8] sm:$0xff]
        %v411 = vld [vmem:[%s309 + $0x10] sm:$0xff]
        %v412 = vld [vmem:[%s309 + $0x18] sm:$0xff]
        %v413 = vld [vmem:[%s309 + $0x20] sm:$0xff]
        %v414 = vld [vmem:[%s309 + $0x28] sm:$0xff]
        %v415 = vld [vmem:[%s309 + $0x30] sm:$0xff]
        %v416 = vld [vmem:[%s309 + $0x38] sm:$0xff]
        %418 = vset.pattern.permute.xlu0 0
        %419 = vperm.xlu0 %418, %v409
        %v420 = vpop.permute.xlu0 %419
        %423 = vset.pattern.permute.xlu0 0
        %424 = vperm.xlu0 %423, %v410
        %v425 = vpop.permute.xlu0 %424
        %428 = vset.pattern.permute.xlu0 0
        %429 = vperm.xlu0 %428, %v411
        %v430 = vpop.permute.xlu0 %429
        %433 = vset.pattern.permute.xlu0 0
        %434 = vperm.xlu0 %433, %v412
        %v435 = vpop.permute.xlu0 %434
        %438 = vset.pattern.permute.xlu0 0
        %439 = vperm.xlu0 %438, %v413
        %v440 = vpop.permute.xlu0 %439
        %443 = vset.pattern.permute.xlu0 0
        %444 = vperm.xlu0 %443, %v414
        %v445 = vpop.permute.xlu0 %444
        %448 = vset.pattern.permute.xlu0 0
        %449 = vperm.xlu0 %448, %v415
        %v450 = vpop.permute.xlu0 %449
        %453 = vset.pattern.permute.xlu0 0
        %454 = vperm.xlu0 %453, %v416
        %v455 = vpop.permute.xlu0 %454
        %v457 = vmul.f32 %v401, %v420
        %v458 = vmul.f32 %v402, %v425
        %v459 = vmul.f32 %v403, %v430
        %v460 = vmul.f32 %v404, %v435
        %v461 = vmul.f32 %v405, %v440
        %v462 = vmul.f32 %v406, %v445
        %v463 = vmul.f32 %v407, %v450
        %v464 = vmul.f32 %v408, %v455
        %v465 = vld [vmem:[#allocation10] sm:$0xff]
        %v466 = vld [vmem:[#allocation10 + $0x8] sm:$0xff]
        %v467 = vld [vmem:[#allocation10 + $0x10] sm:$0xff]
        %v468 = vld [vmem:[#allocation10 + $0x18] sm:$0xff]
        %v469 = vld [vmem:[#allocation10 + $0x20] sm:$0xff]
        %v470 = vld [vmem:[#allocation10 + $0x28] sm:$0xff]
        %v471 = vld [vmem:[#allocation10 + $0x30] sm:$0xff]
        %v472 = vld [vmem:[#allocation10 + $0x38] sm:$0xff]
        %v473 = vld [vmem:[#allocation10 + $0x40] sm:$0xff]
        %v474 = vld [vmem:[#allocation10 + $0x48] sm:$0xff]
        %v475 = vld [vmem:[#allocation10 + $0x50] sm:$0xff]
        %v476 = vld [vmem:[#allocation10 + $0x58] sm:$0xff]
        %v477 = vld [vmem:[#allocation10 + $0x60] sm:$0xff]
        %v478 = vld [vmem:[#allocation10 + $0x68] sm:$0xff]
        %v479 = vld [vmem:[#allocation10 + $0x70] sm:$0xff]
        %v480 = vld [vmem:[#allocation10 + $0x78] sm:$0xff]
        %481 = vmatprep.subr.mxu0 0.0
        %482 = vmatpush1.msra.mxu0 %v465
        %483 = vmatprep.subr.mxu0 0.0
        %484 = vmatpush1.msra.mxu0 %v466
        %485 = vmatprep.subr.mxu0 0.0
        %486 = vmatpush1.msra.mxu0 %v467
        %487 = vmatprep.subr.mxu0 0.0
        %488 = vmatpush1.msra.mxu0 %v468
        %489 = vmatprep.subr.mxu0 0.0
        %490 = vmatpush1.msra.mxu0 %v469
        %491 = vmatprep.subr.mxu0 0.0
        %492 = vmatpush1.msra.mxu0 %v470
        %493 = vmatprep.subr.mxu0 0.0
        %494 = vmatpush1.msra.mxu0 %v471
        %495 = vmatprep.subr.mxu0 0.0
        %496 = vmatpush1.msra.mxu0 %v472
        %497 = vmatprep.subr.mxu0 0.0
        %498 = vmatpush1.msra.mxu0 %v473
        %499 = vmatprep.subr.mxu0 0.0
        %500 = vmatpush1.msra.mxu0 %v474
        %501 = vmatprep.subr.mxu0 0.0
        %502 = vmatpush1.msra.mxu0 %v475
        %503 = vmatprep.subr.mxu0 0.0
        %504 = vmatpush1.msra.mxu0 %v476
        %505 = vmatprep.subr.mxu0 0.0
        %506 = vmatpush1.msra.mxu0 %v477
        %507 = vmatprep.subr.mxu0 0.0
        %508 = vmatpush1.msra.mxu0 %v478
        %509 = vmatprep.subr.mxu0 0.0
        %510 = vmatpush1.msra.mxu0 %v479
        %511 = vmatprep.subr.mxu0 0.0
        %512 = vmatpush1.msra.mxu0 %v480
        %513 = vmatprep.subr.mxu0 0.0
        %514 = vmatpush1.msra.mxu0 0.0
        %515 = vmatprep.subr.mxu0 0.0
        %516 = vmatpush1.msra.mxu0 0.0
        %517 = vmatprep.subr.mxu0 0.0
        %518 = vmatpush1.msra.mxu0 0.0
        %519 = vmatprep.subr.mxu0 0.0
        %520 = vmatpush1.msra.mxu0 0.0
        %521 = vmatprep.subr.mxu0 0.0
        %522 = vmatpush1.msra.mxu0 0.0
        %523 = vmatprep.subr.mxu0 0.0
        %524 = vmatpush1.msra.mxu0 0.0
        %525 = vmatprep.subr.mxu0 0.0
        %526 = vmatpush1.msra.mxu0 0.0
        %527 = vmatprep.subr.mxu0 0.0
        %528 = vmatpush1.msra.mxu0 0.0
        %529 = vmatprep.subr.mxu0 0.0
        %530 = vmatpush1.msra.mxu0 0.0
        %531 = vmatprep.subr.mxu0 0.0
        %532 = vmatpush1.msra.mxu0 0.0
        %533 = vmatprep.subr.mxu0 0.0
        %534 = vmatpush1.msra.mxu0 0.0
        %535 = vmatprep.subr.mxu0 0.0
        %536 = vmatpush1.msra.mxu0 0.0
        %537 = vmatprep.subr.mxu0 0.0
        %538 = vmatpush1.msra.mxu0 0.0
        %539 = vmatprep.subr.mxu0 0.0
        %540 = vmatpush1.msra.mxu0 0.0
        %541 = vmatprep.subr.mxu0 0.0
        %542 = vmatpush1.msra.mxu0 0.0
        %543 = vmatprep.subr.mxu0 0.0
        %544 = vmatpush1.msra.mxu0 0.0
        %545 = vmatprep.mubr.f32.mxu0 0.0
        %546 = vmatmul.mubr.f32.gmra.mrb[0].mxu0 %v457
        %v547 = vpop.f32.mrb[0].mxu0
        %v548 = vadd.f32 0.0, %v547
        %v549 = vpop.f32.mrb[0].mxu0
        %550 = vmatprep.mubr.f32.mxu0 0.0
        %551 = vmatmul.mubr.f32.gmra.mrb[0].mxu0 %v458
        %v552 = vpop.f32.mrb[0].mxu0
        %v553 = vadd.f32 0.0, %v552
        %v554 = vpop.f32.mrb[0].mxu0
        %555 = vmatprep.mubr.f32.mxu0 0.0
        %556 = vmatmul.mubr.f32.gmra.mrb[0].mxu0 %v459
        %v557 = vpop.f32.mrb[0].mxu0
        %v558 = vadd.f32 0.0, %v557
        %v559 = vpop.f32.mrb[0].mxu0
        %560 = vmatprep.mubr.f32.mxu0 0.0
        %561 = vmatmul.mubr.f32.gmra.mrb[0].mxu0 %v460
        %v562 = vpop.f32.mrb[0].mxu0
        %v563 = vadd.f32 0.0, %v562
        %v564 = vpop.f32.mrb[0].mxu0
        %565 = vmatprep.mubr.f32.mxu0 0.0
        %566 = vmatmul.mubr.f32.gmra.mrb[0].mxu0 %v461
        %v567 = vpop.f32.mrb[0].mxu0
        %v568 = vadd.f32 0.0, %v567
        %v569 = vpop.f32.mrb[0].mxu0
        %570 = vmatprep.mubr.f32.mxu0 0.0
        %571 = vmatmul.mubr.f32.gmra.mrb[0].mxu0 %v462
        %v572 = vpop.f32.mrb[0].mxu0
        %v573 = vadd.f32 0.0, %v572
        %v574 = vpop.f32.mrb[0].mxu0
        %575 = vmatprep.mubr.f32.mxu0 0.0
        %576 = vmatmul.mubr.f32.gmra.mrb[0].mxu0 %v463
        %v577 = vpop.f32.mrb[0].mxu0
        %v578 = vadd.f32 0.0, %v577
        %v579 = vpop.f32.mrb[0].mxu0
        %580 = vmatprep.mubr.f32.mxu0 0.0
        %581 = vmatmul.mubr.f32.gmra.mrb[0].mxu0 %v464
        %v582 = vpop.f32.mrb[0].mxu0
        %v583 = vadd.f32 0.0, %v582
        %v584 = vpop.f32.mrb[0].mxu0
        %585 = vdwg.mxu0
        %586 = vst [vmem:[%s352] sm:$0xff] %v548
        %587 = vst [vmem:[%s352 + $0x8] sm:$0xff] %v553
        %588 = vst [vmem:[%s352 + $0x10] sm:$0xff] %v558
        %589 = vst [vmem:[%s352 + $0x18] sm:$0xff] %v563
        %590 = vst [vmem:[%s352 + $0x20] sm:$0xff] %v568
        %591 = vst [vmem:[%s352 + $0x28] sm:$0xff] %v573
        %592 = vst [vmem:[%s352 + $0x30] sm:$0xff] %v578
        %593 = vst [vmem:[%s352 + $0x38] sm:$0xff] %v583
        %v594 = vadd.f32 %v548, %v553
        %v595 = vadd.f32 %v594, %v558
        %v596 = vadd.f32 %v595, %v563
        %v597 = vadd.f32 %v596, %v568
        %v598 = vadd.f32 %v597, %v573
        %v599 = vadd.f32 %v598, %v578
        %v600 = vadd.f32 %v599, %v583
        %v601 = vrot.slane %v600, 4
        %v602 = vadd.f32 %v600, %v601
        %v603 = vrot.slane %v602, 2
        %v604 = vadd.f32 %v602, %v603
        %v605 = vrot.slane %v604, 1
        %v606 = vadd.f32 %v604, %v605
        %v607 = vmul.f32 %v548, %v548
        %v608 = vmul.f32 %v553, %v553
        %v609 = vmul.f32 %v558, %v558
        %v610 = vmul.f32 %v563, %v563
        %v611 = vmul.f32 %v568, %v568
        %v612 = vmul.f32 %v573, %v573
        %v613 = vmul.f32 %v578, %v578
        %v614 = vmul.f32 %v583, %v583
        %v615 = vadd.f32 %v607, %v608
        %v616 = vadd.f32 %v615, %v609
        %v617 = vadd.f32 %v616, %v610
        %v618 = vadd.f32 %v617, %v611
        %v619 = vadd.f32 %v618, %v612
        %v620 = vadd.f32 %v619, %v613
        %v621 = vadd.f32 %v620, %v614
        %v622 = vrot.slane %v621, 4
        %v623 = vadd.f32 %v621, %v622
        %v624 = vrot.slane %v623, 2
        %v625 = vadd.f32 %v623, %v624
        %v626 = vrot.slane %v625, 1
        %v627 = vadd.f32 %v625, %v626
        %vm628 = vcmask 1040384
        %v629 = vsel %vm628, %v606, %v627
        %630 = vst [vmem:[%s359] sm:$0x3] %v629
        %s631 = sand.u32 %s154, 1
        %s632 = scalar_lea.sflag [#allocation4], %s631
        %s633 = sand.u32 %s154, 1
        %s634 = smul.addr %s633, 64
        %s635 = scalar_lea.vmem [#allocation11], %s634
        %s636 = sand.u32 %s180, 1
        %s637 = scalar_lea.sflag [#allocation13], %s636
        %s638 = sand.u32 %s180, 1
        %s639 = smul.addr %s638, 2
        %s640 = scalar_lea.vmem [#allocation12], %s639
        // Predicated region
        $region61: #{bottleneck_forward.6} parent=39 // pred_check
          %p641 = pneg %p164
        $region62: #{bottleneck_forward.6} parent=39 // pred_check_branch
          %643 = sbr.rel (%p641) target = $region64
        $region63: #{bottleneck_forward.6} parent=39 // pred_region
          %s644 = smul.u32 8, %s31
          %s646 = ssub.s32 1024, 1024
          %647 = vsyncadd %s632, %s646
          %s648 = smul.addr %s644, 128
          %s649 = scalar_lea.hbm %s5, %s648
          %s650 = sshll.u32 %s635, 4
          %s651 = int_to_ptr.vmem [resolvable:$true] %s650
          %656 = dma.vmem_to_hbm [thread:$0]  %s651, 1024, %s649, %s632, 128, 128, 8
        $region64: #{bottleneck_forward.6} parent=39 // pred_fallthru
          _
        // Predicated region
        $region65: #{bottleneck_forward.6} parent=39 // pred_check
          %p657 = pneg %p190
        $region66: #{bottleneck_forward.6} parent=39 // pred_check_branch
          %659 = sbr.rel (%p657) target = $region68
        $region67: #{bottleneck_forward.6} parent=39 // pred_region
          %s661 = ssub.s32 32, 32
          %662 = vsyncadd %s637, %s661
          %s663 = smul.addr %s31, 32
          %s664 = scalar_lea.hbm %s6, %s663
          %s666 = sshll.u32 %s640, 4
          %s667 = int_to_ptr.vmem [resolvable:$true] %s666
          %669 = dma.vmem_to_hbm [thread:$0]  %s667, 32, %s664, %s637
        $region68: #{bottleneck_forward.6} parent=39 // pred_fallthru
          _
      $region40: #{bottleneck_forward.6} parent=5 // pred_fallthru
        _
      %p670 = scmp.le.s32.totalorder 2, %s26
      // Predicated region
      $region69: #{bottleneck_forward.6} parent=5 // pred_check
        %p671 = pneg %p670
      $region70: #{bottleneck_forward.6} parent=5 // pred_check_branch
        %673 = sbr.rel (%p671) target = $region72
      $region71: #{bottleneck_forward.6} parent=5 // pred_region
        %s674 = ssub.s32 %s26, 2
        // Predicated region
        $region73: #{bottleneck_forward.6} parent=71 // pred_check
          %p675 = pneg %p170
        $region74: #{bottleneck_forward.6} parent=71 // pred_check_branch
          %677 = sbr.rel (%p675) target = $region76
        $region75: #{bottleneck_forward.6} parent=71 // pred_region
          %s678 = sand.u32 %s155, 1
          %s679 = scalar_lea.sflag [#allocation4], %s678
          %s680 = sand.u32 %s155, 1
          %s681 = smul.addr %s680, 64
          %s682 = scalar_lea.vmem [#allocation11], %s681
          %683 = dma.done %s679, 1024
        $region76: #{bottleneck_forward.6} parent=71 // pred_fallthru
          _
        // Predicated region
        $region77: #{bottleneck_forward.6} parent=71 // pred_check
          %p684 = pneg %p196
        $region78: #{bottleneck_forward.6} parent=71 // pred_check_branch
          %686 = sbr.rel (%p684) target = $region80
        $region79: #{bottleneck_forward.6} parent=71 // pred_region
          %s687 = sand.u32 %s181, 1
          %s688 = scalar_lea.sflag [#allocation13], %s687
          %s689 = sand.u32 %s181, 1
          %s690 = smul.addr %s689, 2
          %s691 = scalar_lea.vmem [#allocation12], %s690
          %692 = dma.done %s688, 32
        $region80: #{bottleneck_forward.6} parent=71 // pred_fallthru
          _
      $region72: #{bottleneck_forward.6} parent=5 // pred_fallthru
        _
    $region6: #{bottleneck_forward.6} parent=1 // loop_footer
      %s30 = sadd.s32 1, %s26
    $region7: #{bottleneck_forward.6} parent=1 // loop_footer_branch
      %25 = sbr.rel target = $region3
    $region8: #{bottleneck_forward.6} parent=1 // loop_exit
      _
    %693 = vsyncpa [#allocation3], 1
    %s694 = scalar_lea.sflag [#allocation3], 1
    %695 = vsyncpa %s694, 1
    %696 = vsyncpa [#allocation6], 1
    %s697 = scalar_lea.sflag [#allocation6], 1
    %698 = vsyncpa %s697, 1
    %699 = vsyncpa [#allocation9], 1
    %700 = vsyncpa [#allocation4], 1
    %s701 = scalar_lea.sflag [#allocation4], 1
    %702 = vsyncpa %s701, 1
    %703 = vsyncpa [#allocation13], 1
    %s704 = scalar_lea.sflag [#allocation13], 1
    %705 = vsyncpa %s704, 1

</llo_original>
